<compile_context>
chip_gen: v7x
topology: tpu7x:2x2x1
jax: 0.10.0
libtpu: 0.0.40
codegen_flags: <defaults>
</compile_context>

<pallas_src>
import math
import functools

import jax
import jax.numpy as jnp
from jax.experimental import pallas as pl
from jax.experimental.pallas import tpu as pltpu


# ----------------------------------------------------------------------------
# VMEM budgeting (per TPU generation)
# ----------------------------------------------------------------------------
def _vmem_budget_bytes():
    cap = 64 << 20  # conservative default = v7x per-core VMEM
    try:
        info = pltpu.get_tpu_info()
        cap = int(getattr(info, "vmem_capacity_bytes", cap) or cap)
    except Exception:
        pass
    # Never request the full physical VMEM (leave compiler scratch / pipelining
    # headroom); never ask for more than ~110 MiB even on 128 MiB parts.
    return min(int(cap * 0.85), 110 << 20)


def _block_bytes(Bb, S, IN, D, F, nhead, OUT):
    """Rough per-grid-step VMEM footprint estimate."""
    f32b, bf16b = 4, 2
    M = Bb * S
    threeD = 3 * D
    # per-layer streamed weight block (double-buffered by the pipeline)
    wlayer = (D * threeD + D * D + D * F + F * D) * bf16b \
             + (threeD + 5 * D + F) * f32b
    # constant blocks (input proj, RoPE tables, output head, x block, preds)
    const = (IN * D + D + 3 * S * threeD + D * OUT + OUT
             + Bb * S * IN + Bb * OUT) * f32b
    scratch = 2 * M * D * f32b
    # rough bound on live compute temporaries (qkv + rolls, scores, ffn hidden)
    temps = (4 * M * threeD + 3 * Bb * nhead * S * S + 2 * M * F + 8 * M * D) * f32b
    return 2 * wlayer + 2 * const + scratch + temps


def _pick_batch_block(B, S, IN, D, F, nhead, OUT, budget):
    best = 1
    for bb in range(1, B + 1):
        if B % bb == 0 and _block_bytes(bb, S, IN, D, F, nhead, OUT) <= int(0.7 * budget):
            best = bb
    return best


# ----------------------------------------------------------------------------
# Fused encoder pallas_call builder.  grid = (batch_blocks, layer).
# ----------------------------------------------------------------------------
def build_encoder_call(B, S, IN, D, F, nhead, L, OUT, Bb, vmem_limit):
    hd = D // nhead
    M = Bb * S
    threeD = 3 * D
    f32, bf16 = jnp.float32, jnp.bfloat16

    def kernel(x_ref, w_in_ref, b_in_ref,
               wqkv_ref, bqkv_ref, wo_ref, bo_ref,
               g1_ref, be1_ref, g2_ref, be2_ref,
               w1_ref, bf1_ref, w2_ref, bf2_ref,
               cos_ref, sinp_ref, sinm_ref,
               wout_ref, bout_ref,
               out_ref, h_scr, ctx_scr):
        l = pl.program_id(1)

        # Seed the VMEM-resident residual stream with the (tiny-K) input
        # projection at the first layer of each batch block.
        @pl.when(l == 0)
        def _():
            x_in = x_ref[...].reshape(M, IN)
            h_scr[...] = (jnp.dot(x_in, w_in_ref[...],
                                  preferred_element_type=f32) + b_in_ref[...])

        x = h_scr[...]                                        # (M, D) f32

        # ---- LayerNorm 1 (pre-norm, f32) ----
        mu = jnp.mean(x, axis=-1, keepdims=True)
        var = jnp.mean((x - mu) ** 2, axis=-1, keepdims=True)
        xn = (x - mu) * jax.lax.rsqrt(var + 1e-5) * g1_ref[0] + be1_ref[0]

        # ---- fused QKV projection: one lane-dense (M, D) @ (D, 3D) matmul ----
        qkv = (jnp.dot(xn.astype(bf16), wqkv_ref[0],
                       preferred_element_type=f32) + bqkv_ref[0])   # (M, 3D) f32

        # ---- RoPE on the whole fused QKV in one shot.
        # Tables are (S, 3D): head-tiled, even/odd partner select + RoPE sign
        # folded into sin+/sin-, 1/sqrt(hd) folded into the Q third, identity on
        # the V third.  partner[j] = t[j±1] never crosses a head / Q|K|V section
        # boundary because hd (and D) are even.
        t_plus = pltpu.roll(qkv, shift=threeD - 1, axis=1)    # t_plus[j]  = t[j+1]
        t_minus = pltpu.roll(qkv, shift=1, axis=1)            # t_minus[j] = t[j-1]
        qkv_r = (qkv.reshape(Bb, S, threeD) * cos_ref[...]
                 + t_plus.reshape(Bb, S, threeD) * sinp_ref[...]
                 + t_minus.reshape(Bb, S, threeD) * sinm_ref[...]
                 ).reshape(M, threeD)

        q_all = qkv_r[:, 0 * D:1 * D].astype(bf16)
        k_all = qkv_r[:, 1 * D:2 * D].astype(bf16)
        v_all = qkv_r[:, 2 * D:3 * D].astype(bf16)

        # ---- causal attention (full (S, S) scores — fine at demo S) ----
        # TODO(synk): flash-style KV/query tiling + online softmax for long S.
        s_list = []
        for b in range(Bb):
            qb = q_all[b * S:(b + 1) * S]
            kb = k_all[b * S:(b + 1) * S]
            for h in range(nhead):
                s_list.append(jax.lax.dot_general(
                    qb[:, h * hd:(h + 1) * hd], kb[:, h * hd:(h + 1) * hd],
                    (((1,), (1,)), ((), ())), preferred_element_type=f32))
        s = jnp.stack(s_list, axis=0)                          # (Bb*nhead, S, S)
        row = jax.lax.broadcasted_iota(jnp.int32, (S, S), 0)
        col = jax.lax.broadcasted_iota(jnp.int32, (S, S), 1)
        s = jnp.where((col <= row)[None, :, :], s, jnp.float32(-1e30))
        m = jnp.max(s, axis=-1, keepdims=True)
        p = jnp.exp(s - m)
        attn = (p / jnp.sum(p, axis=-1, keepdims=True)).astype(bf16)

        # per-(batch, head) context written into a lane-major (M, D) buffer
        for b in range(Bb):
            vb = v_all[b * S:(b + 1) * S]
            for h in range(nhead):
                ctx_scr[b * S:(b + 1) * S, h * hd:(h + 1) * hd] = jnp.dot(
                    attn[b * nhead + h], vb[:, h * hd:(h + 1) * hd],
                    preferred_element_type=f32)

        # ---- single full-depth (K = D) output projection ----
        attn_out = (jnp.dot(ctx_scr[...].astype(bf16), wo_ref[0],
                            preferred_element_type=f32) + bo_ref[0])
        x1 = x + attn_out                                      # residual 1 (f32)

        # ---- LayerNorm 2 + feed-forward ----
        mu2 = jnp.mean(x1, axis=-1, keepdims=True)
        var2 = jnp.mean((x1 - mu2) ** 2, axis=-1, keepdims=True)
        xn2 = ((x1 - mu2) * jax.lax.rsqrt(var2 + 1e-5) * g2_ref[0]
               + be2_ref[0]).astype(bf16)
        h1 = jnp.maximum(
            jnp.dot(xn2, w1_ref[0], preferred_element_type=f32) + bf1_ref[0], 0.0)
        ff = (jnp.dot(h1.astype(bf16), w2_ref[0], preferred_element_type=f32)
              + bf2_ref[0])
        x2 = x1 + ff                                           # residual 2
        h_scr[...] = x2                                        # carry to next layer

        # ---- last layer: fused last-token output head ----
        @pl.when(l == L - 1)
        def _():
            last = x2.reshape(Bb, S, D)[:, S - 1, :]           # (Bb, D)
            out_ref[:, 0, :] = (jnp.dot(last, wout_ref[...],
                                        preferred_element_type=f32)
                                + bout_ref[...])

    # per-layer streamed blocks
    def lspec(*shape):
        zeros = (0,) * len(shape)
        return pl.BlockSpec((1,) + tuple(shape), lambda b, l: (l,) + zeros)

    # constant (fetched-once) blocks
    def cspec(*shape):
        zeros = (0,) * len(shape)
        return pl.BlockSpec(tuple(shape), lambda b, l: zeros)

    in_specs = [
        pl.BlockSpec((Bb, S, IN), lambda b, l: (b, 0, 0)),        # x
        cspec(IN, D), cspec(1, D),                                # input projection
        lspec(D, threeD), lspec(1, threeD),                       # fused Wqkv, bqkv
        lspec(D, D), lspec(1, D),                                 # Wo, bo
        lspec(1, D), lspec(1, D), lspec(1, D), lspec(1, D),       # ln1/ln2 g, b
        lspec(D, F), lspec(1, F),                                 # ffn W1, b1
        lspec(F, D), lspec(1, D),                                 # ffn W2, b2
        cspec(S, threeD), cspec(S, threeD), cspec(S, threeD),     # RoPE cos/sin+/sin-
        cspec(D, OUT), cspec(1, OUT),                             # output head
    ]

    return pl.pallas_call(
        kernel,
        out_shape=jax.ShapeDtypeStruct((B, 1, OUT), jnp.float32),
        grid_spec=pltpu.PrefetchScalarGridSpec(
            num_scalar_prefetch=0,
            grid=(B // Bb, L),
            in_specs=in_specs,
            out_specs=pl.BlockSpec((Bb, 1, OUT), lambda b, l: (b, 0, 0)),
            scratch_shapes=[pltpu.VMEM((M, D), jnp.float32),   # residual stream
                            pltpu.VMEM((M, D), jnp.float32)],  # attention context
        ),
        compiler_params=pltpu.CompilerParams(
            dimension_semantics=("parallel", "arbitrary"),
            vmem_limit_bytes=vmem_limit,
        ),
    )


# ----------------------------------------------------------------------------
# RoPE tables fused for the (Q | K | V) packed projection
# ----------------------------------------------------------------------------
def fused_rope_tables(seq_len, head_dim, nhead):
    f32 = jnp.float32
    inv_freq = 1.0 / (10000.0 ** (jnp.arange(0, head_dim, 2, dtype=f32) / head_dim))
    pos = jnp.arange(seq_len, dtype=f32)
    freqs = pos[:, None] * inv_freq[None, :]                 # (S, hd/2)
    cos = jnp.repeat(jnp.cos(freqs), 2, axis=-1)             # (S, hd): c0 c0 c1 c1 ..
    sin = jnp.sin(freqs)                                     # (S, hd/2)
    zeros = jnp.zeros_like(sin)
    # out[j] = t[j]*cos[j] + t[j+1]*sin_plus[j] + t[j-1]*sin_minus[j]
    sin_p = jnp.stack([-sin, zeros], axis=-1).reshape(seq_len, head_dim)  # even j
    sin_m = jnp.stack([zeros, sin], axis=-1).reshape(seq_len, head_dim)   # odd j
    cos_d = jnp.tile(cos, (1, nhead))                        # (S, D)
    sp_d = jnp.tile(sin_p, (1, nhead))
    sm_d = jnp.tile(sin_m, (1, nhead))
    D = head_dim * nhead
    scale = 1.0 / math.sqrt(head_dim)
    ones_d = jnp.ones((seq_len, D), f32)
    zero_d = jnp.zeros((seq_len, D), f32)
    cos_full = jnp.concatenate([cos_d * scale, cos_d, ones_d], axis=1)   # (S, 3D)
    sinp_full = jnp.concatenate([sp_d * scale, sp_d, zero_d], axis=1)
    sinm_full = jnp.concatenate([sm_d * scale, sm_d, zero_d], axis=1)
    return cos_full, sinp_full, sinm_full


# ----------------------------------------------------------------------------
# Parameters (Xavier weights; MXU-facing matrices in bf16, biases / LN in f32)
# ----------------------------------------------------------------------------
def xavier(key, fan_in, fan_out):
    limit = math.sqrt(6.0 / (fan_in + fan_out))
    return jax.random.uniform(key, (fan_in, fan_out), jnp.float32, -limit, limit)


def init_params(key, input_dim, hidden, ffn, num_layers, output_dim):
    keys = jax.random.split(key, 2 + num_layers * 6)
    params = {
        "w_in": xavier(keys[0], input_dim, hidden),
        "b_in": jnp.zeros((1, hidden), jnp.float32),
        "w_out": xavier(keys[1], hidden, output_dim),
        "b_out": jnp.zeros((1, output_dim), jnp.float32),
        "layers": [],
    }
    for l in range(num_layers):
        k = keys[2 + l * 6: 2 + (l + 1) * 6]
        params["layers"].append(dict(
            wq=xavier(k[0], hidden, hidden).astype(jnp.bfloat16),
            wk=xavier(k[1], hidden, hidden).astype(jnp.bfloat16),
            wv=xavier(k[2], hidden, hidden).astype(jnp.bfloat16),
            wo=xavier(k[3], hidden, hidden).astype(jnp.bfloat16),
            bq=jnp.zeros((1, hidden), jnp.float32),
            bk=jnp.zeros((1, hidden), jnp.float32),
            bv=jnp.zeros((1, hidden), jnp.float32),
            bo=jnp.zeros((1, hidden), jnp.float32),
            g1=jnp.ones((1, hidden), jnp.float32),
            be1=jnp.zeros((1, hidden), jnp.float32),
            g2=jnp.ones((1, hidden), jnp.float32),
            be2=jnp.zeros((1, hidden), jnp.float32),
            w1=xavier(k[4], hidden, ffn).astype(jnp.bfloat16),
            bf1=jnp.zeros((1, ffn), jnp.float32),
            w2=xavier(k[5], ffn, hidden).astype(jnp.bfloat16),
            bf2=jnp.zeros((1, hidden), jnp.float32),
        ))
    return params


# ----------------------------------------------------------------------------
# Full forward (Pallas) + mixed-precision-mirroring pure-JAX reference
# ----------------------------------------------------------------------------
@functools.partial(jax.jit, static_argnums=(2,))
def encoder_forward(x, params, nhead):
    B, S, IN = x.shape
    D = params["w_in"].shape[1]
    F = params["layers"][0]["w1"].shape[1]
    L = len(params["layers"])
    OUT = params["w_out"].shape[1]
    hd = D // nhead
    assert D % nhead == 0 and hd % 2 == 0
    assert S % 8 == 0, "demo kernel assumes seq_len is a sublane multiple"

    layers = params["layers"]
    # Fused / stacked weight layouts (host-side packing, done once per trace).
    wqkv = jnp.stack([jnp.concatenate([lp["wq"], lp["wk"], lp["wv"]], axis=1)
                      for lp in layers])                      # (L, D, 3D) bf16
    bqkv = jnp.stack([jnp.concatenate([lp["bq"], lp["bk"], lp["bv"]], axis=1)
                      for lp in layers])                      # (L, 1, 3D) f32
    wo = jnp.stack([lp["wo"] for lp in layers])               # (L, D, D) bf16
    bo = jnp.stack([lp["bo"] for lp in layers])               # (L, 1, D)
    g1 = jnp.stack([lp["g1"] for lp in layers])
    be1 = jnp.stack([lp["be1"] for lp in layers])
    g2 = jnp.stack([lp["g2"] for lp in layers])
    be2 = jnp.stack([lp["be2"] for lp in layers])
    w1 = jnp.stack([lp["w1"] for lp in layers])               # (L, D, F)
    bf1 = jnp.stack([lp["bf1"] for lp in layers])             # (L, 1, F)
    w2 = jnp.stack([lp["w2"] for lp in layers])               # (L, F, D)
    bf2 = jnp.stack([lp["bf2"] for lp in layers])             # (L, 1, D)
    cos_t, sinp_t, sinm_t = fused_rope_tables(S, hd, nhead)   # (S, 3D) each

    budget = _vmem_budget_bytes()
    Bb = _pick_batch_block(B, S, IN, D, F, nhead, OUT, budget)
    vmem_limit = int(min(max(_block_bytes(Bb, S, IN, D, F, nhead, OUT) + (8 << 20),
                             32 << 20), budget))

    call = build_encoder_call(B, S, IN, D, F, nhead, L, OUT, Bb, vmem_limit)
    out = call(x, params["w_in"], params["b_in"], wqkv, bqkv, wo, bo,
               g1, be1, g2, be2, w1, bf1, w2, bf2,
               cos_t, sinp_t, sinm_t, params["w_out"], params["b_out"])
    out = out.reshape(B, OUT)
    return jnp.squeeze(out, -1) if OUT == 1 else out


def encoder_forward_ref(x, params, nhead):
    f32, bf16 = jnp.float32, jnp.bfloat16

    def mm(a, b):  # mirror the kernel's bf16 MXU inputs with f32 accumulation
        return jnp.dot(a.astype(bf16), b.astype(bf16), preferred_element_type=f32)

    def ln(t, g, b):
        mu = t.mean(-1, keepdims=True)
        var = ((t - mu) ** 2).mean(-1, keepdims=True)
        return (t - mu) / jnp.sqrt(var + 1e-5) * g + b

    def rope_ref(t):                                   # t: (B, S, hd)
        hd = t.shape[-1]
        inv_freq = 1.0 / (10000.0 ** (jnp.arange(0, hd, 2, dtype=f32) / hd))
        pos = jnp.arange(t.shape[1], dtype=f32)
        fr = pos[:, None] * inv_freq[None, :]
        c, s = jnp.cos(fr)[None], jnp.sin(fr)[None]
        te, to = t[..., 0::2], t[..., 1::2]
        re, ro = te * c - to * s, te * s + to * c
        out = jnp.zeros_like(t)
        out = out.at[..., 0::2].set(re)
        return out.at[..., 1::2].set(ro)

    B, S, _ = x.shape
    D = params["w_in"].shape[1]
    hd = D // nhead
    scale = 1.0 / math.sqrt(hd)

    h = x @ params["w_in"] + params["b_in"][0]
    for lp in params["layers"]:
        res = h
        xn = ln(h, lp["g1"][0], lp["be1"][0])
        q = (mm(xn, lp["wq"]) + lp["bq"][0]).reshape(B, S, nhead, hd)
        k = (mm(xn, lp["wk"]) + lp["bk"][0]).reshape(B, S, nhead, hd)
        v = (mm(xn, lp["wv"]) + lp["bv"][0]).reshape(B, S, nhead, hd)
        q = jnp.stack([rope_ref(q[:, :, hh]) for hh in range(nhead)], 2) * scale
        k = jnp.stack([rope_ref(k[:, :, hh]) for hh in range(nhead)], 2)
        q, k, v = (t.transpose(0, 2, 1, 3) for t in (q, k, v))
        scores = jnp.einsum("bhqd,bhkd->bhqk", q.astype(bf16), k.astype(bf16),
                            preferred_element_type=f32)
        mask = jnp.triu(jnp.full((S, S), -jnp.inf), k=1)
        scores = scores + mask[None, None]
        attn = jax.nn.softmax(scores, axis=-1)
        ao = jnp.einsum("bhqk,bhkd->bhqd", attn.astype(bf16), v.astype(bf16),
                        preferred_element_type=f32)
        ao = ao.transpose(0, 2, 1, 3).reshape(B, S, D)
        ao = mm(ao, lp["wo"]) + lp["bo"][0]
        h = res + ao
        res = h
        xn2 = ln(h, lp["g2"][0], lp["be2"][0])
        ff = (mm(jnp.maximum(mm(xn2, lp["w1"]) + lp["bf1"][0], 0.0), lp["w2"])
              + lp["bf2"][0])
        h = res + ff
    last = h[:, -1, :]
    out = last @ params["w_out"] + params["b_out"][0]
    return out.squeeze(-1) if out.shape[-1] == 1 else out


if __name__ == "__main__":
    # Small config: batch=2, seq=8, input_dim=4, hidden=32, heads=4, layers=2,
    # ffn = 4*hidden = 128, output_dim=1.
    B, S, INPUT_DIM, HIDDEN, NHEAD, NLAYERS, OUT_DIM = 2, 8, 4, 32, 4, 2, 1

    key = jax.random.PRNGKey(0)
    kx, kp = jax.random.split(key)
    x = jax.random.normal(kx, (B, S, INPUT_DIM), jnp.float32)
    params = init_params(kp, INPUT_DIM, HIDDEN, 4 * HIDDEN, NLAYERS, OUT_DIM)

    out = encoder_forward(x, params, NHEAD)
    out = jax.block_until_ready(out)

    ref = encoder_forward_ref(x, params, NHEAD)
    assert out.shape == (B,), out.shape
    # Tolerance covers bf16 MXU inputs (both paths mirror the same casts).
    assert jnp.allclose(out, ref, atol=2e-2, rtol=2e-2), (out, ref)

    print("KERNEL_OK")
</pallas_src>

<mosaic_0001>
module attributes {stable_mosaic.version = 11 : i64} {
  func.func @kernel(%arg0: i32, %arg1: i32, %arg2: memref<2x8x4xf32, #tpu.memory_space<vmem>>, %arg3: memref<4x32xf32, #tpu.memory_space<vmem>>, %arg4: memref<1x32xf32, #tpu.memory_space<vmem>>, %arg5: memref<1x32x96xbf16, #tpu.memory_space<vmem>>, %arg6: memref<1x1x96xf32, #tpu.memory_space<vmem>>, %arg7: memref<1x32x32xbf16, #tpu.memory_space<vmem>>, %arg8: memref<1x1x32xf32, #tpu.memory_space<vmem>>, %arg9: memref<1x1x32xf32, #tpu.memory_space<vmem>>, %arg10: memref<1x1x32xf32, #tpu.memory_space<vmem>>, %arg11: memref<1x1x32xf32, #tpu.memory_space<vmem>>, %arg12: memref<1x1x32xf32, #tpu.memory_space<vmem>>, %arg13: memref<1x32x128xbf16, #tpu.memory_space<vmem>>, %arg14: memref<1x1x128xf32, #tpu.memory_space<vmem>>, %arg15: memref<1x128x32xbf16, #tpu.memory_space<vmem>>, %arg16: memref<1x1x32xf32, #tpu.memory_space<vmem>>, %arg17: memref<8x96xf32, #tpu.memory_space<vmem>>, %arg18: memref<8x96xf32, #tpu.memory_space<vmem>>, %arg19: memref<8x96xf32, #tpu.memory_space<vmem>>, %arg20: memref<32x1xf32, #tpu.memory_space<vmem>>, %arg21: memref<1x1xf32, #tpu.memory_space<vmem>>, %arg22: memref<2x1x1xf32, #tpu.memory_space<vmem>>, %arg23: memref<16x32xf32, #tpu.memory_space<vmem>>, %arg24: memref<16x32xf32, #tpu.memory_space<vmem>>) attributes {dimension_semantics = [#tpu.dimension_semantics<parallel>, #tpu.dimension_semantics<arbitrary>], iteration_bounds = array<i64: 1, 2>, scalar_prefetch = 0 : i64, scratch_operands = 2 : i64, tpu.core_type = #tpu.core_type<tc>, window_params = [{transform_indices = @transform_0, window_bounds = array<i64: 2, 8, 4>}, {pipeline_mode = #tpu.pipeline_mode<synchronous>, transform_indices = @transform_1, window_bounds = array<i64: 4, 32>}, {pipeline_mode = #tpu.pipeline_mode<synchronous>, transform_indices = @transform_2, window_bounds = array<i64: 1, 32>}, {transform_indices = @transform_3, window_bounds = array<i64: 1, 32, 96>}, {transform_indices = @transform_4, window_bounds = array<i64: 1, 1, 96>}, {transform_indices = @transform_5, window_bounds = array<i64: 1, 32, 32>}, {transform_indices = @transform_6, window_bounds = array<i64: 1, 1, 32>}, {transform_indices = @transform_7, window_bounds = array<i64: 1, 1, 32>}, {transform_indices = @transform_8, window_bounds = array<i64: 1, 1, 32>}, {transform_indices = @transform_9, window_bounds = array<i64: 1, 1, 32>}, {transform_indices = @transform_10, window_bounds = array<i64: 1, 1, 32>}, {transform_indices = @transform_11, window_bounds = array<i64: 1, 32, 128>}, {transform_indices = @transform_12, window_bounds = array<i64: 1, 1, 128>}, {transform_indices = @transform_13, window_bounds = array<i64: 1, 128, 32>}, {transform_indices = @transform_14, window_bounds = array<i64: 1, 1, 32>}, {pipeline_mode = #tpu.pipeline_mode<synchronous>, transform_indices = @transform_15, window_bounds = array<i64: 8, 96>}, {pipeline_mode = #tpu.pipeline_mode<synchronous>, transform_indices = @transform_16, window_bounds = array<i64: 8, 96>}, {pipeline_mode = #tpu.pipeline_mode<synchronous>, transform_indices = @transform_17, window_bounds = array<i64: 8, 96>}, {pipeline_mode = #tpu.pipeline_mode<synchronous>, transform_indices = @transform_18, window_bounds = array<i64: 32, 1>}, {pipeline_mode = #tpu.pipeline_mode<synchronous>, transform_indices = @transform_19, window_bounds = array<i64: 1, 1>}, {transform_indices = @transform_20, window_bounds = array<i64: 2, 1, 1>}]} {
    %c0_i32 = arith.constant 0 : i32
    %0 = arith.cmpi eq, %arg1, %c0_i32 : i32
    %1 = arith.extui %0 : i1 to i32
    %c0_i32_0 = arith.constant 0 : i32
    %2 = arith.cmpi ne, %1, %c0_i32_0 : i32
    scf.if %2 {
      %c0_96 = arith.constant 0 : index
      %c0_97 = arith.constant 0 : index
      %c0_98 = arith.constant 0 : index
      %220 = vector.load %arg2[%c0_96, %c0_97, %c0_98] : memref<2x8x4xf32, #tpu.memory_space<vmem>>, vector<2x8x4xf32>
      %221 = vector.shape_cast %220 : vector<2x8x4xf32> to vector<16x4xf32>
      %c0_99 = arith.constant 0 : index
      %c0_100 = arith.constant 0 : index
      %222 = vector.load %arg3[%c0_99, %c0_100] : memref<4x32xf32, #tpu.memory_space<vmem>>, vector<4x32xf32>
      %cst_101 = arith.constant dense<0.000000e+00> : vector<16x32xf32>
      %223 = tpu.matmul %221, %222, %cst_101 {dimension_numbers = #tpu.dot_dimension_numbers<[1], [0], [0], [1], [0, 0, 1, 1], [], []>} : vector<16x4xf32>, vector<4x32xf32>, vector<16x32xf32> -> vector<16x32xf32>
      %c0_102 = arith.constant 0 : index
      %c0_103 = arith.constant 0 : index
      %224 = vector.load %arg4[%c0_102, %c0_103] : memref<1x32xf32, #tpu.memory_space<vmem>>, vector<1x32xf32>
      %225 = vector.broadcast %224 : vector<1x32xf32> to vector<16x32xf32>
      %226 = arith.addf %223, %225 : vector<16x32xf32>
      %c0_104 = arith.constant 0 : index
      %c0_105 = arith.constant 0 : index
      %227 = vector.load %arg23[%c0_104, %c0_105] : memref<16x32xf32, #tpu.memory_space<vmem>>, vector<16x32xf32>
      tpu.vector_store %arg23[%c0_104, %c0_105], %226 {strides = array<i32>} : memref<16x32xf32, #tpu.memory_space<vmem>>, vector<16x32xf32>,
    } else {
    }
    %c0 = arith.constant 0 : index
    %c0_1 = arith.constant 0 : index
    %3 = vector.load %arg23[%c0, %c0_1] : memref<16x32xf32, #tpu.memory_space<vmem>>, vector<16x32xf32>
    %cst = arith.constant dense<0.000000e+00> : vector<16xf32>
    %4 = vector.multi_reduction <add>, %3, %cst [1] : vector<16x32xf32> to vector<16xf32>
    %5 = vector.shape_cast %4 : vector<16xf32> to vector<16x1xf32>
    %cst_2 = arith.constant 3.200000e+01 : f32
    %6 = vector.broadcast %cst_2 : f32 to vector<16x1xf32>
    %7 = arith.divf %5, %6 : vector<16x1xf32>
    %8 = vector.broadcast %7 : vector<16x1xf32> to vector<16x32xf32>
    %9 = arith.subf %3, %8 : vector<16x32xf32>
    %10 = arith.mulf %9, %9 : vector<16x32xf32>
    %cst_3 = arith.constant dense<0.000000e+00> : vector<16xf32>
    %11 = vector.multi_reduction <add>, %10, %cst_3 [1] : vector<16x32xf32> to vector<16xf32>
    %12 = vector.shape_cast %11 : vector<16xf32> to vector<16x1xf32>
    %cst_4 = arith.constant 3.200000e+01 : f32
    %13 = vector.broadcast %cst_4 : f32 to vector<16x1xf32>
    %14 = arith.divf %12, %13 : vector<16x1xf32>
    %15 = vector.broadcast %7 : vector<16x1xf32> to vector<16x32xf32>
    %16 = arith.subf %3, %15 : vector<16x32xf32>
    %cst_5 = arith.constant 9.99999974E-6 : f32
    %17 = vector.broadcast %cst_5 : f32 to vector<16x1xf32>
    %18 = arith.addf %14, %17 : vector<16x1xf32>
    %19 = math.rsqrt %18 : vector<16x1xf32>
    %20 = vector.broadcast %19 : vector<16x1xf32> to vector<16x32xf32>
    %21 = arith.mulf %16, %20 : vector<16x32xf32>
    %c0_6 = arith.constant 0 : index
    %c0_7 = arith.constant 0 : index
    %c0_8 = arith.constant 0 : index
    %22 = vector.load %arg9[%c0_6, %c0_7, %c0_8] : memref<1x1x32xf32, #tpu.memory_space<vmem>>, vector<1x1x32xf32>
    %23 = vector.shape_cast %22 : vector<1x1x32xf32> to vector<1x32xf32>
    %24 = vector.broadcast %23 : vector<1x32xf32> to vector<16x32xf32>
    %25 = arith.mulf %21, %24 : vector<16x32xf32>
    %c0_9 = arith.constant 0 : index
    %c0_10 = arith.constant 0 : index
    %c0_11 = arith.constant 0 : index
    %26 = vector.load %arg10[%c0_9, %c0_10, %c0_11] : memref<1x1x32xf32, #tpu.memory_space<vmem>>, vector<1x1x32xf32>
    %27 = vector.shape_cast %26 : vector<1x1x32xf32> to vector<1x32xf32>
    %28 = vector.broadcast %27 : vector<1x32xf32> to vector<16x32xf32>
    %29 = arith.addf %25, %28 : vector<16x32xf32>
    %30 = arith.truncf %29 : vector<16x32xf32> to vector<16x32xbf16>
    %c0_12 = arith.constant 0 : index
    %c0_13 = arith.constant 0 : index
    %c0_14 = arith.constant 0 : index
    %31 = vector.load %arg5[%c0_12, %c0_13, %c0_14] : memref<1x32x96xbf16, #tpu.memory_space<vmem>>, vector<1x32x96xbf16>
    %32 = vector.shape_cast %31 : vector<1x32x96xbf16> to vector<32x96xbf16>
    %cst_15 = arith.constant dense<0.000000e+00> : vector<16x96xf32>
    %33 = tpu.matmul %30, %32, %cst_15 {dimension_numbers = #tpu.dot_dimension_numbers<[1], [0], [0], [1], [0, 0, 1, 1], [], []>} : vector<16x32xbf16>, vector<32x96xbf16>, vector<16x96xf32> -> vector<16x96xf32>
    %c0_16 = arith.constant 0 : index
    %c0_17 = arith.constant 0 : index
    %c0_18 = arith.constant 0 : index
    %34 = vector.load %arg6[%c0_16, %c0_17, %c0_18] : memref<1x1x96xf32, #tpu.memory_space<vmem>>, vector<1x1x96xf32>
    %35 = vector.shape_cast %34 : vector<1x1x96xf32> to vector<1x96xf32>
    %36 = vector.broadcast %35 : vector<1x96xf32> to vector<16x96xf32>
    %37 = arith.addf %33, %36 : vector<16x96xf32>
    %c95_i32 = arith.constant 95 : i32
    %38 = tpu.dynamic_rotate %37 by %c95_i32 dim 1 : vector<16x96xf32>, i32 -> vector<16x96xf32>
    %c1_i32 = arith.constant 1 : i32
    %39 = tpu.dynamic_rotate %37 by %c1_i32 dim 1 : vector<16x96xf32>, i32 -> vector<16x96xf32>
    %40 = vector.shape_cast %37 : vector<16x96xf32> to vector<2x8x96xf32>
    %c0_19 = arith.constant 0 : index
    %c0_20 = arith.constant 0 : index
    %41 = vector.load %arg17[%c0_19, %c0_20] : memref<8x96xf32, #tpu.memory_space<vmem>>, vector<8x96xf32>
    %42 = vector.shape_cast %41 : vector<8x96xf32> to vector<1x8x96xf32>
    %43 = vector.broadcast %42 : vector<1x8x96xf32> to vector<2x8x96xf32>
    %44 = arith.mulf %40, %43 : vector<2x8x96xf32>
    %45 = vector.shape_cast %38 : vector<16x96xf32> to vector<2x8x96xf32>
    %c0_21 = arith.constant 0 : index
    %c0_22 = arith.constant 0 : index
    %46 = vector.load %arg18[%c0_21, %c0_22] : memref<8x96xf32, #tpu.memory_space<vmem>>, vector<8x96xf32>
    %47 = vector.shape_cast %46 : vector<8x96xf32> to vector<1x8x96xf32>
    %48 = vector.broadcast %47 : vector<1x8x96xf32> to vector<2x8x96xf32>
    %49 = arith.mulf %45, %48 : vector<2x8x96xf32>
    %50 = arith.addf %44, %49 : vector<2x8x96xf32>
    %51 = vector.shape_cast %39 : vector<16x96xf32> to vector<2x8x96xf32>
    %c0_23 = arith.constant 0 : index
    %c0_24 = arith.constant 0 : index
    %52 = vector.load %arg19[%c0_23, %c0_24] : memref<8x96xf32, #tpu.memory_space<vmem>>, vector<8x96xf32>
    %53 = vector.shape_cast %52 : vector<8x96xf32> to vector<1x8x96xf32>
    %54 = vector.broadcast %53 : vector<1x8x96xf32> to vector<2x8x96xf32>
    %55 = arith.mulf %51, %54 : vector<2x8x96xf32>
    %56 = arith.addf %50, %55 : vector<2x8x96xf32>
    %57 = vector.shape_cast %56 : vector<2x8x96xf32> to vector<16x96xf32>
    %58 = vector.extract_strided_slice %57 {offsets = [0, 0], sizes = [16, 32], strides = [1, 1]} : vector<16x96xf32> to vector<16x32xf32>
    %59 = arith.truncf %58 : vector<16x32xf32> to vector<16x32xbf16>
    %60 = vector.extract_strided_slice %57 {offsets = [0, 32], sizes = [16, 32], strides = [1, 1]} : vector<16x96xf32> to vector<16x32xf32>
    %61 = arith.truncf %60 : vector<16x32xf32> to vector<16x32xbf16>
    %62 = vector.extract_strided_slice %57 {offsets = [0, 64], sizes = [16, 32], strides = [1, 1]} : vector<16x96xf32> to vector<16x32xf32>
    %63 = arith.truncf %62 : vector<16x32xf32> to vector<16x32xbf16>
    %64 = vector.extract_strided_slice %59 {offsets = [0, 0], sizes = [8, 32], strides = [1, 1]} : vector<16x32xbf16> to vector<8x32xbf16>
    %65 = vector.extract_strided_slice %61 {offsets = [0, 0], sizes = [8, 32], strides = [1, 1]} : vector<16x32xbf16> to vector<8x32xbf16>
    %66 = vector.extract_strided_slice %64 {offsets = [0, 0], sizes = [8, 8], strides = [1, 1]} : vector<8x32xbf16> to vector<8x8xbf16>
    %67 = vector.extract_strided_slice %65 {offsets = [0, 0], sizes = [8, 8], strides = [1, 1]} : vector<8x32xbf16> to vector<8x8xbf16>
    %cst_25 = arith.constant dense<0.000000e+00> : vector<8x8xf32>
    %68 = tpu.matmul %66, %67, %cst_25 {dimension_numbers = #tpu.dot_dimension_numbers<[1], [1], [0], [0], [0, 0, 1, 0], [], []>} : vector<8x8xbf16>, vector<8x8xbf16>, vector<8x8xf32> -> vector<8x8xf32>
    %69 = vector.extract_strided_slice %64 {offsets = [0, 8], sizes = [8, 8], strides = [1, 1]} : vector<8x32xbf16> to vector<8x8xbf16>
    %70 = vector.extract_strided_slice %65 {offsets = [0, 8], sizes = [8, 8], strides = [1, 1]} : vector<8x32xbf16> to vector<8x8xbf16>
    %cst_26 = arith.constant dense<0.000000e+00> : vector<8x8xf32>
    %71 = tpu.matmul %69, %70, %cst_26 {dimension_numbers = #tpu.dot_dimension_numbers<[1], [1], [0], [0], [0, 0, 1, 0], [], []>} : vector<8x8xbf16>, vector<8x8xbf16>, vector<8x8xf32> -> vector<8x8xf32>
    %72 = vector.extract_strided_slice %64 {offsets = [0, 16], sizes = [8, 8], strides = [1, 1]} : vector<8x32xbf16> to vector<8x8xbf16>
    %73 = vector.extract_strided_slice %65 {offsets = [0, 16], sizes = [8, 8], strides = [1, 1]} : vector<8x32xbf16> to vector<8x8xbf16>
    %cst_27 = arith.constant dense<0.000000e+00> : vector<8x8xf32>
    %74 = tpu.matmul %72, %73, %cst_27 {dimension_numbers = #tpu.dot_dimension_numbers<[1], [1], [0], [0], [0, 0, 1, 0], [], []>} : vector<8x8xbf16>, vector<8x8xbf16>, vector<8x8xf32> -> vector<8x8xf32>
    %75 = vector.extract_strided_slice %64 {offsets = [0, 24], sizes = [8, 8], strides = [1, 1]} : vector<8x32xbf16> to vector<8x8xbf16>
    %76 = vector.extract_strided_slice %65 {offsets = [0, 24], sizes = [8, 8], strides = [1, 1]} : vector<8x32xbf16> to vector<8x8xbf16>
    %cst_28 = arith.constant dense<0.000000e+00> : vector<8x8xf32>
    %77 = tpu.matmul %75, %76, %cst_28 {dimension_numbers = #tpu.dot_dimension_numbers<[1], [1], [0], [0], [0, 0, 1, 0], [], []>} : vector<8x8xbf16>, vector<8x8xbf16>, vector<8x8xf32> -> vector<8x8xf32>
    %78 = vector.extract_strided_slice %59 {offsets = [8, 0], sizes = [8, 32], strides = [1, 1]} : vector<16x32xbf16> to vector<8x32xbf16>
    %79 = vector.extract_strided_slice %61 {offsets = [8, 0], sizes = [8, 32], strides = [1, 1]} : vector<16x32xbf16> to vector<8x32xbf16>
    %80 = vector.extract_strided_slice %78 {offsets = [0, 0], sizes = [8, 8], strides = [1, 1]} : vector<8x32xbf16> to vector<8x8xbf16>
    %81 = vector.extract_strided_slice %79 {offsets = [0, 0], sizes = [8, 8], strides = [1, 1]} : vector<8x32xbf16> to vector<8x8xbf16>
    %cst_29 = arith.constant dense<0.000000e+00> : vector<8x8xf32>
    %82 = tpu.matmul %80, %81, %cst_29 {dimension_numbers = #tpu.dot_dimension_numbers<[1], [1], [0], [0], [0, 0, 1, 0], [], []>} : vector<8x8xbf16>, vector<8x8xbf16>, vector<8x8xf32> -> vector<8x8xf32>
    %83 = vector.extract_strided_slice %78 {offsets = [0, 8], sizes = [8, 8], strides = [1, 1]} : vector<8x32xbf16> to vector<8x8xbf16>
    %84 = vector.extract_strided_slice %79 {offsets = [0, 8], sizes = [8, 8], strides = [1, 1]} : vector<8x32xbf16> to vector<8x8xbf16>
    %cst_30 = arith.constant dense<0.000000e+00> : vector<8x8xf32>
    %85 = tpu.matmul %83, %84, %cst_30 {dimension_numbers = #tpu.dot_dimension_numbers<[1], [1], [0], [0], [0, 0, 1, 0], [], []>} : vector<8x8xbf16>, vector<8x8xbf16>, vector<8x8xf32> -> vector<8x8xf32>
    %86 = vector.extract_strided_slice %78 {offsets = [0, 16], sizes = [8, 8], strides = [1, 1]} : vector<8x32xbf16> to vector<8x8xbf16>
    %87 = vector.extract_strided_slice %79 {offsets = [0, 16], sizes = [8, 8], strides = [1, 1]} : vector<8x32xbf16> to vector<8x8xbf16>
    %cst_31 = arith.constant dense<0.000000e+00> : vector<8x8xf32>
    %88 = tpu.matmul %86, %87, %cst_31 {dimension_numbers = #tpu.dot_dimension_numbers<[1], [1], [0], [0], [0, 0, 1, 0], [], []>} : vector<8x8xbf16>, vector<8x8xbf16>, vector<8x8xf32> -> vector<8x8xf32>
    %89 = vector.extract_strided_slice %78 {offsets = [0, 24], sizes = [8, 8], strides = [1, 1]} : vector<8x32xbf16> to vector<8x8xbf16>
    %90 = vector.extract_strided_slice %79 {offsets = [0, 24], sizes = [8, 8], strides = [1, 1]} : vector<8x32xbf16> to vector<8x8xbf16>
    %cst_32 = arith.constant dense<0.000000e+00> : vector<8x8xf32>
    %91 = tpu.matmul %89, %90, %cst_32 {dimension_numbers = #tpu.dot_dimension_numbers<[1], [1], [0], [0], [0, 0, 1, 0], [], []>} : vector<8x8xbf16>, vector<8x8xbf16>, vector<8x8xf32> -> vector<8x8xf32>
    %92 = vector.shape_cast %68 : vector<8x8xf32> to vector<1x8x8xf32>
    %93 = vector.shape_cast %71 : vector<8x8xf32> to vector<1x8x8xf32>
    %94 = vector.shape_cast %74 : vector<8x8xf32> to vector<1x8x8xf32>
    %95 = vector.shape_cast %77 : vector<8x8xf32> to vector<1x8x8xf32>
    %96 = vector.shape_cast %82 : vector<8x8xf32> to vector<1x8x8xf32>
    %97 = vector.shape_cast %85 : vector<8x8xf32> to vector<1x8x8xf32>
    %98 = vector.shape_cast %88 : vector<8x8xf32> to vector<1x8x8xf32>
    %99 = vector.shape_cast %91 : vector<8x8xf32> to vector<1x8x8xf32>
    %100 = tpu.concatenate %92, %93, %94, %95, %96, %97, %98, %99 in 0 : vector<1x8x8xf32>, vector<1x8x8xf32>, vector<1x8x8xf32>, vector<1x8x8xf32>, vector<1x8x8xf32>, vector<1x8x8xf32>, vector<1x8x8xf32>, vector<1x8x8xf32> -> vector<8x8x8xf32>
    %101 = tpu.iota {dimensions = array<i32: 0>} : vector<8x8xi32>
    %102 = tpu.iota {dimensions = array<i32: 1>} : vector<8x8xi32>
    %103 = arith.cmpi sle, %102, %101 : vector<8x8xi32>
    %104 = vector.shape_cast %103 : vector<8x8xi1> to vector<1x8x8xi1>
    %cst_33 = arith.constant -1.000000e+30 : f32
    %105 = vector.shape_cast %104 : vector<1x8x8xi1> to vector<1x8x8xi1>
    %106 = vector.broadcast %105 : vector<1x8x8xi1> to vector<8x8x8xi1>
    %107 = vector.broadcast %cst_33 : f32 to vector<8x8x8xf32>
    %108 = arith.select %106, %100, %107 : vector<8x8x8xi1>, vector<8x8x8xf32>
    %cst_34 = arith.constant dense<0xFF800000> : vector<8x8xf32>
    %109 = vector.multi_reduction <maximumf>, %108, %cst_34 [2] : vector<8x8x8xf32> to vector<8x8xf32>
    %110 = vector.shape_cast %109 : vector<8x8xf32> to vector<8x8x1xf32>
    %111 = vector.broadcast %110 : vector<8x8x1xf32> to vector<8x8x8xf32>
    %112 = arith.subf %108, %111 : vector<8x8x8xf32>
    %113 = math.exp %112 : vector<8x8x8xf32>
    %cst_35 = arith.constant dense<0.000000e+00> : vector<8x8xf32>
    %114 = vector.multi_reduction <add>, %113, %cst_35 [2] : vector<8x8x8xf32> to vector<8x8xf32>
    %115 = vector.shape_cast %114 : vector<8x8xf32> to vector<8x8x1xf32>
    %116 = vector.broadcast %115 : vector<8x8x1xf32> to vector<8x8x8xf32>
    %117 = arith.divf %113, %116 : vector<8x8x8xf32>
    %118 = arith.truncf %117 : vector<8x8x8xf32> to vector<8x8x8xbf16>
    %119 = vector.extract_strided_slice %63 {offsets = [0, 0], sizes = [8, 32], strides = [1, 1]} : vector<16x32xbf16> to vector<8x32xbf16>
    %120 = vector.extract_strided_slice %118 {offsets = [0, 0, 0], sizes = [1, 8, 8], strides = [1, 1, 1]} : vector<8x8x8xbf16> to vector<1x8x8xbf16>
    %121 = vector.shape_cast %120 : vector<1x8x8xbf16> to vector<8x8xbf16>
    %122 = vector.extract_strided_slice %119 {offsets = [0, 0], sizes = [8, 8], strides = [1, 1]} : vector<8x32xbf16> to vector<8x8xbf16>
    %cst_36 = arith.constant dense<0.000000e+00> : vector<8x8xf32>
    %123 = tpu.matmul %121, %122, %cst_36 {dimension_numbers = #tpu.dot_dimension_numbers<[1], [0], [0], [1], [0, 0, 1, 1], [], []>} : vector<8x8xbf16>, vector<8x8xbf16>, vector<8x8xf32> -> vector<8x8xf32>
    %c0_37 = arith.constant 0 : index
    %c0_38 = arith.constant 0 : index
    %124 = vector.load %arg24[%c0_37, %c0_38] : memref<16x32xf32, #tpu.memory_space<vmem>>, vector<8x8xf32>
    tpu.vector_store %arg24[%c0_37, %c0_38], %123 {strides = array<i32>} : memref<16x32xf32, #tpu.memory_space<vmem>>, vector<8x8xf32>,
    %125 = vector.extract_strided_slice %118 {offsets = [1, 0, 0], sizes = [1, 8, 8], strides = [1, 1, 1]} : vector<8x8x8xbf16> to vector<1x8x8xbf16>
    %126 = vector.shape_cast %125 : vector<1x8x8xbf16> to vector<8x8xbf16>
    %127 = vector.extract_strided_slice %119 {offsets = [0, 8], sizes = [8, 8], strides = [1, 1]} : vector<8x32xbf16> to vector<8x8xbf16>
    %cst_39 = arith.constant dense<0.000000e+00> : vector<8x8xf32>
    %128 = tpu.matmul %126, %127, %cst_39 {dimension_numbers = #tpu.dot_dimension_numbers<[1], [0], [0], [1], [0, 0, 1, 1], [], []>} : vector<8x8xbf16>, vector<8x8xbf16>, vector<8x8xf32> -> vector<8x8xf32>
    %c0_40 = arith.constant 0 : index
    %c8 = arith.constant 8 : index
    %129 = vector.load %arg24[%c0_40, %c8] : memref<16x32xf32, #tpu.memory_space<vmem>>, vector<8x8xf32>
    tpu.vector_store %arg24[%c0_40, %c8], %128 {strides = array<i32>} : memref<16x32xf32, #tpu.memory_space<vmem>>, vector<8x8xf32>,
    %130 = vector.extract_strided_slice %118 {offsets = [2, 0, 0], sizes = [1, 8, 8], strides = [1, 1, 1]} : vector<8x8x8xbf16> to vector<1x8x8xbf16>
    %131 = vector.shape_cast %130 : vector<1x8x8xbf16> to vector<8x8xbf16>
    %132 = vector.extract_strided_slice %119 {offsets = [0, 16], sizes = [8, 8], strides = [1, 1]} : vector<8x32xbf16> to vector<8x8xbf16>
    %cst_41 = arith.constant dense<0.000000e+00> : vector<8x8xf32>
    %133 = tpu.matmul %131, %132, %cst_41 {dimension_numbers = #tpu.dot_dimension_numbers<[1], [0], [0], [1], [0, 0, 1, 1], [], []>} : vector<8x8xbf16>, vector<8x8xbf16>, vector<8x8xf32> -> vector<8x8xf32>
    %c0_42 = arith.constant 0 : index
    %c16 = arith.constant 16 : index
    %134 = vector.load %arg24[%c0_42, %c16] : memref<16x32xf32, #tpu.memory_space<vmem>>, vector<8x8xf32>
    tpu.vector_store %arg24[%c0_42, %c16], %133 {strides = array<i32>} : memref<16x32xf32, #tpu.memory_space<vmem>>, vector<8x8xf32>,
    %135 = vector.extract_strided_slice %118 {offsets = [3, 0, 0], sizes = [1, 8, 8], strides = [1, 1, 1]} : vector<8x8x8xbf16> to vector<1x8x8xbf16>
    %136 = vector.shape_cast %135 : vector<1x8x8xbf16> to vector<8x8xbf16>
    %137 = vector.extract_strided_slice %119 {offsets = [0, 24], sizes = [8, 8], strides = [1, 1]} : vector<8x32xbf16> to vector<8x8xbf16>
    %cst_43 = arith.constant dense<0.000000e+00> : vector<8x8xf32>
    %138 = tpu.matmul %136, %137, %cst_43 {dimension_numbers = #tpu.dot_dimension_numbers<[1], [0], [0], [1], [0, 0, 1, 1], [], []>} : vector<8x8xbf16>, vector<8x8xbf16>, vector<8x8xf32> -> vector<8x8xf32>
    %c0_44 = arith.constant 0 : index
    %c24 = arith.constant 24 : index
    %139 = vector.load %arg24[%c0_44, %c24] : memref<16x32xf32, #tpu.memory_space<vmem>>, vector<8x8xf32>
    tpu.vector_store %arg24[%c0_44, %c24], %138 {strides = array<i32>} : memref<16x32xf32, #tpu.memory_space<vmem>>, vector<8x8xf32>,
    %140 = vector.extract_strided_slice %63 {offsets = [8, 0], sizes = [8, 32], strides = [1, 1]} : vector<16x32xbf16> to vector<8x32xbf16>
    %141 = vector.extract_strided_slice %118 {offsets = [4, 0, 0], sizes = [1, 8, 8], strides = [1, 1, 1]} : vector<8x8x8xbf16> to vector<1x8x8xbf16>
    %142 = vector.shape_cast %141 : vector<1x8x8xbf16> to vector<8x8xbf16>
    %143 = vector.extract_strided_slice %140 {offsets = [0, 0], sizes = [8, 8], strides = [1, 1]} : vector<8x32xbf16> to vector<8x8xbf16>
    %cst_45 = arith.constant dense<0.000000e+00> : vector<8x8xf32>
    %144 = tpu.matmul %142, %143, %cst_45 {dimension_numbers = #tpu.dot_dimension_numbers<[1], [0], [0], [1], [0, 0, 1, 1], [], []>} : vector<8x8xbf16>, vector<8x8xbf16>, vector<8x8xf32> -> vector<8x8xf32>
    %c8_46 = arith.constant 8 : index
    %c0_47 = arith.constant 0 : index
    %145 = vector.load %arg24[%c8_46, %c0_47] : memref<16x32xf32, #tpu.memory_space<vmem>>, vector<8x8xf32>
    tpu.vector_store %arg24[%c8_46, %c0_47], %144 {strides = array<i32>} : memref<16x32xf32, #tpu.memory_space<vmem>>, vector<8x8xf32>,
    %146 = vector.extract_strided_slice %118 {offsets = [5, 0, 0], sizes = [1, 8, 8], strides = [1, 1, 1]} : vector<8x8x8xbf16> to vector<1x8x8xbf16>
    %147 = vector.shape_cast %146 : vector<1x8x8xbf16> to vector<8x8xbf16>
    %148 = vector.extract_strided_slice %140 {offsets = [0, 8], sizes = [8, 8], strides = [1, 1]} : vector<8x32xbf16> to vector<8x8xbf16>
    %cst_48 = arith.constant dense<0.000000e+00> : vector<8x8xf32>
    %149 = tpu.matmul %147, %148, %cst_48 {dimension_numbers = #tpu.dot_dimension_numbers<[1], [0], [0], [1], [0, 0, 1, 1], [], []>} : vector<8x8xbf16>, vector<8x8xbf16>, vector<8x8xf32> -> vector<8x8xf32>
    %c8_49 = arith.constant 8 : index
    %c8_50 = arith.constant 8 : index
    %150 = vector.load %arg24[%c8_49, %c8_50] : memref<16x32xf32, #tpu.memory_space<vmem>>, vector<8x8xf32>
    tpu.vector_store %arg24[%c8_49, %c8_50], %149 {strides = array<i32>} : memref<16x32xf32, #tpu.memory_space<vmem>>, vector<8x8xf32>,
    %151 = vector.extract_strided_slice %118 {offsets = [6, 0, 0], sizes = [1, 8, 8], strides = [1, 1, 1]} : vector<8x8x8xbf16> to vector<1x8x8xbf16>
    %152 = vector.shape_cast %151 : vector<1x8x8xbf16> to vector<8x8xbf16>
    %153 = vector.extract_strided_slice %140 {offsets = [0, 16], sizes = [8, 8], strides = [1, 1]} : vector<8x32xbf16> to vector<8x8xbf16>
    %cst_51 = arith.constant dense<0.000000e+00> : vector<8x8xf32>
    %154 = tpu.matmul %152, %153, %cst_51 {dimension_numbers = #tpu.dot_dimension_numbers<[1], [0], [0], [1], [0, 0, 1, 1], [], []>} : vector<8x8xbf16>, vector<8x8xbf16>, vector<8x8xf32> -> vector<8x8xf32>
    %c8_52 = arith.constant 8 : index
    %c16_53 = arith.constant 16 : index
    %155 = vector.load %arg24[%c8_52, %c16_53] : memref<16x32xf32, #tpu.memory_space<vmem>>, vector<8x8xf32>
    tpu.vector_store %arg24[%c8_52, %c16_53], %154 {strides = array<i32>} : memref<16x32xf32, #tpu.memory_space<vmem>>, vector<8x8xf32>,
    %156 = vector.extract_strided_slice %118 {offsets = [7, 0, 0], sizes = [1, 8, 8], strides = [1, 1, 1]} : vector<8x8x8xbf16> to vector<1x8x8xbf16>
    %157 = vector.shape_cast %156 : vector<1x8x8xbf16> to vector<8x8xbf16>
    %158 = vector.extract_strided_slice %140 {offsets = [0, 24], sizes = [8, 8], strides = [1, 1]} : vector<8x32xbf16> to vector<8x8xbf16>
    %cst_54 = arith.constant dense<0.000000e+00> : vector<8x8xf32>
    %159 = tpu.matmul %157, %158, %cst_54 {dimension_numbers = #tpu.dot_dimension_numbers<[1], [0], [0], [1], [0, 0, 1, 1], [], []>} : vector<8x8xbf16>, vector<8x8xbf16>, vector<8x8xf32> -> vector<8x8xf32>
    %c8_55 = arith.constant 8 : index
    %c24_56 = arith.constant 24 : index
    %160 = vector.load %arg24[%c8_55, %c24_56] : memref<16x32xf32, #tpu.memory_space<vmem>>, vector<8x8xf32>
    tpu.vector_store %arg24[%c8_55, %c24_56], %159 {strides = array<i32>} : memref<16x32xf32, #tpu.memory_space<vmem>>, vector<8x8xf32>,
    %c0_57 = arith.constant 0 : index
    %c0_58 = arith.constant 0 : index
    %161 = vector.load %arg24[%c0_57, %c0_58] : memref<16x32xf32, #tpu.memory_space<vmem>>, vector<16x32xf32>
    %162 = arith.truncf %161 : vector<16x32xf32> to vector<16x32xbf16>
    %c0_59 = arith.constant 0 : index
    %c0_60 = arith.constant 0 : index
    %c0_61 = arith.constant 0 : index
    %163 = vector.load %arg7[%c0_59, %c0_60, %c0_61] : memref<1x32x32xbf16, #tpu.memory_space<vmem>>, vector<1x32x32xbf16>
    %164 = vector.shape_cast %163 : vector<1x32x32xbf16> to vector<32x32xbf16>
    %cst_62 = arith.constant dense<0.000000e+00> : vector<16x32xf32>
    %165 = tpu.matmul %162, %164, %cst_62 {dimension_numbers = #tpu.dot_dimension_numbers<[1], [0], [0], [1], [0, 0, 1, 1], [], []>} : vector<16x32xbf16>, vector<32x32xbf16>, vector<16x32xf32> -> vector<16x32xf32>
    %c0_63 = arith.constant 0 : index
    %c0_64 = arith.constant 0 : index
    %c0_65 = arith.constant 0 : index
    %166 = vector.load %arg8[%c0_63, %c0_64, %c0_65] : memref<1x1x32xf32, #tpu.memory_space<vmem>>, vector<1x1x32xf32>
    %167 = vector.shape_cast %166 : vector<1x1x32xf32> to vector<1x32xf32>
    %168 = vector.broadcast %167 : vector<1x32xf32> to vector<16x32xf32>
    %169 = arith.addf %165, %168 : vector<16x32xf32>
    %170 = arith.addf %3, %169 : vector<16x32xf32>
    %cst_66 = arith.constant dense<0.000000e+00> : vector<16xf32>
    %171 = vector.multi_reduction <add>, %170, %cst_66 [1] : vector<16x32xf32> to vector<16xf32>
    %172 = vector.shape_cast %171 : vector<16xf32> to vector<16x1xf32>
    %cst_67 = arith.constant 3.200000e+01 : f32
    %173 = vector.broadcast %cst_67 : f32 to vector<16x1xf32>
    %174 = arith.divf %172, %173 : vector<16x1xf32>
    %175 = vector.broadcast %174 : vector<16x1xf32> to vector<16x32xf32>
    %176 = arith.subf %170, %175 : vector<16x32xf32>
    %177 = arith.mulf %176, %176 : vector<16x32xf32>
    %cst_68 = arith.constant dense<0.000000e+00> : vector<16xf32>
    %178 = vector.multi_reduction <add>, %177, %cst_68 [1] : vector<16x32xf32> to vector<16xf32>
    %179 = vector.shape_cast %178 : vector<16xf32> to vector<16x1xf32>
    %cst_69 = arith.constant 3.200000e+01 : f32
    %180 = vector.broadcast %cst_69 : f32 to vector<16x1xf32>
    %181 = arith.divf %179, %180 : vector<16x1xf32>
    %182 = vector.broadcast %174 : vector<16x1xf32> to vector<16x32xf32>
    %183 = arith.subf %170, %182 : vector<16x32xf32>
    %cst_70 = arith.constant 9.99999974E-6 : f32
    %184 = vector.broadcast %cst_70 : f32 to vector<16x1xf32>
    %185 = arith.addf %181, %184 : vector<16x1xf32>
    %186 = math.rsqrt %185 : vector<16x1xf32>
    %187 = vector.broadcast %186 : vector<16x1xf32> to vector<16x32xf32>
    %188 = arith.mulf %183, %187 : vector<16x32xf32>
    %c0_71 = arith.constant 0 : index
    %c0_72 = arith.constant 0 : index
    %c0_73 = arith.constant 0 : index
    %189 = vector.load %arg11[%c0_71, %c0_72, %c0_73] : memref<1x1x32xf32, #tpu.memory_space<vmem>>, vector<1x1x32xf32>
    %190 = vector.shape_cast %189 : vector<1x1x32xf32> to vector<1x32xf32>
    %191 = vector.broadcast %190 : vector<1x32xf32> to vector<16x32xf32>
    %192 = arith.mulf %188, %191 : vector<16x32xf32>
    %c0_74 = arith.constant 0 : index
    %c0_75 = arith.constant 0 : index
    %c0_76 = arith.constant 0 : index
    %193 = vector.load %arg12[%c0_74, %c0_75, %c0_76] : memref<1x1x32xf32, #tpu.memory_space<vmem>>, vector<1x1x32xf32>
    %194 = vector.shape_cast %193 : vector<1x1x32xf32> to vector<1x32xf32>
    %195 = vector.broadcast %194 : vector<1x32xf32> to vector<16x32xf32>
    %196 = arith.addf %192, %195 : vector<16x32xf32>
    %197 = arith.truncf %196 : vector<16x32xf32> to vector<16x32xbf16>
    %c0_77 = arith.constant 0 : index
    %c0_78 = arith.constant 0 : index
    %c0_79 = arith.constant 0 : index
    %198 = vector.load %arg13[%c0_77, %c0_78, %c0_79] : memref<1x32x128xbf16, #tpu.memory_space<vmem>>, vector<1x32x128xbf16>
    %199 = vector.shape_cast %198 : vector<1x32x128xbf16> to vector<32x128xbf16>
    %cst_80 = arith.constant dense<0.000000e+00> : vector<16x128xf32>
    %200 = tpu.matmul %197, %199, %cst_80 {dimension_numbers = #tpu.dot_dimension_numbers<[1], [0], [0], [1], [0, 0, 1, 1], [], []>} : vector<16x32xbf16>, vector<32x128xbf16>, vector<16x128xf32> -> vector<16x128xf32>
    %c0_81 = arith.constant 0 : index
    %c0_82 = arith.constant 0 : index
    %c0_83 = arith.constant 0 : index
    %201 = vector.load %arg14[%c0_81, %c0_82, %c0_83] : memref<1x1x128xf32, #tpu.memory_space<vmem>>, vector<1x1x128xf32>
    %202 = vector.shape_cast %201 : vector<1x1x128xf32> to vector<1x128xf32>
    %203 = vector.broadcast %202 : vector<1x128xf32> to vector<16x128xf32>
    %204 = arith.addf %200, %203 : vector<16x128xf32>
    %cst_84 = arith.constant 0.000000e+00 : f32
    %205 = vector.broadcast %cst_84 : f32 to vector<16x128xf32>
    %206 = arith.maximumf %204, %205 : vector<16x128xf32>
    %207 = arith.truncf %206 : vector<16x128xf32> to vector<16x128xbf16>
    %c0_85 = arith.constant 0 : index
    %c0_86 = arith.constant 0 : index
    %c0_87 = arith.constant 0 : index
    %208 = vector.load %arg15[%c0_85, %c0_86, %c0_87] : memref<1x128x32xbf16, #tpu.memory_space<vmem>>, vector<1x128x32xbf16>
    %209 = vector.shape_cast %208 : vector<1x128x32xbf16> to vector<128x32xbf16>
    %cst_88 = arith.constant dense<0.000000e+00> : vector<16x32xf32>
    %210 = tpu.matmul %207, %209, %cst_88 {dimension_numbers = #tpu.dot_dimension_numbers<[1], [0], [0], [1], [0, 0, 1, 1], [], []>} : vector<16x128xbf16>, vector<128x32xbf16>, vector<16x32xf32> -> vector<16x32xf32>
    %c0_89 = arith.constant 0 : index
    %c0_90 = arith.constant 0 : index
    %c0_91 = arith.constant 0 : index
    %211 = vector.load %arg16[%c0_89, %c0_90, %c0_91] : memref<1x1x32xf32, #tpu.memory_space<vmem>>, vector<1x1x32xf32>
    %212 = vector.shape_cast %211 : vector<1x1x32xf32> to vector<1x32xf32>
    %213 = vector.broadcast %212 : vector<1x32xf32> to vector<16x32xf32>
    %214 = arith.addf %210, %213 : vector<16x32xf32>
    %215 = arith.addf %170, %214 : vector<16x32xf32>
    %c0_92 = arith.constant 0 : index
    %c0_93 = arith.constant 0 : index
    %216 = vector.load %arg23[%c0_92, %c0_93] : memref<16x32xf32, #tpu.memory_space<vmem>>, vector<16x32xf32>
    tpu.vector_store %arg23[%c0_92, %c0_93], %215 {strides = array<i32>} : memref<16x32xf32, #tpu.memory_space<vmem>>, vector<16x32xf32>,
    %c1_i32_94 = arith.constant 1 : i32
    %217 = arith.cmpi eq, %arg1, %c1_i32_94 : i32
    %218 = arith.extui %217 : i1 to i32
    %c0_i32_95 = arith.constant 0 : i32
    %219 = arith.cmpi ne, %218, %c0_i32_95 : i32
    scf.if %219 {
      %220 = vector.shape_cast %215 : vector<16x32xf32> to vector<2x8x32xf32>
      %221 = vector.extract_strided_slice %220 {offsets = [0, 7, 0], sizes = [2, 1, 32], strides = [1, 1, 1]} : vector<2x8x32xf32> to vector<2x1x32xf32>
      %222 = vector.shape_cast %221 : vector<2x1x32xf32> to vector<2x32xf32>
      %c0_96 = arith.constant 0 : index
      %c0_97 = arith.constant 0 : index
      %223 = vector.load %arg20[%c0_96, %c0_97] : memref<32x1xf32, #tpu.memory_space<vmem>>, vector<32x1xf32>
      %cst_98 = arith.constant dense<0.000000e+00> : vector<2x1xf32>
      %224 = tpu.matmul %222, %223, %cst_98 {dimension_numbers = #tpu.dot_dimension_numbers<[1], [0], [0], [1], [0, 0, 1, 1], [], []>} : vector<2x32xf32>, vector<32x1xf32>, vector<2x1xf32> -> vector<2x1xf32>
      %c0_99 = arith.constant 0 : index
      %c0_100 = arith.constant 0 : index
      %225 = vector.load %arg21[%c0_99, %c0_100] : memref<1x1xf32, #tpu.memory_space<vmem>>, vector<1x1xf32>
      %226 = vector.broadcast %225 : vector<1x1xf32> to vector<2x1xf32>
      %227 = arith.addf %224, %226 : vector<2x1xf32>
      %c0_101 = arith.constant 0 : index
      %c0_102 = arith.constant 0 : index
      %c0_103 = arith.constant 0 : index
      %228 = vector.load %arg22[%c0_101, %c0_102, %c0_103] : memref<2x1x1xf32, #tpu.memory_space<vmem>>, vector<2x1x1xf32>
      %229 = vector.shape_cast %228 : vector<2x1x1xf32> to vector<2x1xf32>
      %230 = vector.shape_cast %227 : vector<2x1xf32> to vector<2x1x1xf32>
      tpu.vector_store %arg22[%c0_101, %c0_102, %c0_103], %230 {strides = array<i32>} : memref<2x1x1xf32, #tpu.memory_space<vmem>>, vector<2x1x1xf32>,
    } else {
    }
    return
  }
  func.func @transform_0(%arg0: i32, %arg1: i32) -> (i32, i32, i32) {
    %c0_i32 = arith.constant 0 : i32
    %c0_i32_0 = arith.constant 0 : i32
    %c0_i32_1 = arith.constant 0 : i32
    return %arg0, %c0_i32, %c0_i32_0 : i32, i32, i32
  }
  func.func @transform_1(%arg0: i32, %arg1: i32) -> (i32, i32) {
    %c0_i32 = arith.constant 0 : i32
    %c0_i32_0 = arith.constant 0 : i32
    %c0_i32_1 = arith.constant 0 : i32
    return %c0_i32, %c0_i32_0 : i32, i32
  }
  func.func @transform_2(%arg0: i32, %arg1: i32) -> (i32, i32) {
    %c0_i32 = arith.constant 0 : i32
    %c0_i32_0 = arith.constant 0 : i32
    %c0_i32_1 = arith.constant 0 : i32
    return %c0_i32, %c0_i32_0 : i32, i32
  }
  func.func @transform_3(%arg0: i32, %arg1: i32) -> (i32, i32, i32) {
    %c0_i32 = arith.constant 0 : i32
    %c0_i32_0 = arith.constant 0 : i32
    %c0_i32_1 = arith.constant 0 : i32
    return %arg1, %c0_i32, %c0_i32_0 : i32, i32, i32
  }
  func.func @transform_4(%arg0: i32, %arg1: i32) -> (i32, i32, i32) {
    %c0_i32 = arith.constant 0 : i32
    %c0_i32_0 = arith.constant 0 : i32
    %c0_i32_1 = arith.constant 0 : i32
    return %arg1, %c0_i32, %c0_i32_0 : i32, i32, i32
  }
  func.func @transform_5(%arg0: i32, %arg1: i32) -> (i32, i32, i32) {
    %c0_i32 = arith.constant 0 : i32
    %c0_i32_0 = arith.constant 0 : i32
    %c0_i32_1 = arith.constant 0 : i32
    return %arg1, %c0_i32, %c0_i32_0 : i32, i32, i32
  }
  func.func @transform_6(%arg0: i32, %arg1: i32) -> (i32, i32, i32) {
    %c0_i32 = arith.constant 0 : i32
    %c0_i32_0 = arith.constant 0 : i32
    %c0_i32_1 = arith.constant 0 : i32
    return %arg1, %c0_i32, %c0_i32_0 : i32, i32, i32
  }
  func.func @transform_7(%arg0: i32, %arg1: i32) -> (i32, i32, i32) {
    %c0_i32 = arith.constant 0 : i32
    %c0_i32_0 = arith.constant 0 : i32
    %c0_i32_1 = arith.constant 0 : i32
    return %arg1, %c0_i32, %c0_i32_0 : i32, i32, i32
  }
  func.func @transform_8(%arg0: i32, %arg1: i32) -> (i32, i32, i32) {
    %c0_i32 = arith.constant 0 : i32
    %c0_i32_0 = arith.constant 0 : i32
    %c0_i32_1 = arith.constant 0 : i32
    return %arg1, %c0_i32, %c0_i32_0 : i32, i32, i32
  }
  func.func @transform_9(%arg0: i32, %arg1: i32) -> (i32, i32, i32) {
    %c0_i32 = arith.constant 0 : i32
    %c0_i32_0 = arith.constant 0 : i32
    %c0_i32_1 = arith.constant 0 : i32
    return %arg1, %c0_i32, %c0_i32_0 : i32, i32, i32
  }
  func.func @transform_10(%arg0: i32, %arg1: i32) -> (i32, i32, i32) {
    %c0_i32 = arith.constant 0 : i32
    %c0_i32_0 = arith.constant 0 : i32
    %c0_i32_1 = arith.constant 0 : i32
    return %arg1, %c0_i32, %c0_i32_0 : i32, i32, i32
  }
  func.func @transform_11(%arg0: i32, %arg1: i32) -> (i32, i32, i32) {
    %c0_i32 = arith.constant 0 : i32
    %c0_i32_0 = arith.constant 0 : i32
    %c0_i32_1 = arith.constant 0 : i32
    return %arg1, %c0_i32, %c0_i32_0 : i32, i32, i32
  }
  func.func @transform_12(%arg0: i32, %arg1: i32) -> (i32, i32, i32) {
    %c0_i32 = arith.constant 0 : i32
    %c0_i32_0 = arith.constant 0 : i32
    %c0_i32_1 = arith.constant 0 : i32
    return %arg1, %c0_i32, %c0_i32_0 : i32, i32, i32
  }
  func.func @transform_13(%arg0: i32, %arg1: i32) -> (i32, i32, i32) {
    %c0_i32 = arith.constant 0 : i32
    %c0_i32_0 = arith.constant 0 : i32
    %c0_i32_1 = arith.constant 0 : i32
    return %arg1, %c0_i32, %c0_i32_0 : i32, i32, i32
  }
  func.func @transform_14(%arg0: i32, %arg1: i32) -> (i32, i32, i32) {
    %c0_i32 = arith.constant 0 : i32
    %c0_i32_0 = arith.constant 0 : i32
    %c0_i32_1 = arith.constant 0 : i32
    return %arg1, %c0_i32, %c0_i32_0 : i32, i32, i32
  }
  func.func @transform_15(%arg0: i32, %arg1: i32) -> (i32, i32) {
    %c0_i32 = arith.constant 0 : i32
    %c0_i32_0 = arith.constant 0 : i32
    %c0_i32_1 = arith.constant 0 : i32
    return %c0_i32, %c0_i32_0 : i32, i32
  }
  func.func @transform_16(%arg0: i32, %arg1: i32) -> (i32, i32) {
    %c0_i32 = arith.constant 0 : i32
    %c0_i32_0 = arith.constant 0 : i32
    %c0_i32_1 = arith.constant 0 : i32
    return %c0_i32, %c0_i32_0 : i32, i32
  }
  func.func @transform_17(%arg0: i32, %arg1: i32) -> (i32, i32) {
    %c0_i32 = arith.constant 0 : i32
    %c0_i32_0 = arith.constant 0 : i32
    %c0_i32_1 = arith.constant 0 : i32
    return %c0_i32, %c0_i32_0 : i32, i32
  }
  func.func @transform_18(%arg0: i32, %arg1: i32) -> (i32, i32) {
    %c0_i32 = arith.constant 0 : i32
    %c0_i32_0 = arith.constant 0 : i32
    %c0_i32_1 = arith.constant 0 : i32
    return %c0_i32, %c0_i32_0 : i32, i32
  }
  func.func @transform_19(%arg0: i32, %arg1: i32) -> (i32, i32) {
    %c0_i32 = arith.constant 0 : i32
    %c0_i32_0 = arith.constant 0 : i32
    %c0_i32_1 = arith.constant 0 : i32
    return %c0_i32, %c0_i32_0 : i32, i32
  }
  func.func @transform_20(%arg0: i32, %arg1: i32) -> (i32, i32, i32) {
    %c0_i32 = arith.constant 0 : i32
    %c0_i32_0 = arith.constant 0 : i32
    %c0_i32_1 = arith.constant 0 : i32
    return %arg0, %c0_i32, %c0_i32_0 : i32, i32, i32
  }
}

</mosaic_0001>

<llo_original>
// kernel: tile.19
$region0: #{tile.19}
  %s0 = inlined_call_operand.vmem [shape: f32[8,4,8], index: 0, kind: input, shape index: {}]
  %s1 = inlined_call_operand.vmem [shape: f32[8,32], index: 1, kind: output, shape index: {}]
  $region1: #{tile.19} parent=0
    #allocation0 [shape = 'u8[32768]{0}', space=vmem, size = 0x8000, scoped, tag = 'scoped mem for input reshape']
    %s3 = sshllo.u32 0, 4
    %s4 = smul.addr 4, 7
    %s5 = scalar_lea.vmem %s0, %s4
    %v6 = vld [vmem:[%s5] sm:%s3]
    %s7 = scalar_lea.vmem [#allocation0], 56
    %8 = vst [vmem:[%s7] sm:%s3] %v6
    %s9 = smul.addr 4, 6
    %s10 = scalar_lea.vmem %s0, %s9
    %v11 = vld [vmem:[%s10] sm:%s3]
    %s12 = scalar_lea.vmem [#allocation0], 48
    %13 = vst [vmem:[%s12] sm:%s3] %v11
    %s14 = smul.addr 4, 5
    %s15 = scalar_lea.vmem %s0, %s14
    %v16 = vld [vmem:[%s15] sm:%s3]
    %s17 = scalar_lea.vmem [#allocation0], 40
    %18 = vst [vmem:[%s17] sm:%s3] %v16
    %s19 = smul.addr 4, 4
    %s20 = scalar_lea.vmem %s0, %s19
    %v21 = vld [vmem:[%s20] sm:%s3]
    %s22 = scalar_lea.vmem [#allocation0], 32
    %23 = vst [vmem:[%s22] sm:%s3] %v21
    %s24 = smul.addr 4, 3
    %s25 = scalar_lea.vmem %s0, %s24
    %v26 = vld [vmem:[%s25] sm:%s3]
    %s27 = scalar_lea.vmem [#allocation0], 24
    %28 = vst [vmem:[%s27] sm:%s3] %v26
    %s29 = smul.addr 4, 2
    %s30 = scalar_lea.vmem %s0, %s29
    %v31 = vld [vmem:[%s30] sm:%s3]
    %s32 = scalar_lea.vmem [#allocation0], 16
    %33 = vst [vmem:[%s32] sm:%s3] %v31
    %s34 = scalar_lea.vmem %s0, 4
    %v35 = vld [vmem:[%s34] sm:%s3]
    %s36 = scalar_lea.vmem [#allocation0], 8
    %37 = vst [vmem:[%s36] sm:%s3] %v35
    %v38 = vld [vmem:[%s0] sm:%s3]
    %39 = vst [vmem:[#allocation0] sm:%s3] %v38
    %v40 = vld [vmem:[#allocation0] ss:$8 sm:$0xf]
    %v41 = vld [vmem:[#allocation0] ss:$8 sm:$0xf0]
    %vm42 = vcmask 1047556
    %v43 = vsel %vm42, %v41, %v40
    %vm44 = vcmask 64512
    %45 = vst.msk [vmem:[%s1] sm:$0xff] %vm44, %v43
    %s46 = scalar_lea.vmem [#allocation0], 3
    %v47 = vld [vmem:[%s46] ss:$8 sm:$0xf]
    %s48 = scalar_lea.vmem [#allocation0], 3
    %v49 = vld [vmem:[%s48] ss:$8 sm:$0xf0]
    %vm50 = vcmask 1047556
    %v51 = vsel %vm50, %v49, %v47
    %52 = vrot.lane.b32.xlu0 %v51, 24
    %v53 = vpop.permute.xlu0 %52
    %vm54 = vcmask 261312
    %55 = vst.msk [vmem:[%s1] sm:$0xff] %vm54, %v53
    %s56 = scalar_lea.vmem [#allocation0], 2
    %v57 = vld [vmem:[%s56] ss:$8 sm:$0xf]
    %s58 = scalar_lea.vmem [#allocation0], 2
    %v59 = vld [vmem:[%s58] ss:$8 sm:$0xf0]
    %vm60 = vcmask 1047556
    %v61 = vsel %vm60, %v59, %v57
    %62 = vrot.lane.b32.xlu0 %v61, 16
    %v63 = vpop.permute.xlu0 %62
    %vm64 = vcmask 195712
    %65 = vst.msk [vmem:[%s1] sm:$0xff] %vm64, %v63
    %s66 = scalar_lea.vmem [#allocation0], 1
    %v67 = vld [vmem:[%s66] ss:$8 sm:$0xf]
    %s68 = scalar_lea.vmem [#allocation0], 1
    %v69 = vld [vmem:[%s68] ss:$8 sm:$0xf0]
    %vm70 = vcmask 1047556
    %v71 = vsel %vm70, %v69, %v67
    %72 = vrot.lane.b32.xlu0 %v71, 8
    %v73 = vpop.permute.xlu0 %72
    %vm74 = vcmask 130112
    %75 = vst.msk [vmem:[%s1] sm:$0xff] %vm74, %v73

// kernel: encoder_forward.1
$region0: #{encoder_forward.1}
  #allocation0 [shape = 'u32[]', space=smem, size = 0x4, offset = 0x4, fixed_abs, tag = 'smem constant byte address 0x4 - core index']
  #allocation1 [shape = 'u32[144,128]{1,0:T(1,128)}', space=vmem, size = 0x12000, scoped, tag = 'internal scratch']
  #allocation2 [shape = 'f32[16,32]{1,0:T(8,128)}', space=vmem, size = 0x2000, scoped, tag = 'scratch operand']
  #allocation3 [shape = 'f32[16,32]{1,0:T(8,128)}', space=vmem, size = 0x2000, scoped, tag = 'scratch operand']
  #allocation4 [shape = 'f32[1,1]{1,0:T(1,128)S(1)}', space=vmem, size = 0x200, scoped, tag = 'scoped memory for encoder_forward.1']
  %s0 = inlined_call_operand.vmem [shape: f32[2,8,4], index: 0, kind: input, shape index: {}]
  %s1 = inlined_call_operand.vmem [shape: f32[4,32], index: 1, kind: input, shape index: {}]
  %s2 = inlined_call_operand.vmem [shape: f32[1,32], index: 2, kind: input, shape index: {}]
  %s3 = inlined_call_operand.vmem [shape: bf16[2,32,96], index: 3, kind: input, shape index: {}]
  %s4 = inlined_call_operand.vmem [shape: f32[2,1,96], index: 4, kind: input, shape index: {}]
  %s5 = inlined_call_operand.vmem [shape: bf16[2,32,32], index: 5, kind: input, shape index: {}]
  %s6 = inlined_call_operand.vmem [shape: f32[2,1,32], index: 6, kind: input, shape index: {}]
  %s7 = inlined_call_operand.vmem [shape: f32[2,1,32], index: 7, kind: input, shape index: {}]
  %s8 = inlined_call_operand.vmem [shape: f32[2,1,32], index: 8, kind: input, shape index: {}]
  %s9 = inlined_call_operand.vmem [shape: f32[2,1,32], index: 9, kind: input, shape index: {}]
  %s10 = inlined_call_operand.vmem [shape: f32[2,1,32], index: 10, kind: input, shape index: {}]
  %s11 = inlined_call_operand.vmem [shape: bf16[2,32,128], index: 11, kind: input, shape index: {}]
  %s12 = inlined_call_operand.vmem [shape: f32[2,1,128], index: 12, kind: input, shape index: {}]
  %s13 = inlined_call_operand.vmem [shape: bf16[2,128,32], index: 13, kind: input, shape index: {}]
  %s14 = inlined_call_operand.vmem [shape: f32[2,1,32], index: 14, kind: input, shape index: {}]
  %s15 = inlined_call_operand.vmem [shape: f32[8,96], index: 15, kind: input, shape index: {}]
  %s16 = inlined_call_operand.vmem [shape: f32[8,96], index: 16, kind: input, shape index: {}]
  %s17 = inlined_call_operand.vmem [shape: f32[8,96], index: 17, kind: input, shape index: {}]
  %s18 = inlined_call_operand.vmem [shape: f32[32,1], index: 18, kind: input, shape index: {}]
  %s19 = inlined_call_operand.<no memory space> [shape: f32[1,1], index: 19, kind: input, shape index: {}]
  %s20 = inlined_call_operand.vmem [shape: f32[2,1,1], index: 20, kind: output, shape index: {}]
  %s21 = sld [smem:[#allocation0]]
  $region121: #{encoder_forward.1} parent=0
    _
  %s23 = ssub.s32 1, %s21
  %s24 = scalar_select 0, %s23, %s21
  %v25 = vstv %s19
  %26 = vst [vmem:[#allocation4] sm:$0x1] %v25
  loop: start=0, step=1, limit=4
  $region2: #{encoder_forward.1} parent=0 // loop_pre_header
    _
  $region3: #{encoder_forward.1} parent=0 // loop_header
    %s28 = sphi 0, %s32
    %p29 = scmp.ge.s32.totalorder %s28, 4
    %s35 = sphi 0, %s47
    %s36 = sphi 0, %s43
    %s37 = sphi 0, %s35
    %s38 = sphi 0, %s36
    %s39 = sphi 0, %s37
    %s40 = sphi 0, %s38
    %s50 = sphi 0, %s52
    %s53 = sphi 0, %s50
    %s54 = sphi 0, %s53
    %s70 = sphi 0, %s54
    %s74 = sphi 0, %s74
    %s76 = sphi 0, %s74
    %s77 = sphi 0, %s76
    %s91 = sphi 0, %s77
    %s95 = sphi 0, %s95
    %s97 = sphi 0, %s95
    %s98 = sphi 0, %s97
    %s112 = sphi 0, %s98
    %s118 = sphi 0, %s120
    %s121 = sphi 0, %s118
    %s122 = sphi 0, %s121
    %s138 = sphi 0, %s122
    %s144 = sphi 0, %s146
    %s147 = sphi 0, %s144
    %s148 = sphi 0, %s147
    %s164 = sphi 0, %s148
    %s170 = sphi 0, %s172
    %s173 = sphi 0, %s170
    %s174 = sphi 0, %s173
    %s190 = sphi 0, %s174
    %s196 = sphi 0, %s198
    %s199 = sphi 0, %s196
    %s200 = sphi 0, %s199
    %s216 = sphi 0, %s200
    %s222 = sphi 0, %s224
    %s225 = sphi 0, %s222
    %s226 = sphi 0, %s225
    %s242 = sphi 0, %s226
    %s248 = sphi 0, %s250
    %s251 = sphi 0, %s248
    %s252 = sphi 0, %s251
    %s268 = sphi 0, %s252
    %s274 = sphi 0, %s276
    %s277 = sphi 0, %s274
    %s278 = sphi 0, %s277
    %s294 = sphi 0, %s278
    %s300 = sphi 0, %s302
    %s303 = sphi 0, %s300
    %s304 = sphi 0, %s303
    %s320 = sphi 0, %s304
    %s326 = sphi 0, %s328
    %s329 = sphi 0, %s326
    %s330 = sphi 0, %s329
    %s346 = sphi 0, %s330
    %s352 = sphi 0, %s354
    %s355 = sphi 0, %s352
    %s356 = sphi 0, %s355
    %s372 = sphi 0, %s356
    %s378 = sphi 0, %s380
    %s381 = sphi 0, %s378
    %s382 = sphi 0, %s381
    %s398 = sphi 0, %s382
    %s404 = sphi 0, %s406
    %s407 = sphi 0, %s404
    %s408 = sphi 0, %s407
    %s424 = sphi 0, %s408
    %s428 = sphi 0, %s428
    %s430 = sphi 0, %s428
    %s431 = sphi 0, %s430
    %s445 = sphi 0, %s431
    %s449 = sphi 0, %s449
    %s451 = sphi 0, %s449
    %s452 = sphi 0, %s451
    %s466 = sphi 0, %s452
    %s470 = sphi 0, %s470
    %s472 = sphi 0, %s470
    %s473 = sphi 0, %s472
    %s487 = sphi 0, %s473
    %s491 = sphi 0, %s491
    %s493 = sphi 0, %s491
    %s494 = sphi 0, %s493
    %s508 = sphi 0, %s494
    %s512 = sphi 0, %s512
    %s514 = sphi 0, %s512
    %s515 = sphi 0, %s514
    %s529 = sphi 0, %s515
    %s535 = sphi 0, %s537
    %s538 = sphi 0, %s535
    %s539 = sphi 0, %s538
    %s555 = sphi 0, %s539
  $region4: #{encoder_forward.1} parent=0 // loop_header_branch
    %31 = sbr.rel (%p29) target = $region8
  $region5: #{encoder_forward.1} parent=0 // loop_body
    %s33 = ssub.s32 %s28, 1
    %s34 = ssub.s32 %s28, 2
    %s41 = sadd.s32 1, %s36
    %p42 = scmp.ge.s32.totalorder %s41, 2
    %s43 = scalar_select %p42, 0, %s41
    %s44 = sadd.s32 1, %s35
    %s45 = scalar_select %p42, %s44, %s35
    %p46 = scmp.ge.s32.totalorder %s45, 1
    %s47 = scalar_select %p46, 0, %s45
    %s48 = ssub.s32 %s35, %s47
    %p49 = scmp.eq.s32.totalorder %s48, 0
    %s51 = sadd.s32 %s50, 1
    %s52 = scalar_select %p49, %s50, %s51
    %p55 = pneg %p49
    %p56 = scmp.eq.s32.totalorder %s28, 1
    %p57 = por %p55, %p56
    %p58 = scmp.ne.s32.totalorder %s50, %s53
    %p59 = scmp.eq.s32.totalorder %s28, 0
    %p60 = por %p58, %p59
    %p61 = scmp.ne.s32.totalorder %s50, %s53
    %p62 = scmp.eq.s32.totalorder %s33, 1
    %p63 = por %p61, %p62
    %p64 = scmp.ne.s32.totalorder %s53, %s54
    %p65 = scmp.eq.s32.totalorder %s33, 0
    %p66 = por %p64, %p65
    %p67 = scmp.ne.s32.totalorder %s53, %s54
    %p68 = scmp.eq.s32.totalorder %s34, 1
    %p69 = por %p67, %p68
    %p71 = scmp.ne.s32.totalorder %s54, %s70
    %p72 = scmp.eq.s32.totalorder %s34, 0
    %p73 = por %p71, %p72
    %s75 = sadd.s32 %s74, 1
    %p78 = scmp.eq.s32.totalorder %s28, 1
    %p79 = scmp.ne.s32.totalorder %s74, %s76
    %p80 = scmp.eq.s32.totalorder %s28, 0
    %p81 = por %p79, %p80
    %p82 = scmp.ne.s32.totalorder %s74, %s76
    %p83 = scmp.eq.s32.totalorder %s33, 1
    %p84 = por %p82, %p83
    %p85 = scmp.ne.s32.totalorder %s76, %s77
    %p86 = scmp.eq.s32.totalorder %s33, 0
    %p87 = por %p85, %p86
    %p88 = scmp.ne.s32.totalorder %s76, %s77
    %p89 = scmp.eq.s32.totalorder %s34, 1
    %p90 = por %p88, %p89
    %p92 = scmp.ne.s32.totalorder %s77, %s91
    %p93 = scmp.eq.s32.totalorder %s34, 0
    %p94 = por %p92, %p93
    %s96 = sadd.s32 %s95, 1
    %p99 = scmp.eq.s32.totalorder %s28, 1
    %p100 = scmp.ne.s32.totalorder %s95, %s97
    %p101 = scmp.eq.s32.totalorder %s28, 0
    %p102 = por %p100, %p101
    %p103 = scmp.ne.s32.totalorder %s95, %s97
    %p104 = scmp.eq.s32.totalorder %s33, 1
    %p105 = por %p103, %p104
    %p106 = scmp.ne.s32.totalorder %s97, %s98
    %p107 = scmp.eq.s32.totalorder %s33, 0
    %p108 = por %p106, %p107
    %p109 = scmp.ne.s32.totalorder %s97, %s98
    %p110 = scmp.eq.s32.totalorder %s34, 1
    %p111 = por %p109, %p110
    %p113 = scmp.ne.s32.totalorder %s98, %s112
    %p114 = scmp.eq.s32.totalorder %s34, 0
    %p115 = por %p113, %p114
    %s116 = ssub.s32 %s36, %s43
    %p117 = scmp.eq.s32.totalorder %s116, 0
    %s119 = sadd.s32 %s118, 1
    %s120 = scalar_select %p117, %s118, %s119
    %p123 = pneg %p117
    %p124 = scmp.eq.s32.totalorder %s28, 1
    %p125 = por %p123, %p124
    %p126 = scmp.ne.s32.totalorder %s118, %s121
    %p127 = scmp.eq.s32.totalorder %s28, 0
    %p128 = por %p126, %p127
    %p129 = scmp.ne.s32.totalorder %s118, %s121
    %p130 = scmp.eq.s32.totalorder %s33, 1
    %p131 = por %p129, %p130
    %p132 = scmp.ne.s32.totalorder %s121, %s122
    %p133 = scmp.eq.s32.totalorder %s33, 0
    %p134 = por %p132, %p133
    %p135 = scmp.ne.s32.totalorder %s121, %s122
    %p136 = scmp.eq.s32.totalorder %s34, 1
    %p137 = por %p135, %p136
    %p139 = scmp.ne.s32.totalorder %s122, %s138
    %p140 = scmp.eq.s32.totalorder %s34, 0
    %p141 = por %p139, %p140
    %s142 = ssub.s32 %s36, %s43
    %p143 = scmp.eq.s32.totalorder %s142, 0
    %s145 = sadd.s32 %s144, 1
    %s146 = scalar_select %p143, %s144, %s145
    %p149 = pneg %p143
    %p150 = scmp.eq.s32.totalorder %s28, 1
    %p151 = por %p149, %p150
    %p152 = scmp.ne.s32.totalorder %s144, %s147
    %p153 = scmp.eq.s32.totalorder %s28, 0
    %p154 = por %p152, %p153
    %p155 = scmp.ne.s32.totalorder %s144, %s147
    %p156 = scmp.eq.s32.totalorder %s33, 1
    %p157 = por %p155, %p156
    %p158 = scmp.ne.s32.totalorder %s147, %s148
    %p159 = scmp.eq.s32.totalorder %s33, 0
    %p160 = por %p158, %p159
    %p161 = scmp.ne.s32.totalorder %s147, %s148
    %p162 = scmp.eq.s32.totalorder %s34, 1
    %p163 = por %p161, %p162
    %p165 = scmp.ne.s32.totalorder %s148, %s164
    %p166 = scmp.eq.s32.totalorder %s34, 0
    %p167 = por %p165, %p166
    %s168 = ssub.s32 %s36, %s43
    %p169 = scmp.eq.s32.totalorder %s168, 0
    %s171 = sadd.s32 %s170, 1
    %s172 = scalar_select %p169, %s170, %s171
    %p175 = pneg %p169
    %p176 = scmp.eq.s32.totalorder %s28, 1
    %p177 = por %p175, %p176
    %p178 = scmp.ne.s32.totalorder %s170, %s173
    %p179 = scmp.eq.s32.totalorder %s28, 0
    %p180 = por %p178, %p179
    %p181 = scmp.ne.s32.totalorder %s170, %s173
    %p182 = scmp.eq.s32.totalorder %s33, 1
    %p183 = por %p181, %p182
    %p184 = scmp.ne.s32.totalorder %s173, %s174
    %p185 = scmp.eq.s32.totalorder %s33, 0
    %p186 = por %p184, %p185
    %p187 = scmp.ne.s32.totalorder %s173, %s174
    %p188 = scmp.eq.s32.totalorder %s34, 1
    %p189 = por %p187, %p188
    %p191 = scmp.ne.s32.totalorder %s174, %s190
    %p192 = scmp.eq.s32.totalorder %s34, 0
    %p193 = por %p191, %p192
    %s194 = ssub.s32 %s36, %s43
    %p195 = scmp.eq.s32.totalorder %s194, 0
    %s197 = sadd.s32 %s196, 1
    %s198 = scalar_select %p195, %s196, %s197
    %p201 = pneg %p195
    %p202 = scmp.eq.s32.totalorder %s28, 1
    %p203 = por %p201, %p202
    %p204 = scmp.ne.s32.totalorder %s196, %s199
    %p205 = scmp.eq.s32.totalorder %s28, 0
    %p206 = por %p204, %p205
    %p207 = scmp.ne.s32.totalorder %s196, %s199
    %p208 = scmp.eq.s32.totalorder %s33, 1
    %p209 = por %p207, %p208
    %p210 = scmp.ne.s32.totalorder %s199, %s200
    %p211 = scmp.eq.s32.totalorder %s33, 0
    %p212 = por %p210, %p211
    %p213 = scmp.ne.s32.totalorder %s199, %s200
    %p214 = scmp.eq.s32.totalorder %s34, 1
    %p215 = por %p213, %p214
    %p217 = scmp.ne.s32.totalorder %s200, %s216
    %p218 = scmp.eq.s32.totalorder %s34, 0
    %p219 = por %p217, %p218
    %s220 = ssub.s32 %s36, %s43
    %p221 = scmp.eq.s32.totalorder %s220, 0
    %s223 = sadd.s32 %s222, 1
    %s224 = scalar_select %p221, %s222, %s223
    %p227 = pneg %p221
    %p228 = scmp.eq.s32.totalorder %s28, 1
    %p229 = por %p227, %p228
    %p230 = scmp.ne.s32.totalorder %s222, %s225
    %p231 = scmp.eq.s32.totalorder %s28, 0
    %p232 = por %p230, %p231
    %p233 = scmp.ne.s32.totalorder %s222, %s225
    %p234 = scmp.eq.s32.totalorder %s33, 1
    %p235 = por %p233, %p234
    %p236 = scmp.ne.s32.totalorder %s225, %s226
    %p237 = scmp.eq.s32.totalorder %s33, 0
    %p238 = por %p236, %p237
    %p239 = scmp.ne.s32.totalorder %s225, %s226
    %p240 = scmp.eq.s32.totalorder %s34, 1
    %p241 = por %p239, %p240
    %p243 = scmp.ne.s32.totalorder %s226, %s242
    %p244 = scmp.eq.s32.totalorder %s34, 0
    %p245 = por %p243, %p244
    %s246 = ssub.s32 %s36, %s43
    %p247 = scmp.eq.s32.totalorder %s246, 0
    %s249 = sadd.s32 %s248, 1
    %s250 = scalar_select %p247, %s248, %s249
    %p253 = pneg %p247
    %p254 = scmp.eq.s32.totalorder %s28, 1
    %p255 = por %p253, %p254
    %p256 = scmp.ne.s32.totalorder %s248, %s251
    %p257 = scmp.eq.s32.totalorder %s28, 0
    %p258 = por %p256, %p257
    %p259 = scmp.ne.s32.totalorder %s248, %s251
    %p260 = scmp.eq.s32.totalorder %s33, 1
    %p261 = por %p259, %p260
    %p262 = scmp.ne.s32.totalorder %s251, %s252
    %p263 = scmp.eq.s32.totalorder %s33, 0
    %p264 = por %p262, %p263
    %p265 = scmp.ne.s32.totalorder %s251, %s252
    %p266 = scmp.eq.s32.totalorder %s34, 1
    %p267 = por %p265, %p266
    %p269 = scmp.ne.s32.totalorder %s252, %s268
    %p270 = scmp.eq.s32.totalorder %s34, 0
    %p271 = por %p269, %p270
    %s272 = ssub.s32 %s36, %s43
    %p273 = scmp.eq.s32.totalorder %s272, 0
    %s275 = sadd.s32 %s274, 1
    %s276 = scalar_select %p273, %s274, %s275
    %p279 = pneg %p273
    %p280 = scmp.eq.s32.totalorder %s28, 1
    %p281 = por %p279, %p280
    %p282 = scmp.ne.s32.totalorder %s274, %s277
    %p283 = scmp.eq.s32.totalorder %s28, 0
    %p284 = por %p282, %p283
    %p285 = scmp.ne.s32.totalorder %s274, %s277
    %p286 = scmp.eq.s32.totalorder %s33, 1
    %p287 = por %p285, %p286
    %p288 = scmp.ne.s32.totalorder %s277, %s278
    %p289 = scmp.eq.s32.totalorder %s33, 0
    %p290 = por %p288, %p289
    %p291 = scmp.ne.s32.totalorder %s277, %s278
    %p292 = scmp.eq.s32.totalorder %s34, 1
    %p293 = por %p291, %p292
    %p295 = scmp.ne.s32.totalorder %s278, %s294
    %p296 = scmp.eq.s32.totalorder %s34, 0
    %p297 = por %p295, %p296
    %s298 = ssub.s32 %s36, %s43
    %p299 = scmp.eq.s32.totalorder %s298, 0
    %s301 = sadd.s32 %s300, 1
    %s302 = scalar_select %p299, %s300, %s301
    %p305 = pneg %p299
    %p306 = scmp.eq.s32.totalorder %s28, 1
    %p307 = por %p305, %p306
    %p308 = scmp.ne.s32.totalorder %s300, %s303
    %p309 = scmp.eq.s32.totalorder %s28, 0
    %p310 = por %p308, %p309
    %p311 = scmp.ne.s32.totalorder %s300, %s303
    %p312 = scmp.eq.s32.totalorder %s33, 1
    %p313 = por %p311, %p312
    %p314 = scmp.ne.s32.totalorder %s303, %s304
    %p315 = scmp.eq.s32.totalorder %s33, 0
    %p316 = por %p314, %p315
    %p317 = scmp.ne.s32.totalorder %s303, %s304
    %p318 = scmp.eq.s32.totalorder %s34, 1
    %p319 = por %p317, %p318
    %p321 = scmp.ne.s32.totalorder %s304, %s320
    %p322 = scmp.eq.s32.totalorder %s34, 0
    %p323 = por %p321, %p322
    %s324 = ssub.s32 %s36, %s43
    %p325 = scmp.eq.s32.totalorder %s324, 0
    %s327 = sadd.s32 %s326, 1
    %s328 = scalar_select %p325, %s326, %s327
    %p331 = pneg %p325
    %p332 = scmp.eq.s32.totalorder %s28, 1
    %p333 = por %p331, %p332
    %p334 = scmp.ne.s32.totalorder %s326, %s329
    %p335 = scmp.eq.s32.totalorder %s28, 0
    %p336 = por %p334, %p335
    %p337 = scmp.ne.s32.totalorder %s326, %s329
    %p338 = scmp.eq.s32.totalorder %s33, 1
    %p339 = por %p337, %p338
    %p340 = scmp.ne.s32.totalorder %s329, %s330
    %p341 = scmp.eq.s32.totalorder %s33, 0
    %p342 = por %p340, %p341
    %p343 = scmp.ne.s32.totalorder %s329, %s330
    %p344 = scmp.eq.s32.totalorder %s34, 1
    %p345 = por %p343, %p344
    %p347 = scmp.ne.s32.totalorder %s330, %s346
    %p348 = scmp.eq.s32.totalorder %s34, 0
    %p349 = por %p347, %p348
    %s350 = ssub.s32 %s36, %s43
    %p351 = scmp.eq.s32.totalorder %s350, 0
    %s353 = sadd.s32 %s352, 1
    %s354 = scalar_select %p351, %s352, %s353
    %p357 = pneg %p351
    %p358 = scmp.eq.s32.totalorder %s28, 1
    %p359 = por %p357, %p358
    %p360 = scmp.ne.s32.totalorder %s352, %s355
    %p361 = scmp.eq.s32.totalorder %s28, 0
    %p362 = por %p360, %p361
    %p363 = scmp.ne.s32.totalorder %s352, %s355
    %p364 = scmp.eq.s32.totalorder %s33, 1
    %p365 = por %p363, %p364
    %p366 = scmp.ne.s32.totalorder %s355, %s356
    %p367 = scmp.eq.s32.totalorder %s33, 0
    %p368 = por %p366, %p367
    %p369 = scmp.ne.s32.totalorder %s355, %s356
    %p370 = scmp.eq.s32.totalorder %s34, 1
    %p371 = por %p369, %p370
    %p373 = scmp.ne.s32.totalorder %s356, %s372
    %p374 = scmp.eq.s32.totalorder %s34, 0
    %p375 = por %p373, %p374
    %s376 = ssub.s32 %s36, %s43
    %p377 = scmp.eq.s32.totalorder %s376, 0
    %s379 = sadd.s32 %s378, 1
    %s380 = scalar_select %p377, %s378, %s379
    %p383 = pneg %p377
    %p384 = scmp.eq.s32.totalorder %s28, 1
    %p385 = por %p383, %p384
    %p386 = scmp.ne.s32.totalorder %s378, %s381
    %p387 = scmp.eq.s32.totalorder %s28, 0
    %p388 = por %p386, %p387
    %p389 = scmp.ne.s32.totalorder %s378, %s381
    %p390 = scmp.eq.s32.totalorder %s33, 1
    %p391 = por %p389, %p390
    %p392 = scmp.ne.s32.totalorder %s381, %s382
    %p393 = scmp.eq.s32.totalorder %s33, 0
    %p394 = por %p392, %p393
    %p395 = scmp.ne.s32.totalorder %s381, %s382
    %p396 = scmp.eq.s32.totalorder %s34, 1
    %p397 = por %p395, %p396
    %p399 = scmp.ne.s32.totalorder %s382, %s398
    %p400 = scmp.eq.s32.totalorder %s34, 0
    %p401 = por %p399, %p400
    %s402 = ssub.s32 %s36, %s43
    %p403 = scmp.eq.s32.totalorder %s402, 0
    %s405 = sadd.s32 %s404, 1
    %s406 = scalar_select %p403, %s404, %s405
    %p409 = pneg %p403
    %p410 = scmp.eq.s32.totalorder %s28, 1
    %p411 = por %p409, %p410
    %p412 = scmp.ne.s32.totalorder %s404, %s407
    %p413 = scmp.eq.s32.totalorder %s28, 0
    %p414 = por %p412, %p413
    %p415 = scmp.ne.s32.totalorder %s404, %s407
    %p416 = scmp.eq.s32.totalorder %s33, 1
    %p417 = por %p415, %p416
    %p418 = scmp.ne.s32.totalorder %s407, %s408
    %p419 = scmp.eq.s32.totalorder %s33, 0
    %p420 = por %p418, %p419
    %p421 = scmp.ne.s32.totalorder %s407, %s408
    %p422 = scmp.eq.s32.totalorder %s34, 1
    %p423 = por %p421, %p422
    %p425 = scmp.ne.s32.totalorder %s408, %s424
    %p426 = scmp.eq.s32.totalorder %s34, 0
    %p427 = por %p425, %p426
    %s429 = sadd.s32 %s428, 1
    %p432 = scmp.eq.s32.totalorder %s28, 1
    %p433 = scmp.ne.s32.totalorder %s428, %s430
    %p434 = scmp.eq.s32.totalorder %s28, 0
    %p435 = por %p433, %p434
    %p436 = scmp.ne.s32.totalorder %s428, %s430
    %p437 = scmp.eq.s32.totalorder %s33, 1
    %p438 = por %p436, %p437
    %p439 = scmp.ne.s32.totalorder %s430, %s431
    %p440 = scmp.eq.s32.totalorder %s33, 0
    %p441 = por %p439, %p440
    %p442 = scmp.ne.s32.totalorder %s430, %s431
    %p443 = scmp.eq.s32.totalorder %s34, 1
    %p444 = por %p442, %p443
    %p446 = scmp.ne.s32.totalorder %s431, %s445
    %p447 = scmp.eq.s32.totalorder %s34, 0
    %p448 = por %p446, %p447
    %s450 = sadd.s32 %s449, 1
    %p453 = scmp.eq.s32.totalorder %s28, 1
    %p454 = scmp.ne.s32.totalorder %s449, %s451
    %p455 = scmp.eq.s32.totalorder %s28, 0
    %p456 = por %p454, %p455
    %p457 = scmp.ne.s32.totalorder %s449, %s451
    %p458 = scmp.eq.s32.totalorder %s33, 1
    %p459 = por %p457, %p458
    %p460 = scmp.ne.s32.totalorder %s451, %s452
    %p461 = scmp.eq.s32.totalorder %s33, 0
    %p462 = por %p460, %p461
    %p463 = scmp.ne.s32.totalorder %s451, %s452
    %p464 = scmp.eq.s32.totalorder %s34, 1
    %p465 = por %p463, %p464
    %p467 = scmp.ne.s32.totalorder %s452, %s466
    %p468 = scmp.eq.s32.totalorder %s34, 0
    %p469 = por %p467, %p468
    %s471 = sadd.s32 %s470, 1
    %p474 = scmp.eq.s32.totalorder %s28, 1
    %p475 = scmp.ne.s32.totalorder %s470, %s472
    %p476 = scmp.eq.s32.totalorder %s28, 0
    %p477 = por %p475, %p476
    %p478 = scmp.ne.s32.totalorder %s470, %s472
    %p479 = scmp.eq.s32.totalorder %s33, 1
    %p480 = por %p478, %p479
    %p481 = scmp.ne.s32.totalorder %s472, %s473
    %p482 = scmp.eq.s32.totalorder %s33, 0
    %p483 = por %p481, %p482
    %p484 = scmp.ne.s32.totalorder %s472, %s473
    %p485 = scmp.eq.s32.totalorder %s34, 1
    %p486 = por %p484, %p485
    %p488 = scmp.ne.s32.totalorder %s473, %s487
    %p489 = scmp.eq.s32.totalorder %s34, 0
    %p490 = por %p488, %p489
    %s492 = sadd.s32 %s491, 1
    %p495 = scmp.eq.s32.totalorder %s28, 1
    %p496 = scmp.ne.s32.totalorder %s491, %s493
    %p497 = scmp.eq.s32.totalorder %s28, 0
    %p498 = por %p496, %p497
    %p499 = scmp.ne.s32.totalorder %s491, %s493
    %p500 = scmp.eq.s32.totalorder %s33, 1
    %p501 = por %p499, %p500
    %p502 = scmp.ne.s32.totalorder %s493, %s494
    %p503 = scmp.eq.s32.totalorder %s33, 0
    %p504 = por %p502, %p503
    %p505 = scmp.ne.s32.totalorder %s493, %s494
    %p506 = scmp.eq.s32.totalorder %s34, 1
    %p507 = por %p505, %p506
    %p509 = scmp.ne.s32.totalorder %s494, %s508
    %p510 = scmp.eq.s32.totalorder %s34, 0
    %p511 = por %p509, %p510
    %s513 = sadd.s32 %s512, 1
    %p516 = scmp.eq.s32.totalorder %s28, 1
    %p517 = scmp.ne.s32.totalorder %s512, %s514
    %p518 = scmp.eq.s32.totalorder %s28, 0
    %p519 = por %p517, %p518
    %p520 = scmp.ne.s32.totalorder %s512, %s514
    %p521 = scmp.eq.s32.totalorder %s33, 1
    %p522 = por %p520, %p521
    %p523 = scmp.ne.s32.totalorder %s514, %s515
    %p524 = scmp.eq.s32.totalorder %s33, 0
    %p525 = por %p523, %p524
    %p526 = scmp.ne.s32.totalorder %s514, %s515
    %p527 = scmp.eq.s32.totalorder %s34, 1
    %p528 = por %p526, %p527
    %p530 = scmp.ne.s32.totalorder %s515, %s529
    %p531 = scmp.eq.s32.totalorder %s34, 0
    %p532 = por %p530, %p531
    %s533 = ssub.s32 %s35, %s47
    %p534 = scmp.eq.s32.totalorder %s533, 0
    %s536 = sadd.s32 %s535, 1
    %s537 = scalar_select %p534, %s535, %s536
    %p540 = pneg %p534
    %p541 = scmp.eq.s32.totalorder %s28, 1
    %p542 = por %p540, %p541
    %p543 = scmp.ne.s32.totalorder %s535, %s538
    %p544 = scmp.eq.s32.totalorder %s28, 0
    %p545 = por %p543, %p544
    %p546 = scmp.ne.s32.totalorder %s535, %s538
    %p547 = scmp.eq.s32.totalorder %s33, 1
    %p548 = por %p546, %p547
    %p549 = scmp.ne.s32.totalorder %s538, %s539
    %p550 = scmp.eq.s32.totalorder %s33, 0
    %p551 = por %p549, %p550
    %p552 = scmp.ne.s32.totalorder %s538, %s539
    %p553 = scmp.eq.s32.totalorder %s34, 1
    %p554 = por %p552, %p553
    %p556 = scmp.ne.s32.totalorder %s539, %s555
    %p557 = scmp.eq.s32.totalorder %s34, 0
    %p558 = por %p556, %p557
    %p559 = scmp.le.s32.totalorder 1, %s28
    %p560 = scmp.lt.s32.totalorder %s28, 3
    %p561 = pnand %p559, %p560
    %p562 = pneg %p561
    // Predicated region
    $region9: #{encoder_forward.1} parent=5 // pred_check
      _
    $region10: #{encoder_forward.1} parent=5 // pred_check_branch
      %564 = sbr.rel (%p561) target = $region12
    $region11: #{encoder_forward.1} parent=5 // pred_region
      %s565 = ssub.s32 %s28, 1
      // Predicated region
      $region13: #{encoder_forward.1} parent=11 // pred_check
        %p566 = pneg %p66
      $region14: #{encoder_forward.1} parent=11 // pred_check_branch
        %568 = sbr.rel (%p566) target = $region16
      $region15: #{encoder_forward.1} parent=11 // pred_region
        %s569 = smul.u32 2, %s37
        %p570 = scmp.lt.s32.totalorder %s569, 1
        %s571 = scalar_select %p570, %s569, 1
        %s572 = smul.addr %s571, 8
        %s573 = scalar_lea.vmem %s0, %s572
        %s574 = smul.u32 2, %s37
      $region16: #{encoder_forward.1} parent=11 // pred_fallthru
        _
      // Predicated region
      $region17: #{encoder_forward.1} parent=11 // pred_check
        %p575 = pneg %p87
      $region18: #{encoder_forward.1} parent=11 // pred_check_branch
        %577 = sbr.rel (%p575) target = $region20
      $region19: #{encoder_forward.1} parent=11 // pred_region
        _
      $region20: #{encoder_forward.1} parent=11 // pred_fallthru
        _
      // Predicated region
      $region21: #{encoder_forward.1} parent=11 // pred_check
        %p578 = pneg %p108
      $region22: #{encoder_forward.1} parent=11 // pred_check_branch
        %580 = sbr.rel (%p578) target = $region24
      $region23: #{encoder_forward.1} parent=11 // pred_region
        _
      $region24: #{encoder_forward.1} parent=11 // pred_fallthru
        _
      // Predicated region
      $region25: #{encoder_forward.1} parent=11 // pred_check
        %p581 = pneg %p441
      $region26: #{encoder_forward.1} parent=11 // pred_check_branch
        %583 = sbr.rel (%p581) target = $region28
      $region27: #{encoder_forward.1} parent=11 // pred_region
        _
      $region28: #{encoder_forward.1} parent=11 // pred_fallthru
        _
      // Predicated region
      $region29: #{encoder_forward.1} parent=11 // pred_check
        %p584 = pneg %p462
      $region30: #{encoder_forward.1} parent=11 // pred_check_branch
        %586 = sbr.rel (%p584) target = $region32
      $region31: #{encoder_forward.1} parent=11 // pred_region
        _
      $region32: #{encoder_forward.1} parent=11 // pred_fallthru
        _
      // Predicated region
      $region33: #{encoder_forward.1} parent=11 // pred_check
        %p587 = pneg %p483
      $region34: #{encoder_forward.1} parent=11 // pred_check_branch
        %589 = sbr.rel (%p587) target = $region36
      $region35: #{encoder_forward.1} parent=11 // pred_region
        _
      $region36: #{encoder_forward.1} parent=11 // pred_fallthru
        _
      // Predicated region
      $region37: #{encoder_forward.1} parent=11 // pred_check
        %p590 = pneg %p504
      $region38: #{encoder_forward.1} parent=11 // pred_check_branch
        %592 = sbr.rel (%p590) target = $region40
      $region39: #{encoder_forward.1} parent=11 // pred_region
        _
      $region40: #{encoder_forward.1} parent=11 // pred_fallthru
        _
      // Predicated region
      $region41: #{encoder_forward.1} parent=11 // pred_check
        %p593 = pneg %p525
      $region42: #{encoder_forward.1} parent=11 // pred_check_branch
        %595 = sbr.rel (%p593) target = $region44
      $region43: #{encoder_forward.1} parent=11 // pred_region
        _
      $region44: #{encoder_forward.1} parent=11 // pred_fallthru
        _
    $region12: #{encoder_forward.1} parent=5 // pred_fallthru
      _
    %p596 = scmp.lt.s32.totalorder %s28, 2
    // Predicated region
    $region45: #{encoder_forward.1} parent=5 // pred_check
      %p597 = pneg %p596
    $region46: #{encoder_forward.1} parent=5 // pred_check_branch
      %599 = sbr.rel (%p597) target = $region48
    $region47: #{encoder_forward.1} parent=5 // pred_region
      // Predicated region
      $region49: #{encoder_forward.1} parent=47 // pred_check
        %p600 = pneg %p128
      $region50: #{encoder_forward.1} parent=47 // pred_check_branch
        %602 = sbr.rel (%p600) target = $region52
      $region51: #{encoder_forward.1} parent=47 // pred_region
        %p603 = scmp.lt.s32.totalorder %s36, 1
        %s604 = scalar_select %p603, %s36, 1
        %s605 = smul.addr %s604, 4
        %s606 = smul.addr %s605, 4
        %s607 = scalar_lea.vmem %s3, %s606
      $region52: #{encoder_forward.1} parent=47 // pred_fallthru
        _
      // Predicated region
      $region53: #{encoder_forward.1} parent=47 // pred_check
        %p608 = pneg %p154
      $region54: #{encoder_forward.1} parent=47 // pred_check_branch
        %610 = sbr.rel (%p608) target = $region56
      $region55: #{encoder_forward.1} parent=47 // pred_region
        %p611 = scmp.lt.s32.totalorder %s36, 1
        %s612 = scalar_select %p611, %s36, 1
        %s613 = scalar_lea.vmem %s4, %s612
      $region56: #{encoder_forward.1} parent=47 // pred_fallthru
        _
      // Predicated region
      $region57: #{encoder_forward.1} parent=47 // pred_check
        %p614 = pneg %p180
      $region58: #{encoder_forward.1} parent=47 // pred_check_branch
        %616 = sbr.rel (%p614) target = $region60
      $region59: #{encoder_forward.1} parent=47 // pred_region
        %p617 = scmp.lt.s32.totalorder %s36, 1
        %s618 = scalar_select %p617, %s36, 1
        %s619 = smul.addr %s618, 4
        %s620 = smul.addr %s619, 4
        %s621 = scalar_lea.vmem %s5, %s620
      $region60: #{encoder_forward.1} parent=47 // pred_fallthru
        _
      // Predicated region
      $region61: #{encoder_forward.1} parent=47 // pred_check
        %p622 = pneg %p206
      $region62: #{encoder_forward.1} parent=47 // pred_check_branch
        %624 = sbr.rel (%p622) target = $region64
      $region63: #{encoder_forward.1} parent=47 // pred_region
        %p625 = scmp.lt.s32.totalorder %s36, 1
        %s626 = scalar_select %p625, %s36, 1
        %s627 = scalar_lea.vmem %s6, %s626
      $region64: #{encoder_forward.1} parent=47 // pred_fallthru
        _
      // Predicated region
      $region65: #{encoder_forward.1} parent=47 // pred_check
        %p628 = pneg %p232
      $region66: #{encoder_forward.1} parent=47 // pred_check_branch
        %630 = sbr.rel (%p628) target = $region68
      $region67: #{encoder_forward.1} parent=47 // pred_region
        %p631 = scmp.lt.s32.totalorder %s36, 1
        %s632 = scalar_select %p631, %s36, 1
        %s633 = scalar_lea.vmem %s7, %s632
      $region68: #{encoder_forward.1} parent=47 // pred_fallthru
        _
      // Predicated region
      $region69: #{encoder_forward.1} parent=47 // pred_check
        %p634 = pneg %p258
      $region70: #{encoder_forward.1} parent=47 // pred_check_branch
        %636 = sbr.rel (%p634) target = $region72
      $region71: #{encoder_forward.1} parent=47 // pred_region
        %p637 = scmp.lt.s32.totalorder %s36, 1
        %s638 = scalar_select %p637, %s36, 1
        %s639 = scalar_lea.vmem %s8, %s638
      $region72: #{encoder_forward.1} parent=47 // pred_fallthru
        _
      // Predicated region
      $region73: #{encoder_forward.1} parent=47 // pred_check
        %p640 = pneg %p284
      $region74: #{encoder_forward.1} parent=47 // pred_check_branch
        %642 = sbr.rel (%p640) target = $region76
      $region75: #{encoder_forward.1} parent=47 // pred_region
        %p643 = scmp.lt.s32.totalorder %s36, 1
        %s644 = scalar_select %p643, %s36, 1
        %s645 = scalar_lea.vmem %s9, %s644
      $region76: #{encoder_forward.1} parent=47 // pred_fallthru
        _
      // Predicated region
      $region77: #{encoder_forward.1} parent=47 // pred_check
        %p646 = pneg %p310
      $region78: #{encoder_forward.1} parent=47 // pred_check_branch
        %648 = sbr.rel (%p646) target = $region80
      $region79: #{encoder_forward.1} parent=47 // pred_region
        %p649 = scmp.lt.s32.totalorder %s36, 1
        %s650 = scalar_select %p649, %s36, 1
        %s651 = scalar_lea.vmem %s10, %s650
      $region80: #{encoder_forward.1} parent=47 // pred_fallthru
        _
      // Predicated region
      $region81: #{encoder_forward.1} parent=47 // pred_check
        %p652 = pneg %p336
      $region82: #{encoder_forward.1} parent=47 // pred_check_branch
        %654 = sbr.rel (%p652) target = $region84
      $region83: #{encoder_forward.1} parent=47 // pred_region
        %p655 = scmp.lt.s32.totalorder %s36, 1
        %s656 = scalar_select %p655, %s36, 1
        %s657 = smul.addr %s656, 4
        %s658 = smul.addr %s657, 4
        %s659 = scalar_lea.vmem %s11, %s658
      $region84: #{encoder_forward.1} parent=47 // pred_fallthru
        _
      // Predicated region
      $region85: #{encoder_forward.1} parent=47 // pred_check
        %p660 = pneg %p362
      $region86: #{encoder_forward.1} parent=47 // pred_check_branch
        %662 = sbr.rel (%p660) target = $region88
      $region87: #{encoder_forward.1} parent=47 // pred_region
        %p663 = scmp.lt.s32.totalorder %s36, 1
        %s664 = scalar_select %p663, %s36, 1
        %s665 = scalar_lea.vmem %s12, %s664
      $region88: #{encoder_forward.1} parent=47 // pred_fallthru
        _
      // Predicated region
      $region89: #{encoder_forward.1} parent=47 // pred_check
        %p666 = pneg %p388
      $region90: #{encoder_forward.1} parent=47 // pred_check_branch
        %668 = sbr.rel (%p666) target = $region92
      $region91: #{encoder_forward.1} parent=47 // pred_region
        %p669 = scmp.lt.s32.totalorder %s36, 1
        %s670 = scalar_select %p669, %s36, 1
        %s671 = smul.addr %s670, 16
        %s672 = smul.addr %s671, 4
        %s673 = scalar_lea.vmem %s13, %s672
      $region92: #{encoder_forward.1} parent=47 // pred_fallthru
        _
      // Predicated region
      $region93: #{encoder_forward.1} parent=47 // pred_check
        %p674 = pneg %p414
      $region94: #{encoder_forward.1} parent=47 // pred_check_branch
        %676 = sbr.rel (%p674) target = $region96
      $region95: #{encoder_forward.1} parent=47 // pred_region
        %p677 = scmp.lt.s32.totalorder %s36, 1
        %s678 = scalar_select %p677, %s36, 1
        %s679 = scalar_lea.vmem %s14, %s678
      $region96: #{encoder_forward.1} parent=47 // pred_fallthru
        _
    $region48: #{encoder_forward.1} parent=5 // pred_fallthru
      _
    %p680 = scmp.le.s32.totalorder 1, %s28
    %p681 = scmp.lt.s32.totalorder %s28, 3
    %p682 = pnand %p680, %p681
    %p683 = pneg %p682
    // Predicated region
    $region97: #{encoder_forward.1} parent=5 // pred_check
      _
    $region98: #{encoder_forward.1} parent=5 // pred_check_branch
      %685 = sbr.rel (%p682) target = $region100
    $region99: #{encoder_forward.1} parent=5 // pred_region
      %s686 = ssub.s32 %s28, 1
      %s687 = smul.u32 2, %s37
      %p688 = scmp.lt.s32.totalorder %s687, 1
      %s689 = scalar_select %p688, %s687, 1
      %s690 = smul.addr %s689, 8
      %s691 = scalar_lea.vmem %s0, %s690
      %p692 = pneg %p66
      %p693 = pneg %p63
      %p694 = pneg %p87
      %p695 = pneg %p84
      %p696 = pneg %p108
      %p697 = pneg %p105
      %p698 = scmp.lt.s32.totalorder %s38, 1
      %s699 = scalar_select %p698, %s38, 1
      %s700 = smul.addr %s699, 4
      %s701 = smul.addr %s700, 4
      %s702 = scalar_lea.vmem %s3, %s701
      %p703 = pneg %p134
      %p704 = pneg %p131
      %p705 = scmp.lt.s32.totalorder %s38, 1
      %s706 = scalar_select %p705, %s38, 1
      %s707 = scalar_lea.vmem %s4, %s706
      %p708 = pneg %p160
      %p709 = pneg %p157
      %p710 = scmp.lt.s32.totalorder %s38, 1
      %s711 = scalar_select %p710, %s38, 1
      %s712 = smul.addr %s711, 4
      %s713 = smul.addr %s712, 4
      %s714 = scalar_lea.vmem %s5, %s713
      %p715 = pneg %p186
      %p716 = pneg %p183
      %p717 = scmp.lt.s32.totalorder %s38, 1
      %s718 = scalar_select %p717, %s38, 1
      %s719 = scalar_lea.vmem %s6, %s718
      %p720 = pneg %p212
      %p721 = pneg %p209
      %p722 = scmp.lt.s32.totalorder %s38, 1
      %s723 = scalar_select %p722, %s38, 1
      %s724 = scalar_lea.vmem %s7, %s723
      %p725 = pneg %p238
      %p726 = pneg %p235
      %p727 = scmp.lt.s32.totalorder %s38, 1
      %s728 = scalar_select %p727, %s38, 1
      %s729 = scalar_lea.vmem %s8, %s728
      %p730 = pneg %p264
      %p731 = pneg %p261
      %p732 = scmp.lt.s32.totalorder %s38, 1
      %s733 = scalar_select %p732, %s38, 1
      %s734 = scalar_lea.vmem %s9, %s733
      %p735 = pneg %p290
      %p736 = pneg %p287
      %p737 = scmp.lt.s32.totalorder %s38, 1
      %s738 = scalar_select %p737, %s38, 1
      %s739 = scalar_lea.vmem %s10, %s738
      %p740 = pneg %p316
      %p741 = pneg %p313
      %p742 = scmp.lt.s32.totalorder %s38, 1
      %s743 = scalar_select %p742, %s38, 1
      %s744 = smul.addr %s743, 4
      %s745 = smul.addr %s744, 4
      %s746 = scalar_lea.vmem %s11, %s745
      %p747 = pneg %p342
      %p748 = pneg %p339
      %p749 = scmp.lt.s32.totalorder %s38, 1
      %s750 = scalar_select %p749, %s38, 1
      %s751 = scalar_lea.vmem %s12, %s750
      %p752 = pneg %p368
      %p753 = pneg %p365
      %p754 = scmp.lt.s32.totalorder %s38, 1
      %s755 = scalar_select %p754, %s38, 1
      %s756 = smul.addr %s755, 16
      %s757 = smul.addr %s756, 4
      %s758 = scalar_lea.vmem %s13, %s757
      %p759 = pneg %p394
      %p760 = pneg %p391
      %p761 = scmp.lt.s32.totalorder %s38, 1
      %s762 = scalar_select %p761, %s38, 1
      %s763 = scalar_lea.vmem %s14, %s762
      %p764 = pneg %p420
      %p765 = pneg %p417
      %p766 = pneg %p441
      %p767 = pneg %p438
      %p768 = pneg %p462
      %p769 = pneg %p459
      %p770 = pneg %p483
      %p771 = pneg %p480
      %p772 = pneg %p504
      %p773 = pneg %p501
      %p774 = pneg %p525
      %p775 = pneg %p522
      %p776 = pneg %p551
      %p777 = pneg %p548
      %s778 = smul.u32 2, %s37
      %p779 = scmp.lt.s32.totalorder %s778, 1
      %s780 = scalar_select %p779, %s778, 1
      %s781 = scalar_lea.vmem %s20, %s780
      %s782 = smul.u32 2, %s37
      %p783 = scmp.lt.s32.totalorder %s782, 1
      %s784 = scalar_select %p783, %s782, 1
      %s785 = smul.addr %s784, 8
      %s786 = scalar_lea.vmem %s0, %s785
      %s787 = smul.u32 2, %s37
      %p788 = scmp.lt.s32.totalorder %s38, 1
      %s789 = scalar_select %p788, %s38, 1
      %s790 = smul.addr %s789, 4
      %s791 = smul.addr %s790, 4
      %s792 = scalar_lea.vmem %s3, %s791
      %p793 = scmp.lt.s32.totalorder %s38, 1
      %s794 = scalar_select %p793, %s38, 1
      %s795 = scalar_lea.vmem %s4, %s794
      %p796 = scmp.lt.s32.totalorder %s38, 1
      %s797 = scalar_select %p796, %s38, 1
      %s798 = smul.addr %s797, 4
      %s799 = smul.addr %s798, 4
      %s800 = scalar_lea.vmem %s5, %s799
      %p801 = scmp.lt.s32.totalorder %s38, 1
      %s802 = scalar_select %p801, %s38, 1
      %s803 = scalar_lea.vmem %s6, %s802
      %p804 = scmp.lt.s32.totalorder %s38, 1
      %s805 = scalar_select %p804, %s38, 1
      %s806 = scalar_lea.vmem %s7, %s805
      %p807 = scmp.lt.s32.totalorder %s38, 1
      %s808 = scalar_select %p807, %s38, 1
      %s809 = scalar_lea.vmem %s8, %s808
      %p810 = scmp.lt.s32.totalorder %s38, 1
      %s811 = scalar_select %p810, %s38, 1
      %s812 = scalar_lea.vmem %s9, %s811
      %p813 = scmp.lt.s32.totalorder %s38, 1
      %s814 = scalar_select %p813, %s38, 1
      %s815 = scalar_lea.vmem %s10, %s814
      %p816 = scmp.lt.s32.totalorder %s38, 1
      %s817 = scalar_select %p816, %s38, 1
      %s818 = smul.addr %s817, 4
      %s819 = smul.addr %s818, 4
      %s820 = scalar_lea.vmem %s11, %s819
      %p821 = scmp.lt.s32.totalorder %s38, 1
      %s822 = scalar_select %p821, %s38, 1
      %s823 = scalar_lea.vmem %s12, %s822
      %p824 = scmp.lt.s32.totalorder %s38, 1
      %s825 = scalar_select %p824, %s38, 1
      %s826 = smul.addr %s825, 16
      %s827 = smul.addr %s826, 4
      %s828 = scalar_lea.vmem %s13, %s827
      %p829 = scmp.lt.s32.totalorder %s38, 1
      %s830 = scalar_select %p829, %s38, 1
      %s831 = scalar_lea.vmem %s14, %s830
      %s832 = smul.u32 2, %s37
      %p833 = scmp.lt.s32.totalorder %s832, 1
      %s834 = scalar_select %p833, %s832, 1
      %s835 = scalar_lea.vmem %s20, %s834
      %s836 = smul.u32 2, %s37
      %p838 = scmp.eq.s32.totalorder %s38, 0
      // Predicated region
      $region101: #{encoder_forward.1} parent=99 // pred_check
        %p839 = pneg %p838
      $region102: #{encoder_forward.1} parent=99 // pred_check_branch
        %841 = sbr.rel (%p839) target = $region104
      $region103: #{encoder_forward.1} parent=99 // pred_region
        %v842 = vld [vmem:[%s786] sm:$0xff]
        %v843 = vld [vmem:[%s786 + $0x8] sm:$0xff]
        %v844 = vld [vmem:[%s1] sm:$0xf]
        %v845 = vld [vmem:[%s2] sm:$0x1]
        %v847 = vlaneseq
        %v848 = vshrl.u32 %v847, 7
        %v849 = vsub.s32 0, %v848
        %v850 = vrot.slane %v845, %v849
        %vm852 = vcmask 31744
        %v854 = vsel %vm852, %v842, 0
        %v857 = vsel %vm852, %v843, 0
        %vm859 = vcmask 1043456
        %v861 = vsel %vm859, %v844, 0
        %863 = vmatprep.subr.mxu0 0.0
        %864 = vmatpush1.msra.mxu0 %v861
        %865 = vmatprep.subr.mxu0 0.0
        %866 = vmatpush1.msra.mxu0 0.0
        %867 = vmatprep.subr.mxu0 0.0
        %868 = vmatpush1.msra.mxu0 0.0
        %869 = vmatprep.subr.mxu0 0.0
        %870 = vmatpush1.msra.mxu0 0.0
        %871 = vmatprep.subr.mxu0 0.0
        %872 = vmatpush1.msra.mxu0 0.0
        %873 = vmatprep.subr.mxu0 0.0
        %874 = vmatpush1.msra.mxu0 0.0
        %875 = vmatprep.subr.mxu0 0.0
        %876 = vmatpush1.msra.mxu0 0.0
        %877 = vmatprep.subr.mxu0 0.0
        %878 = vmatpush1.msra.mxu0 0.0
        %879 = vmatprep.subr.mxu0 0.0
        %880 = vmatpush1.msra.mxu0 0.0
        %881 = vmatprep.subr.mxu0 0.0
        %882 = vmatpush1.msra.mxu0 0.0
        %883 = vmatprep.subr.mxu0 0.0
        %884 = vmatpush1.msra.mxu0 0.0
        %885 = vmatprep.subr.mxu0 0.0
        %886 = vmatpush1.msra.mxu0 0.0
        %887 = vmatprep.subr.mxu0 0.0
        %888 = vmatpush1.msra.mxu0 0.0
        %889 = vmatprep.subr.mxu0 0.0
        %890 = vmatpush1.msra.mxu0 0.0
        %891 = vmatprep.subr.mxu0 0.0
        %892 = vmatpush1.msra.mxu0 0.0
        %893 = vmatprep.subr.mxu0 0.0
        %894 = vmatpush1.msra.mxu0 0.0
        %895 = vmatprep.subr.mxu0 0.0
        %896 = vmatpush1.msra.mxu0 0.0
        %897 = vmatprep.subr.mxu0 0.0
        %898 = vmatpush1.msra.mxu0 0.0
        %899 = vmatprep.subr.mxu0 0.0
        %900 = vmatpush1.msra.mxu0 0.0
        %901 = vmatprep.subr.mxu0 0.0
        %902 = vmatpush1.msra.mxu0 0.0
        %903 = vmatprep.subr.mxu0 0.0
        %904 = vmatpush1.msra.mxu0 0.0
        %905 = vmatprep.subr.mxu0 0.0
        %906 = vmatpush1.msra.mxu0 0.0
        %907 = vmatprep.subr.mxu0 0.0
        %908 = vmatpush1.msra.mxu0 0.0
        %909 = vmatprep.subr.mxu0 0.0
        %910 = vmatpush1.msra.mxu0 0.0
        %911 = vmatprep.subr.mxu0 0.0
        %912 = vmatpush1.msra.mxu0 0.0
        %913 = vmatprep.subr.mxu0 0.0
        %914 = vmatpush1.msra.mxu0 0.0
        %915 = vmatprep.subr.mxu0 0.0
        %916 = vmatpush1.msra.mxu0 0.0
        %917 = vmatprep.subr.mxu0 0.0
        %918 = vmatpush1.msra.mxu0 0.0
        %919 = vmatprep.subr.mxu0 0.0
        %920 = vmatpush1.msra.mxu0 0.0
        %921 = vmatprep.subr.mxu0 0.0
        %922 = vmatpush1.msra.mxu0 0.0
        %923 = vmatprep.subr.mxu0 0.0
        %924 = vmatpush1.msra.mxu0 0.0
        %925 = vmatprep.subr.mxu0 0.0
        %926 = vmatpush1.msra.mxu0 0.0
        %927 = vmatprep.mubr.f32.mxu0 0.0
        %928 = vmatmul.mubr.f32.gmra.mrb[0].mxu0 %v854
        %v929 = vpop.f32.mrb[0].mxu0
        %v930 = vadd.f32 %v850, %v929
        %v931 = vpop.f32.mrb[0].mxu0
        %932 = vmatprep.mubr.f32.mxu0 0.0
        %933 = vmatmul.mubr.f32.gmra.mrb[0].mxu0 %v857
        %v934 = vpop.f32.mrb[0].mxu0
        %v935 = vadd.f32 %v850, %v934
        %v936 = vpop.f32.mrb[0].mxu0
        %937 = vdwg.mxu0
        %vm938 = vcmask 261120
        %939 = vst.msk [vmem:[#allocation2] sm:$0xff] %vm938, %v930
        %940 = vst.msk [vmem:[#allocation2 + $0x8] sm:$0xff] %vm938, %v935
      $region104: #{encoder_forward.1} parent=99 // pred_fallthru
        _
      %v941 = vld [vmem:[#allocation2] sm:$0xff]
      %v942 = vld [vmem:[#allocation2 + $0x8] sm:$0xff]
      %vm943 = vcmask 261120
      %v944 = vsel %vm943, %v941, 0.0
      %945 = vadd.xlane.f32.xlu0 %v944
      %v946 = vpop.xlane.xlu0 %945
      %v947 = vsel %vm943, %v942, 0.0
      %948 = vadd.xlane.f32.xlu0 %v947
      %v949 = vpop.xlane.xlu0 %948
      %v950 = vrcp.pop 32.0
      %v951 = vmul.f32 %v946, %v950
      %v952 = vmul.f32 %v949, %v950
      %v953 = vsub.f32 %v941, %v951
      %v954 = vsub.f32 %v942, %v952
      %v955 = vmul.f32 %v953, %v953
      %v956 = vmul.f32 %v954, %v954
      %v957 = vsel %vm943, %v955, 0.0
      %958 = vadd.xlane.f32.xlu0 %v957
      %v959 = vpop.xlane.xlu0 %958
      %v960 = vsel %vm943, %v956, 0.0
      %961 = vadd.xlane.f32.xlu0 %v960
      %v962 = vpop.xlane.xlu0 %961
      %v963 = vmul.f32 %v959, %v950
      %v964 = vmul.f32 %v962, %v950
      %v965 = vadd.f32 %v963, 1e-05
      %v966 = vadd.f32 %v964, 1e-05
      %v967 = vrsqrt.pop %v965
      %v968 = vrsqrt.pop %v966
      %v969 = vmul.f32 %v953, %v967
      %v970 = vmul.f32 %v954, %v968
      %v971 = vld [vmem:[%s806] sm:$0x1]
      %v973 = vlaneseq
      %v974 = vshrl.u32 %v973, 7
      %v975 = vsub.s32 0, %v974
      %v976 = vrot.slane %v971, %v975
      %v978 = vmul.f32 %v969, %v976
      %v979 = vmul.f32 %v970, %v976
      %v980 = vld [vmem:[%s809] sm:$0x1]
      %v982 = vlaneseq
      %v983 = vshrl.u32 %v982, 7
      %v984 = vsub.s32 0, %v983
      %v985 = vrot.slane %v980, %v984
      %v987 = vadd.f32 %v978, %v985
      %v988 = vadd.f32 %v979, %v985
      %v989 = vpack.c.bf16 %v988, %v987
      %v990 = vld [vmem:[%s792] sm:$0xf]
      %v991 = vld [vmem:[%s792 + $0x4] sm:$0xf]
      %v992 = vld [vmem:[%s792 + $0x8] sm:$0xf]
      %v993 = vld [vmem:[%s792 + $0xc] sm:$0xf]
      %v994 = vld [vmem:[%s795] sm:$0x1]
      %v996 = vlaneseq
      %v997 = vshrl.u32 %v996, 7
      %v998 = vsub.s32 0, %v997
      %v999 = vrot.slane %v994, %v998
      %v1005 = vunpack.c.l.b16 %v990
      %v1006 = vunpack.c.l.b16 %v991
      %v1007 = vunpack.c.l.b16 %v992
      %v1008 = vunpack.c.l.b16 %v993
      %v1009 = vpack.c.b16 %v1006, %v1005
      %v1010 = vpack.c.b16 %v1008, %v1007
      %v1014 = vsel %vm943, %v989, 0
      %1016 = vmatprep.subr.bf16.mxu0 0
      %1017 = vmatpush1.bf16.msra.mxu0 %v1009
      %1018 = vmatprep.subr.bf16.mxu0 0
      %1019 = vmatpush1.bf16.msra.mxu0 %v1010
      %1020 = vmatprep.subr.bf16.mxu0 0
      %1021 = vmatpush1.bf16.msra.mxu0 0
      %1022 = vmatprep.subr.bf16.mxu0 0
      %1023 = vmatpush1.bf16.msra.mxu0 0
      %1024 = vmatprep.subr.bf16.mxu0 0
      %1025 = vmatpush1.bf16.msra.mxu0 0
      %1026 = vmatprep.subr.bf16.mxu0 0
      %1027 = vmatpush1.bf16.msra.mxu0 0
      %1028 = vmatprep.subr.bf16.mxu0 0
      %1029 = vmatpush1.bf16.msra.mxu0 0
      %1030 = vmatprep.subr.bf16.mxu0 0
      %1031 = vmatpush1.bf16.msra.mxu0 0
      %1032 = vmatprep.subr.bf16.mxu0 0
      %1033 = vmatpush1.bf16.msra.mxu0 0
      %1034 = vmatprep.subr.bf16.mxu0 0
      %1035 = vmatpush1.bf16.msra.mxu0 0
      %1036 = vmatprep.subr.bf16.mxu0 0
      %1037 = vmatpush1.bf16.msra.mxu0 0
      %1038 = vmatprep.subr.bf16.mxu0 0
      %1039 = vmatpush1.bf16.msra.mxu0 0
      %1040 = vmatprep.subr.bf16.mxu0 0
      %1041 = vmatpush1.bf16.msra.mxu0 0
      %1042 = vmatprep.subr.bf16.mxu0 0
      %1043 = vmatpush1.bf16.msra.mxu0 0
      %1044 = vmatprep.subr.bf16.mxu0 0
      %1045 = vmatpush1.bf16.msra.mxu0 0
      %1046 = vmatprep.subr.bf16.mxu0 0
      %1047 = vmatpush1.bf16.msra.mxu0 0
      %1048 = vmatprep.mubr.bf16.mxu0 0
      %1049 = vmatmul.mubr.bf16.gmra.mrb[0].mxu0 %v1014
      %v1050 = vpop.f32.mrb[0].mxu0
      %v1051 = vadd.f32 %v999, %v1050
      %v1052 = vpop.f32.mrb[0].mxu0
      %v1053 = vpop.f32.mrb[0].mxu0
      %v1054 = vadd.f32 %v999, %v1053
      %v1055 = vpop.f32.mrb[0].mxu0
      %1056 = vdwg.mxu0
      %vm1057 = vcmask 1048320
      %1058 = vrot.lane.b32.xlu0 %v1051, 96
      %v1059 = vpop.permute.xlu0 %1058
      %v1060 = vsel %vm1057, %v1059, %v1051
      %1061 = vrot.lane.b32.xlu0 %v1054, 96
      %v1062 = vpop.permute.xlu0 %1061
      %v1063 = vsel %vm1057, %v1062, %v1054
      %1064 = vrot.lane.b32.xlu0 %v1060, 96
      %v1065 = vpop.permute.xlu0 %1064
      %1066 = vrot.lane.b32.xlu0 %v1063, 96
      %v1067 = vpop.permute.xlu0 %1066
      %v1068 = vsel %vm1057, %v1065, %v1051
      %v1069 = vsel %vm1057, %v1067, %v1054
      %v1070 = vld [vmem:[%s15] sm:$0xff]
      %v1071 = vmul.f32 %v1051, %v1070
      %v1072 = vmul.f32 %v1054, %v1070
      %v1073 = vld [vmem:[%s16] sm:$0xff]
      %1075 = vrot.lane.b32.xlu0 %v1073, 1
      %v1076 = vpop.permute.xlu0 %1075
      %v1078 = vmul.f32 %v1068, %v1076
      %v1079 = vmul.f32 %v1069, %v1076
      %1082 = vrot.lane.b32.xlu0 %v1078, 127
      %v1083 = vpop.permute.xlu0 %1082
      %1084 = vrot.lane.b32.xlu0 %v1079, 127
      %v1085 = vpop.permute.xlu0 %1084
      %v1088 = vadd.f32 %v1071, %v1083
      %v1089 = vadd.f32 %v1072, %v1085
      %v1090 = vld [vmem:[%s17] sm:$0xff]
      %1092 = vrot.lane.b32.xlu0 %v1090, 95
      %v1093 = vpop.permute.xlu0 %1092
      %v1095 = vmul.f32 %v1068, %v1093
      %v1096 = vmul.f32 %v1065, %v1093
      %v1097 = vmul.f32 %v1069, %v1093
      %v1098 = vmul.f32 %v1067, %v1093
      %1103 = vrot.lane.b32.xlu0 %v1095, 33
      %v1104 = vpop.permute.xlu0 %1103
      %1105 = vrot.lane.b32.xlu0 %v1096, 33
      %v1106 = vpop.permute.xlu0 %1105
      %1107 = vrot.lane.b32.xlu0 %v1097, 33
      %v1108 = vpop.permute.xlu0 %1107
      %1109 = vrot.lane.b32.xlu0 %v1098, 33
      %v1110 = vpop.permute.xlu0 %1109
      %vm1111 = vcmask 269312
      %v1112 = vsel %vm1111, %v1104, %v1106
      %v1113 = vsel %vm1111, %v1108, %v1110
      %v1116 = vadd.f32 %v1088, %v1112
      %v1117 = vadd.f32 %v1089, %v1113
      %v1118 = vpack.c.bf16 %v1117, %v1116
      %1120 = vrot.lane.b32.xlu0 %v1118, 96
      %v1121 = vpop.permute.xlu0 %1120
      %vm1122 = vcmask 64512
      %v1124 = vsel %vm1122, %v1118, 0
      %v1127 = vsel %vm1122, %v1121, 0
      %1129 = vmatprep.subr.bf16.mxu0 0
      %1130 = vmatpush1.bf16.xpose.msra.mxu0 %v1127
      %1131 = vmatprep.subr.bf16.mxu0 0
      %1132 = vmatpush1.bf16.xpose.msra.mxu0 0
      %1133 = vmatprep.subr.bf16.mxu0 0
      %1134 = vmatpush1.bf16.xpose.msra.mxu0 0
      %1135 = vmatprep.subr.bf16.mxu0 0
      %1136 = vmatpush1.bf16.xpose.msra.mxu0 0
      %1137 = vmatprep.subr.bf16.mxu0 0
      %1138 = vmatpush1.bf16.xpose.msra.mxu0 0
      %1139 = vmatprep.subr.bf16.mxu0 0
      %1140 = vmatpush1.bf16.xpose.msra.mxu0 0
      %1141 = vmatprep.subr.bf16.mxu0 0
      %1142 = vmatpush1.bf16.xpose.msra.mxu0 0
      %1143 = vmatprep.subr.bf16.mxu0 0
      %1144 = vmatpush1.bf16.xpose.msra.mxu0 0
      %1145 = vmatprep.subr.bf16.mxu0 0
      %1146 = vmatpush1.bf16.xpose.msra.mxu0 0
      %1147 = vmatprep.subr.bf16.mxu0 0
      %1148 = vmatpush1.bf16.xpose.msra.mxu0 0
      %1149 = vmatprep.subr.bf16.mxu0 0
      %1150 = vmatpush1.bf16.xpose.msra.mxu0 0
      %1151 = vmatprep.subr.bf16.mxu0 0
      %1152 = vmatpush1.bf16.xpose.msra.mxu0 0
      %1153 = vmatprep.subr.bf16.mxu0 0
      %1154 = vmatpush1.bf16.xpose.msra.mxu0 0
      %1155 = vmatprep.subr.bf16.mxu0 0
      %1156 = vmatpush1.bf16.xpose.msra.mxu0 0
      %1157 = vmatprep.subr.bf16.mxu0 0
      %1158 = vmatpush1.bf16.xpose.msra.mxu0 0
      %1159 = vmatprep.subr.bf16.mxu0 0
      %1160 = vmatpush1.bf16.xpose.msra.mxu0 0
      %1161 = vmatprep.mubr.bf16.mxu0 0
      %1162 = vmatmul.mubr.bf16.gmra.mrb[0].mxu0 %v1124
      %v1163 = vpop.f32.mrb[0].mxu0
      %v1164 = vadd.f32 0.0, %v1163
      %v1165 = vpop.f32.mrb[0].mxu0
      %v1166 = vpop.f32.mrb[0].mxu0
      %v1167 = vpop.f32.mrb[0].mxu0
      %1168 = vdwg.mxu0
      %1169 = vrot.lane.b32.xlu0 %v1118, 120
      %v1170 = vpop.permute.xlu0 %1169
      %1171 = vrot.lane.b32.xlu0 %v1118, 88
      %v1172 = vpop.permute.xlu0 %1171
      %v1174 = vsel %vm1122, %v1170, 0
      %v1177 = vsel %vm1122, %v1172, 0
      %1179 = vmatprep.subr.bf16.mxu0 0
      %1180 = vmatpush1.bf16.xpose.msra.mxu0 %v1177
      %1181 = vmatprep.subr.bf16.mxu0 0
      %1182 = vmatpush1.bf16.xpose.msra.mxu0 0
      %1183 = vmatprep.subr.bf16.mxu0 0
      %1184 = vmatpush1.bf16.xpose.msra.mxu0 0
      %1185 = vmatprep.subr.bf16.mxu0 0
      %1186 = vmatpush1.bf16.xpose.msra.mxu0 0
      %1187 = vmatprep.subr.bf16.mxu0 0
      %1188 = vmatpush1.bf16.xpose.msra.mxu0 0
      %1189 = vmatprep.subr.bf16.mxu0 0
      %1190 = vmatpush1.bf16.xpose.msra.mxu0 0
      %1191 = vmatprep.subr.bf16.mxu0 0
      %1192 = vmatpush1.bf16.xpose.msra.mxu0 0
      %1193 = vmatprep.subr.bf16.mxu0 0
      %1194 = vmatpush1.bf16.xpose.msra.mxu0 0
      %1195 = vmatprep.subr.bf16.mxu0 0
      %1196 = vmatpush1.bf16.xpose.msra.mxu0 0
      %1197 = vmatprep.subr.bf16.mxu0 0
      %1198 = vmatpush1.bf16.xpose.msra.mxu0 0
      %1199 = vmatprep.subr.bf16.mxu0 0
      %1200 = vmatpush1.bf16.xpose.msra.mxu0 0
      %1201 = vmatprep.subr.bf16.mxu0 0
      %1202 = vmatpush1.bf16.xpose.msra.mxu0 0
      %1203 = vmatprep.subr.bf16.mxu0 0
      %1204 = vmatpush1.bf16.xpose.msra.mxu0 0
      %1205 = vmatprep.subr.bf16.mxu0 0
      %1206 = vmatpush1.bf16.xpose.msra.mxu0 0
      %1207 = vmatprep.subr.bf16.mxu0 0
      %1208 = vmatpush1.bf16.xpose.msra.mxu0 0
      %1209 = vmatprep.subr.bf16.mxu0 0
      %1210 = vmatpush1.bf16.xpose.msra.mxu0 0
      %1211 = vmatprep.mubr.bf16.mxu0 0
      %1212 = vmatmul.mubr.bf16.gmra.mrb[0].mxu0 %v1174
      %v1213 = vpop.f32.mrb[0].mxu0
      %v1214 = vadd.f32 0.0, %v1213
      %v1215 = vpop.f32.mrb[0].mxu0
      %v1216 = vpop.f32.mrb[0].mxu0
      %v1217 = vpop.f32.mrb[0].mxu0
      %1218 = vdwg.mxu0
      %1219 = vrot.lane.b32.xlu0 %v1118, 112
      %v1220 = vpop.permute.xlu0 %1219
      %1221 = vrot.lane.b32.xlu0 %v1118, 80
      %v1222 = vpop.permute.xlu0 %1221
      %v1224 = vsel %vm1122, %v1220, 0
      %v1227 = vsel %vm1122, %v1222, 0
      %1229 = vmatprep.subr.bf16.mxu0 0
      %1230 = vmatpush1.bf16.xpose.msra.mxu0 %v1227
      %1231 = vmatprep.subr.bf16.mxu0 0
      %1232 = vmatpush1.bf16.xpose.msra.mxu0 0
      %1233 = vmatprep.subr.bf16.mxu0 0
      %1234 = vmatpush1.bf16.xpose.msra.mxu0 0
      %1235 = vmatprep.subr.bf16.mxu0 0
      %1236 = vmatpush1.bf16.xpose.msra.mxu0 0
      %1237 = vmatprep.subr.bf16.mxu0 0
      %1238 = vmatpush1.bf16.xpose.msra.mxu0 0
      %1239 = vmatprep.subr.bf16.mxu0 0
      %1240 = vmatpush1.bf16.xpose.msra.mxu0 0
      %1241 = vmatprep.subr.bf16.mxu0 0
      %1242 = vmatpush1.bf16.xpose.msra.mxu0 0
      %1243 = vmatprep.subr.bf16.mxu0 0
      %1244 = vmatpush1.bf16.xpose.msra.mxu0 0
      %1245 = vmatprep.subr.bf16.mxu0 0
      %1246 = vmatpush1.bf16.xpose.msra.mxu0 0
      %1247 = vmatprep.subr.bf16.mxu0 0
      %1248 = vmatpush1.bf16.xpose.msra.mxu0 0
      %1249 = vmatprep.subr.bf16.mxu0 0
      %1250 = vmatpush1.bf16.xpose.msra.mxu0 0
      %1251 = vmatprep.subr.bf16.mxu0 0
      %1252 = vmatpush1.bf16.xpose.msra.mxu0 0
      %1253 = vmatprep.subr.bf16.mxu0 0
      %1254 = vmatpush1.bf16.xpose.msra.mxu0 0
      %1255 = vmatprep.subr.bf16.mxu0 0
      %1256 = vmatpush1.bf16.xpose.msra.mxu0 0
      %1257 = vmatprep.subr.bf16.mxu0 0
      %1258 = vmatpush1.bf16.xpose.msra.mxu0 0
      %1259 = vmatprep.subr.bf16.mxu0 0
      %1260 = vmatpush1.bf16.xpose.msra.mxu0 0
      %1261 = vmatprep.mubr.bf16.mxu0 0
      %1262 = vmatmul.mubr.bf16.gmra.mrb[0].mxu0 %v1224
      %v1263 = vpop.f32.mrb[0].mxu0
      %v1264 = vadd.f32 0.0, %v1263
      %v1265 = vpop.f32.mrb[0].mxu0
      %v1266 = vpop.f32.mrb[0].mxu0
      %v1267 = vpop.f32.mrb[0].mxu0
      %1268 = vdwg.mxu0
      %1269 = vrot.lane.b32.xlu0 %v1118, 104
      %v1270 = vpop.permute.xlu0 %1269
      %1271 = vrot.lane.b32.xlu0 %v1118, 72
      %v1272 = vpop.permute.xlu0 %1271
      %v1274 = vsel %vm1122, %v1270, 0
      %v1277 = vsel %vm1122, %v1272, 0
      %1279 = vmatprep.subr.bf16.mxu0 0
      %1280 = vmatpush1.bf16.xpose.msra.mxu0 %v1277
      %1281 = vmatprep.subr.bf16.mxu0 0
      %1282 = vmatpush1.bf16.xpose.msra.mxu0 0
      %1283 = vmatprep.subr.bf16.mxu0 0
      %1284 = vmatpush1.bf16.xpose.msra.mxu0 0
      %1285 = vmatprep.subr.bf16.mxu0 0
      %1286 = vmatpush1.bf16.xpose.msra.mxu0 0
      %1287 = vmatprep.subr.bf16.mxu0 0
      %1288 = vmatpush1.bf16.xpose.msra.mxu0 0
      %1289 = vmatprep.subr.bf16.mxu0 0
      %1290 = vmatpush1.bf16.xpose.msra.mxu0 0
      %1291 = vmatprep.subr.bf16.mxu0 0
      %1292 = vmatpush1.bf16.xpose.msra.mxu0 0
      %1293 = vmatprep.subr.bf16.mxu0 0
      %1294 = vmatpush1.bf16.xpose.msra.mxu0 0
      %1295 = vmatprep.subr.bf16.mxu0 0
      %1296 = vmatpush1.bf16.xpose.msra.mxu0 0
      %1297 = vmatprep.subr.bf16.mxu0 0
      %1298 = vmatpush1.bf16.xpose.msra.mxu0 0
      %1299 = vmatprep.subr.bf16.mxu0 0
      %1300 = vmatpush1.bf16.xpose.msra.mxu0 0
      %1301 = vmatprep.subr.bf16.mxu0 0
      %1302 = vmatpush1.bf16.xpose.msra.mxu0 0
      %1303 = vmatprep.subr.bf16.mxu0 0
      %1304 = vmatpush1.bf16.xpose.msra.mxu0 0
      %1305 = vmatprep.subr.bf16.mxu0 0
      %1306 = vmatpush1.bf16.xpose.msra.mxu0 0
      %1307 = vmatprep.subr.bf16.mxu0 0
      %1308 = vmatpush1.bf16.xpose.msra.mxu0 0
      %1309 = vmatprep.subr.bf16.mxu0 0
      %1310 = vmatpush1.bf16.xpose.msra.mxu0 0
      %1311 = vmatprep.mubr.bf16.mxu0 0
      %1312 = vmatmul.mubr.bf16.gmra.mrb[0].mxu0 %v1274
      %v1313 = vpop.f32.mrb[0].mxu0
      %v1314 = vadd.f32 0.0, %v1313
      %v1315 = vpop.f32.mrb[0].mxu0
      %v1316 = vpop.f32.mrb[0].mxu0
      %v1317 = vpop.f32.mrb[0].mxu0
      %1318 = vdwg.mxu0
      %v1319 = vrot.slane %v1118, 4
      %1320 = vrot.lane.b32.xlu0 %v1319, 96
      %v1321 = vpop.permute.xlu0 %1320
      %v1323 = vsel %vm1122, %v1319, 0
      %v1326 = vsel %vm1122, %v1321, 0
      %1328 = vmatprep.subr.bf16.mxu0 0
      %1329 = vmatpush1.bf16.xpose.msra.mxu0 %v1326
      %1330 = vmatprep.subr.bf16.mxu0 0
      %1331 = vmatpush1.bf16.xpose.msra.mxu0 0
      %1332 = vmatprep.subr.bf16.mxu0 0
      %1333 = vmatpush1.bf16.xpose.msra.mxu0 0
      %1334 = vmatprep.subr.bf16.mxu0 0
      %1335 = vmatpush1.bf16.xpose.msra.mxu0 0
      %1336 = vmatprep.subr.bf16.mxu0 0
      %1337 = vmatpush1.bf16.xpose.msra.mxu0 0
      %1338 = vmatprep.subr.bf16.mxu0 0
      %1339 = vmatpush1.bf16.xpose.msra.mxu0 0
      %1340 = vmatprep.subr.bf16.mxu0 0
      %1341 = vmatpush1.bf16.xpose.msra.mxu0 0
      %1342 = vmatprep.subr.bf16.mxu0 0
      %1343 = vmatpush1.bf16.xpose.msra.mxu0 0
      %1344 = vmatprep.subr.bf16.mxu0 0
      %1345 = vmatpush1.bf16.xpose.msra.mxu0 0
      %1346 = vmatprep.subr.bf16.mxu0 0
      %1347 = vmatpush1.bf16.xpose.msra.mxu0 0
      %1348 = vmatprep.subr.bf16.mxu0 0
      %1349 = vmatpush1.bf16.xpose.msra.mxu0 0
      %1350 = vmatprep.subr.bf16.mxu0 0
      %1351 = vmatpush1.bf16.xpose.msra.mxu0 0
      %1352 = vmatprep.subr.bf16.mxu0 0
      %1353 = vmatpush1.bf16.xpose.msra.mxu0 0
      %1354 = vmatprep.subr.bf16.mxu0 0
      %1355 = vmatpush1.bf16.xpose.msra.mxu0 0
      %1356 = vmatprep.subr.bf16.mxu0 0
      %1357 = vmatpush1.bf16.xpose.msra.mxu0 0
      %1358 = vmatprep.subr.bf16.mxu0 0
      %1359 = vmatpush1.bf16.xpose.msra.mxu0 0
      %1360 = vmatprep.mubr.bf16.mxu0 0
      %1361 = vmatmul.mubr.bf16.gmra.mrb[0].mxu0 %v1323
      %v1362 = vpop.f32.mrb[0].mxu0
      %v1363 = vadd.f32 0.0, %v1362
      %v1364 = vpop.f32.mrb[0].mxu0
      %v1365 = vpop.f32.mrb[0].mxu0
      %v1366 = vpop.f32.mrb[0].mxu0
      %1367 = vdwg.mxu0
      %1368 = vrot.lane.b32.xlu0 %v1319, 120
      %v1369 = vpop.permute.xlu0 %1368
      %1370 = vrot.lane.b32.xlu0 %v1319, 88
      %v1371 = vpop.permute.xlu0 %1370
      %v1373 = vsel %vm1122, %v1369, 0
      %v1376 = vsel %vm1122, %v1371, 0
      %1378 = vmatprep.subr.bf16.mxu0 0
      %1379 = vmatpush1.bf16.xpose.msra.mxu0 %v1376
      %1380 = vmatprep.subr.bf16.mxu0 0
      %1381 = vmatpush1.bf16.xpose.msra.mxu0 0
      %1382 = vmatprep.subr.bf16.mxu0 0
      %1383 = vmatpush1.bf16.xpose.msra.mxu0 0
      %1384 = vmatprep.subr.bf16.mxu0 0
      %1385 = vmatpush1.bf16.xpose.msra.mxu0 0
      %1386 = vmatprep.subr.bf16.mxu0 0
      %1387 = vmatpush1.bf16.xpose.msra.mxu0 0
      %1388 = vmatprep.subr.bf16.mxu0 0
      %1389 = vmatpush1.bf16.xpose.msra.mxu0 0
      %1390 = vmatprep.subr.bf16.mxu0 0
      %1391 = vmatpush1.bf16.xpose.msra.mxu0 0
      %1392 = vmatprep.subr.bf16.mxu0 0
      %1393 = vmatpush1.bf16.xpose.msra.mxu0 0
      %1394 = vmatprep.subr.bf16.mxu0 0
      %1395 = vmatpush1.bf16.xpose.msra.mxu0 0
      %1396 = vmatprep.subr.bf16.mxu0 0
      %1397 = vmatpush1.bf16.xpose.msra.mxu0 0
      %1398 = vmatprep.subr.bf16.mxu0 0
      %1399 = vmatpush1.bf16.xpose.msra.mxu0 0
      %1400 = vmatprep.subr.bf16.mxu0 0
      %1401 = vmatpush1.bf16.xpose.msra.mxu0 0
      %1402 = vmatprep.subr.bf16.mxu0 0
      %1403 = vmatpush1.bf16.xpose.msra.mxu0 0
      %1404 = vmatprep.subr.bf16.mxu0 0
      %1405 = vmatpush1.bf16.xpose.msra.mxu0 0
      %1406 = vmatprep.subr.bf16.mxu0 0
      %1407 = vmatpush1.bf16.xpose.msra.mxu0 0
      %1408 = vmatprep.subr.bf16.mxu0 0
      %1409 = vmatpush1.bf16.xpose.msra.mxu0 0
      %1410 = vmatprep.mubr.bf16.mxu0 0
      %1411 = vmatmul.mubr.bf16.gmra.mrb[0].mxu0 %v1373
      %v1412 = vpop.f32.mrb[0].mxu0
      %v1413 = vadd.f32 0.0, %v1412
      %v1414 = vpop.f32.mrb[0].mxu0
      %v1415 = vpop.f32.mrb[0].mxu0
      %v1416 = vpop.f32.mrb[0].mxu0
      %1417 = vdwg.mxu0
      %1418 = vrot.lane.b32.xlu0 %v1319, 112
      %v1419 = vpop.permute.xlu0 %1418
      %1420 = vrot.lane.b32.xlu0 %v1319, 80
      %v1421 = vpop.permute.xlu0 %1420
      %v1423 = vsel %vm1122, %v1419, 0
      %v1426 = vsel %vm1122, %v1421, 0
      %1428 = vmatprep.subr.bf16.mxu0 0
      %1429 = vmatpush1.bf16.xpose.msra.mxu0 %v1426
      %1430 = vmatprep.subr.bf16.mxu0 0
      %1431 = vmatpush1.bf16.xpose.msra.mxu0 0
      %1432 = vmatprep.subr.bf16.mxu0 0
      %1433 = vmatpush1.bf16.xpose.msra.mxu0 0
      %1434 = vmatprep.subr.bf16.mxu0 0
      %1435 = vmatpush1.bf16.xpose.msra.mxu0 0
      %1436 = vmatprep.subr.bf16.mxu0 0
      %1437 = vmatpush1.bf16.xpose.msra.mxu0 0
      %1438 = vmatprep.subr.bf16.mxu0 0
      %1439 = vmatpush1.bf16.xpose.msra.mxu0 0
      %1440 = vmatprep.subr.bf16.mxu0 0
      %1441 = vmatpush1.bf16.xpose.msra.mxu0 0
      %1442 = vmatprep.subr.bf16.mxu0 0
      %1443 = vmatpush1.bf16.xpose.msra.mxu0 0
      %1444 = vmatprep.subr.bf16.mxu0 0
      %1445 = vmatpush1.bf16.xpose.msra.mxu0 0
      %1446 = vmatprep.subr.bf16.mxu0 0
      %1447 = vmatpush1.bf16.xpose.msra.mxu0 0
      %1448 = vmatprep.subr.bf16.mxu0 0
      %1449 = vmatpush1.bf16.xpose.msra.mxu0 0
      %1450 = vmatprep.subr.bf16.mxu0 0
      %1451 = vmatpush1.bf16.xpose.msra.mxu0 0
      %1452 = vmatprep.subr.bf16.mxu0 0
      %1453 = vmatpush1.bf16.xpose.msra.mxu0 0
      %1454 = vmatprep.subr.bf16.mxu0 0
      %1455 = vmatpush1.bf16.xpose.msra.mxu0 0
      %1456 = vmatprep.subr.bf16.mxu0 0
      %1457 = vmatpush1.bf16.xpose.msra.mxu0 0
      %1458 = vmatprep.subr.bf16.mxu0 0
      %1459 = vmatpush1.bf16.xpose.msra.mxu0 0
      %1460 = vmatprep.mubr.bf16.mxu0 0
      %1461 = vmatmul.mubr.bf16.gmra.mrb[0].mxu0 %v1423
      %v1462 = vpop.f32.mrb[0].mxu0
      %v1463 = vadd.f32 0.0, %v1462
      %v1464 = vpop.f32.mrb[0].mxu0
      %v1465 = vpop.f32.mrb[0].mxu0
      %v1466 = vpop.f32.mrb[0].mxu0
      %1467 = vdwg.mxu0
      %1468 = vrot.lane.b32.xlu0 %v1319, 104
      %v1469 = vpop.permute.xlu0 %1468
      %1470 = vrot.lane.b32.xlu0 %v1319, 72
      %v1471 = vpop.permute.xlu0 %1470
      %v1473 = vsel %vm1122, %v1469, 0
      %v1476 = vsel %vm1122, %v1471, 0
      %1478 = vmatprep.subr.bf16.mxu0 0
      %1479 = vmatpush1.bf16.xpose.msra.mxu0 %v1476
      %1480 = vmatprep.subr.bf16.mxu0 0
      %1481 = vmatpush1.bf16.xpose.msra.mxu0 0
      %1482 = vmatprep.subr.bf16.mxu0 0
      %1483 = vmatpush1.bf16.xpose.msra.mxu0 0
      %1484 = vmatprep.subr.bf16.mxu0 0
      %1485 = vmatpush1.bf16.xpose.msra.mxu0 0
      %1486 = vmatprep.subr.bf16.mxu0 0
      %1487 = vmatpush1.bf16.xpose.msra.mxu0 0
      %1488 = vmatprep.subr.bf16.mxu0 0
      %1489 = vmatpush1.bf16.xpose.msra.mxu0 0
      %1490 = vmatprep.subr.bf16.mxu0 0
      %1491 = vmatpush1.bf16.xpose.msra.mxu0 0
      %1492 = vmatprep.subr.bf16.mxu0 0
      %1493 = vmatpush1.bf16.xpose.msra.mxu0 0
      %1494 = vmatprep.subr.bf16.mxu0 0
      %1495 = vmatpush1.bf16.xpose.msra.mxu0 0
      %1496 = vmatprep.subr.bf16.mxu0 0
      %1497 = vmatpush1.bf16.xpose.msra.mxu0 0
      %1498 = vmatprep.subr.bf16.mxu0 0
      %1499 = vmatpush1.bf16.xpose.msra.mxu0 0
      %1500 = vmatprep.subr.bf16.mxu0 0
      %1501 = vmatpush1.bf16.xpose.msra.mxu0 0
      %1502 = vmatprep.subr.bf16.mxu0 0
      %1503 = vmatpush1.bf16.xpose.msra.mxu0 0
      %1504 = vmatprep.subr.bf16.mxu0 0
      %1505 = vmatpush1.bf16.xpose.msra.mxu0 0
      %1506 = vmatprep.subr.bf16.mxu0 0
      %1507 = vmatpush1.bf16.xpose.msra.mxu0 0
      %1508 = vmatprep.subr.bf16.mxu0 0
      %1509 = vmatpush1.bf16.xpose.msra.mxu0 0
      %1510 = vmatprep.mubr.bf16.mxu0 0
      %1511 = vmatmul.mubr.bf16.gmra.mrb[0].mxu0 %v1473
      %v1512 = vpop.f32.mrb[0].mxu0
      %v1513 = vadd.f32 0.0, %v1512
      %v1514 = vpop.f32.mrb[0].mxu0
      %v1515 = vpop.f32.mrb[0].mxu0
      %v1516 = vpop.f32.mrb[0].mxu0
      %1517 = vdwg.mxu0
      %v1518 = vlaneseq
      %v1519 = vshrl.u32 %v1518, 7
      %v1520 = vlaneseq
      %v1521 = vand.u32 %v1520, 127
      %vm1522 = vcmp.le.s32.totalorder %v1521, %v1519
      %v1523 = vsel %vm1522, 1, 0
      %vm1524 = vcmp.eq.s32.totalorder %v1523, 1
      %v1525 = vsel %vm1524, %v1164, -1e+30
      %v1526 = vsel %vm1524, %v1214, -1e+30
      %v1527 = vsel %vm1524, %v1264, -1e+30
      %v1528 = vsel %vm1524, %v1314, -1e+30
      %v1529 = vsel %vm1524, %v1363, -1e+30
      %v1530 = vsel %vm1524, %v1413, -1e+30
      %v1531 = vsel %vm1524, %v1463, -1e+30
      %v1532 = vsel %vm1524, %v1513, -1e+30
      %v1533 = vsel %vm1122, %v1525, -inf
      %1534 = vmax.xlane.f32.xlu0 %v1533
      %v1535 = vpop.xlane.xlu0 %1534
      %v1536 = vsel %vm1122, %v1526, -inf
      %1537 = vmax.xlane.f32.xlu0 %v1536
      %v1538 = vpop.xlane.xlu0 %1537
      %v1539 = vsel %vm1122, %v1527, -inf
      %1540 = vmax.xlane.f32.xlu0 %v1539
      %v1541 = vpop.xlane.xlu0 %1540
      %v1542 = vsel %vm1122, %v1528, -inf
      %1543 = vmax.xlane.f32.xlu0 %v1542
      %v1544 = vpop.xlane.xlu0 %1543
      %v1545 = vsel %vm1122, %v1529, -inf
      %1546 = vmax.xlane.f32.xlu0 %v1545
      %v1547 = vpop.xlane.xlu0 %1546
      %v1548 = vsel %vm1122, %v1530, -inf
      %1549 = vmax.xlane.f32.xlu0 %v1548
      %v1550 = vpop.xlane.xlu0 %1549
      %v1551 = vsel %vm1122, %v1531, -inf
      %1552 = vmax.xlane.f32.xlu0 %v1551
      %v1553 = vpop.xlane.xlu0 %1552
      %v1554 = vsel %vm1122, %v1532, -inf
      %1555 = vmax.xlane.f32.xlu0 %v1554
      %v1556 = vpop.xlane.xlu0 %1555
      %v1557 = vsub.f32 %v1525, %v1535
      %v1558 = vsub.f32 %v1526, %v1538
      %v1559 = vsub.f32 %v1527, %v1541
      %v1560 = vsub.f32 %v1528, %v1544
      %v1561 = vsub.f32 %v1529, %v1547
      %v1562 = vsub.f32 %v1530, %v1550
      %v1563 = vsub.f32 %v1531, %v1553
      %v1564 = vsub.f32 %v1532, %v1556
      %v1565 = vmul.f32 %v1557, 1.442695
      %v1566 = vpow.pop %v1565
      %v1567 = vmul.f32 %v1558, 1.442695
      %v1568 = vpow.pop %v1567
      %v1569 = vmul.f32 %v1559, 1.442695
      %v1570 = vpow.pop %v1569
      %v1571 = vmul.f32 %v1560, 1.442695
      %v1572 = vpow.pop %v1571
      %v1573 = vmul.f32 %v1561, 1.442695
      %v1574 = vpow.pop %v1573
      %v1575 = vmul.f32 %v1562, 1.442695
      %v1576 = vpow.pop %v1575
      %v1577 = vmul.f32 %v1563, 1.442695
      %v1578 = vpow.pop %v1577
      %v1579 = vmul.f32 %v1564, 1.442695
      %v1580 = vpow.pop %v1579
      %v1581 = vsel %vm1122, %v1566, 0.0
      %1582 = vadd.xlane.f32.xlu0 %v1581
      %v1583 = vpop.xlane.xlu0 %1582
      %v1584 = vsel %vm1122, %v1568, 0.0
      %1585 = vadd.xlane.f32.xlu0 %v1584
      %v1586 = vpop.xlane.xlu0 %1585
      %v1587 = vsel %vm1122, %v1570, 0.0
      %1588 = vadd.xlane.f32.xlu0 %v1587
      %v1589 = vpop.xlane.xlu0 %1588
      %v1590 = vsel %vm1122, %v1572, 0.0
      %1591 = vadd.xlane.f32.xlu0 %v1590
      %v1592 = vpop.xlane.xlu0 %1591
      %v1593 = vsel %vm1122, %v1574, 0.0
      %1594 = vadd.xlane.f32.xlu0 %v1593
      %v1595 = vpop.xlane.xlu0 %1594
      %v1596 = vsel %vm1122, %v1576, 0.0
      %1597 = vadd.xlane.f32.xlu0 %v1596
      %v1598 = vpop.xlane.xlu0 %1597
      %v1599 = vsel %vm1122, %v1578, 0.0
      %1600 = vadd.xlane.f32.xlu0 %v1599
      %v1601 = vpop.xlane.xlu0 %1600
      %v1602 = vsel %vm1122, %v1580, 0.0
      %1603 = vadd.xlane.f32.xlu0 %v1602
      %v1604 = vpop.xlane.xlu0 %1603
      %v1605 = vrcp.pop %v1583
      %v1606 = vmul.f32 %v1566, %v1605
      %v1607 = vrcp.pop %v1586
      %v1608 = vmul.f32 %v1568, %v1607
      %v1609 = vrcp.pop %v1589
      %v1610 = vmul.f32 %v1570, %v1609
      %v1611 = vrcp.pop %v1592
      %v1612 = vmul.f32 %v1572, %v1611
      %v1613 = vrcp.pop %v1595
      %v1614 = vmul.f32 %v1574, %v1613
      %v1615 = vrcp.pop %v1598
      %v1616 = vmul.f32 %v1576, %v1615
      %v1617 = vrcp.pop %v1601
      %v1618 = vmul.f32 %v1578, %v1617
      %v1619 = vrcp.pop %v1604
      %v1620 = vmul.f32 %v1580, %v1619
      %v1621 = vpack.c.bf16 %v1606, %v1606
      %v1622 = vpack.c.bf16 %v1608, %v1608
      %v1623 = vpack.c.bf16 %v1610, %v1610
      %v1624 = vpack.c.bf16 %v1612, %v1612
      %v1625 = vpack.c.bf16 %v1614, %v1614
      %v1626 = vpack.c.bf16 %v1616, %v1616
      %v1627 = vpack.c.bf16 %v1618, %v1618
      %v1628 = vpack.c.bf16 %v1620, %v1620
      %1629 = vrot.lane.b32.xlu0 %v1118, 64
      %v1630 = vpop.permute.xlu0 %1629
      %v1632 = vsel %vm1122, %v1621, 0
      %vm1634 = vcmask 1043456
      %v1636 = vsel %vm1634, %v1630, 0
      %1638 = vmatprep.subr.bf16.mxu0 0
      %1639 = vmatpush1.bf16.msra.mxu0 %v1636
      %1640 = vmatprep.subr.bf16.mxu0 0
      %1641 = vmatpush1.bf16.msra.mxu0 0
      %1642 = vmatprep.subr.bf16.mxu0 0
      %1643 = vmatpush1.bf16.msra.mxu0 0
      %1644 = vmatprep.subr.bf16.mxu0 0
      %1645 = vmatpush1.bf16.msra.mxu0 0
      %1646 = vmatprep.subr.bf16.mxu0 0
      %1647 = vmatpush1.bf16.msra.mxu0 0
      %1648 = vmatprep.subr.bf16.mxu0 0
      %1649 = vmatpush1.bf16.msra.mxu0 0
      %1650 = vmatprep.subr.bf16.mxu0 0
      %1651 = vmatpush1.bf16.msra.mxu0 0
      %1652 = vmatprep.subr.bf16.mxu0 0
      %1653 = vmatpush1.bf16.msra.mxu0 0
      %1654 = vmatprep.subr.bf16.mxu0 0
      %1655 = vmatpush1.bf16.msra.mxu0 0
      %1656 = vmatprep.subr.bf16.mxu0 0
      %1657 = vmatpush1.bf16.msra.mxu0 0
      %1658 = vmatprep.subr.bf16.mxu0 0
      %1659 = vmatpush1.bf16.msra.mxu0 0
      %1660 = vmatprep.subr.bf16.mxu0 0
      %1661 = vmatpush1.bf16.msra.mxu0 0
      %1662 = vmatprep.subr.bf16.mxu0 0
      %1663 = vmatpush1.bf16.msra.mxu0 0
      %1664 = vmatprep.subr.bf16.mxu0 0
      %1665 = vmatpush1.bf16.msra.mxu0 0
      %1666 = vmatprep.subr.bf16.mxu0 0
      %1667 = vmatpush1.bf16.msra.mxu0 0
      %1668 = vmatprep.subr.bf16.mxu0 0
      %1669 = vmatpush1.bf16.msra.mxu0 0
      %1670 = vmatprep.mubr.bf16.mxu0 0
      %1671 = vmatmul.mubr.bf16.gmra.mrb[0].mxu0 %v1632
      %v1672 = vpop.f32.mrb[0].mxu0
      %v1673 = vadd.f32 0.0, %v1672
      %v1674 = vpop.f32.mrb[0].mxu0
      %v1675 = vpop.f32.mrb[0].mxu0
      %v1676 = vpop.f32.mrb[0].mxu0
      %1677 = vdwg.mxu0
      %1678 = vst.msk [vmem:[#allocation3] sm:$0xff] %vm1122, %v1673
      %1679 = vrot.lane.b32.xlu0 %v1118, 56
      %v1680 = vpop.permute.xlu0 %1679
      %v1682 = vsel %vm1122, %v1622, 0
      %v1685 = vsel %vm1634, %v1680, 0
      %1687 = vmatprep.subr.bf16.mxu0 0
      %1688 = vmatpush1.bf16.msra.mxu0 %v1685
      %1689 = vmatprep.subr.bf16.mxu0 0
      %1690 = vmatpush1.bf16.msra.mxu0 0
      %1691 = vmatprep.subr.bf16.mxu0 0
      %1692 = vmatpush1.bf16.msra.mxu0 0
      %1693 = vmatprep.subr.bf16.mxu0 0
      %1694 = vmatpush1.bf16.msra.mxu0 0
      %1695 = vmatprep.subr.bf16.mxu0 0
      %1696 = vmatpush1.bf16.msra.mxu0 0
      %1697 = vmatprep.subr.bf16.mxu0 0
      %1698 = vmatpush1.bf16.msra.mxu0 0
      %1699 = vmatprep.subr.bf16.mxu0 0
      %1700 = vmatpush1.bf16.msra.mxu0 0
      %1701 = vmatprep.subr.bf16.mxu0 0
      %1702 = vmatpush1.bf16.msra.mxu0 0
      %1703 = vmatprep.subr.bf16.mxu0 0
      %1704 = vmatpush1.bf16.msra.mxu0 0
      %1705 = vmatprep.subr.bf16.mxu0 0
      %1706 = vmatpush1.bf16.msra.mxu0 0
      %1707 = vmatprep.subr.bf16.mxu0 0
      %1708 = vmatpush1.bf16.msra.mxu0 0
      %1709 = vmatprep.subr.bf16.mxu0 0
      %1710 = vmatpush1.bf16.msra.mxu0 0
      %1711 = vmatprep.subr.bf16.mxu0 0
      %1712 = vmatpush1.bf16.msra.mxu0 0
      %1713 = vmatprep.subr.bf16.mxu0 0
      %1714 = vmatpush1.bf16.msra.mxu0 0
      %1715 = vmatprep.subr.bf16.mxu0 0
      %1716 = vmatpush1.bf16.msra.mxu0 0
      %1717 = vmatprep.subr.bf16.mxu0 0
      %1718 = vmatpush1.bf16.msra.mxu0 0
      %1719 = vmatprep.mubr.bf16.mxu0 0
      %1720 = vmatmul.mubr.bf16.gmra.mrb[0].mxu0 %v1682
      %v1721 = vpop.f32.mrb[0].mxu0
      %v1722 = vadd.f32 0.0, %v1721
      %v1723 = vpop.f32.mrb[0].mxu0
      %v1724 = vpop.f32.mrb[0].mxu0
      %v1725 = vpop.f32.mrb[0].mxu0
      %1726 = vdwg.mxu0
      %1728 = vrot.lane.b32.xlu0 %v1722, 8
      %v1729 = vpop.permute.xlu0 %1728
      %vm1731 = vcmask 130112
      %1732 = vst.msk [vmem:[#allocation3] sm:$0xff] %vm1731, %v1729
      %1733 = vrot.lane.b32.xlu0 %v1118, 48
      %v1734 = vpop.permute.xlu0 %1733
      %v1736 = vsel %vm1122, %v1623, 0
      %v1739 = vsel %vm1634, %v1734, 0
      %1741 = vmatprep.subr.bf16.mxu0 0
      %1742 = vmatpush1.bf16.msra.mxu0 %v1739
      %1743 = vmatprep.subr.bf16.mxu0 0
      %1744 = vmatpush1.bf16.msra.mxu0 0
      %1745 = vmatprep.subr.bf16.mxu0 0
      %1746 = vmatpush1.bf16.msra.mxu0 0
      %1747 = vmatprep.subr.bf16.mxu0 0
      %1748 = vmatpush1.bf16.msra.mxu0 0
      %1749 = vmatprep.subr.bf16.mxu0 0
      %1750 = vmatpush1.bf16.msra.mxu0 0
      %1751 = vmatprep.subr.bf16.mxu0 0
      %1752 = vmatpush1.bf16.msra.mxu0 0
      %1753 = vmatprep.subr.bf16.mxu0 0
      %1754 = vmatpush1.bf16.msra.mxu0 0
      %1755 = vmatprep.subr.bf16.mxu0 0
      %1756 = vmatpush1.bf16.msra.mxu0 0
      %1757 = vmatprep.subr.bf16.mxu0 0
      %1758 = vmatpush1.bf16.msra.mxu0 0
      %1759 = vmatprep.subr.bf16.mxu0 0
      %1760 = vmatpush1.bf16.msra.mxu0 0
      %1761 = vmatprep.subr.bf16.mxu0 0
      %1762 = vmatpush1.bf16.msra.mxu0 0
      %1763 = vmatprep.subr.bf16.mxu0 0
      %1764 = vmatpush1.bf16.msra.mxu0 0
      %1765 = vmatprep.subr.bf16.mxu0 0
      %1766 = vmatpush1.bf16.msra.mxu0 0
      %1767 = vmatprep.subr.bf16.mxu0 0
      %1768 = vmatpush1.bf16.msra.mxu0 0
      %1769 = vmatprep.subr.bf16.mxu0 0
      %1770 = vmatpush1.bf16.msra.mxu0 0
      %1771 = vmatprep.subr.bf16.mxu0 0
      %1772 = vmatpush1.bf16.msra.mxu0 0
      %1773 = vmatprep.mubr.bf16.mxu0 0
      %1774 = vmatmul.mubr.bf16.gmra.mrb[0].mxu0 %v1736
      %v1775 = vpop.f32.mrb[0].mxu0
      %v1776 = vadd.f32 0.0, %v1775
      %v1777 = vpop.f32.mrb[0].mxu0
      %v1778 = vpop.f32.mrb[0].mxu0
      %v1779 = vpop.f32.mrb[0].mxu0
      %1780 = vdwg.mxu0
      %1782 = vrot.lane.b32.xlu0 %v1776, 16
      %v1783 = vpop.permute.xlu0 %1782
      %vm1785 = vcmask 195712
      %1786 = vst.msk [vmem:[#allocation3] sm:$0xff] %vm1785, %v1783
      %1787 = vrot.lane.b32.xlu0 %v1118, 40
      %v1788 = vpop.permute.xlu0 %1787
      %v1790 = vsel %vm1122, %v1624, 0
      %v1793 = vsel %vm1634, %v1788, 0
      %1795 = vmatprep.subr.bf16.mxu0 0
      %1796 = vmatpush1.bf16.msra.mxu0 %v1793
      %1797 = vmatprep.subr.bf16.mxu0 0
      %1798 = vmatpush1.bf16.msra.mxu0 0
      %1799 = vmatprep.subr.bf16.mxu0 0
      %1800 = vmatpush1.bf16.msra.mxu0 0
      %1801 = vmatprep.subr.bf16.mxu0 0
      %1802 = vmatpush1.bf16.msra.mxu0 0
      %1803 = vmatprep.subr.bf16.mxu0 0
      %1804 = vmatpush1.bf16.msra.mxu0 0
      %1805 = vmatprep.subr.bf16.mxu0 0
      %1806 = vmatpush1.bf16.msra.mxu0 0
      %1807 = vmatprep.subr.bf16.mxu0 0
      %1808 = vmatpush1.bf16.msra.mxu0 0
      %1809 = vmatprep.subr.bf16.mxu0 0
      %1810 = vmatpush1.bf16.msra.mxu0 0
      %1811 = vmatprep.subr.bf16.mxu0 0
      %1812 = vmatpush1.bf16.msra.mxu0 0
      %1813 = vmatprep.subr.bf16.mxu0 0
      %1814 = vmatpush1.bf16.msra.mxu0 0
      %1815 = vmatprep.subr.bf16.mxu0 0
      %1816 = vmatpush1.bf16.msra.mxu0 0
      %1817 = vmatprep.subr.bf16.mxu0 0
      %1818 = vmatpush1.bf16.msra.mxu0 0
      %1819 = vmatprep.subr.bf16.mxu0 0
      %1820 = vmatpush1.bf16.msra.mxu0 0
      %1821 = vmatprep.subr.bf16.mxu0 0
      %1822 = vmatpush1.bf16.msra.mxu0 0
      %1823 = vmatprep.subr.bf16.mxu0 0
      %1824 = vmatpush1.bf16.msra.mxu0 0
      %1825 = vmatprep.subr.bf16.mxu0 0
      %1826 = vmatpush1.bf16.msra.mxu0 0
      %1827 = vmatprep.mubr.bf16.mxu0 0
      %1828 = vmatmul.mubr.bf16.gmra.mrb[0].mxu0 %v1790
      %v1829 = vpop.f32.mrb[0].mxu0
      %v1830 = vadd.f32 0.0, %v1829
      %v1831 = vpop.f32.mrb[0].mxu0
      %v1832 = vpop.f32.mrb[0].mxu0
      %v1833 = vpop.f32.mrb[0].mxu0
      %1834 = vdwg.mxu0
      %1836 = vrot.lane.b32.xlu0 %v1830, 24
      %v1837 = vpop.permute.xlu0 %1836
      %vm1839 = vcmask 261312
      %1840 = vst.msk [vmem:[#allocation3] sm:$0xff] %vm1839, %v1837
      %1841 = vrot.lane.b32.xlu0 %v1319, 64
      %v1842 = vpop.permute.xlu0 %1841
      %v1844 = vsel %vm1122, %v1625, 0
      %v1847 = vsel %vm1634, %v1842, 0
      %1849 = vmatprep.subr.bf16.mxu0 0
      %1850 = vmatpush1.bf16.msra.mxu0 %v1847
      %1851 = vmatprep.subr.bf16.mxu0 0
      %1852 = vmatpush1.bf16.msra.mxu0 0
      %1853 = vmatprep.subr.bf16.mxu0 0
      %1854 = vmatpush1.bf16.msra.mxu0 0
      %1855 = vmatprep.subr.bf16.mxu0 0
      %1856 = vmatpush1.bf16.msra.mxu0 0
      %1857 = vmatprep.subr.bf16.mxu0 0
      %1858 = vmatpush1.bf16.msra.mxu0 0
      %1859 = vmatprep.subr.bf16.mxu0 0
      %1860 = vmatpush1.bf16.msra.mxu0 0
      %1861 = vmatprep.subr.bf16.mxu0 0
      %1862 = vmatpush1.bf16.msra.mxu0 0
      %1863 = vmatprep.subr.bf16.mxu0 0
      %1864 = vmatpush1.bf16.msra.mxu0 0
      %1865 = vmatprep.subr.bf16.mxu0 0
      %1866 = vmatpush1.bf16.msra.mxu0 0
      %1867 = vmatprep.subr.bf16.mxu0 0
      %1868 = vmatpush1.bf16.msra.mxu0 0
      %1869 = vmatprep.subr.bf16.mxu0 0
      %1870 = vmatpush1.bf16.msra.mxu0 0
      %1871 = vmatprep.subr.bf16.mxu0 0
      %1872 = vmatpush1.bf16.msra.mxu0 0
      %1873 = vmatprep.subr.bf16.mxu0 0
      %1874 = vmatpush1.bf16.msra.mxu0 0
      %1875 = vmatprep.subr.bf16.mxu0 0
      %1876 = vmatpush1.bf16.msra.mxu0 0
      %1877 = vmatprep.subr.bf16.mxu0 0
      %1878 = vmatpush1.bf16.msra.mxu0 0
      %1879 = vmatprep.subr.bf16.mxu0 0
      %1880 = vmatpush1.bf16.msra.mxu0 0
      %1881 = vmatprep.mubr.bf16.mxu0 0
      %1882 = vmatmul.mubr.bf16.gmra.mrb[0].mxu0 %v1844
      %v1883 = vpop.f32.mrb[0].mxu0
      %v1884 = vadd.f32 0.0, %v1883
      %v1885 = vpop.f32.mrb[0].mxu0
      %v1886 = vpop.f32.mrb[0].mxu0
      %v1887 = vpop.f32.mrb[0].mxu0
      %1888 = vdwg.mxu0
      %1889 = vst.msk [vmem:[#allocation3 + $0x8] sm:$0xff] %vm1122, %v1884
      %1890 = vrot.lane.b32.xlu0 %v1319, 56
      %v1891 = vpop.permute.xlu0 %1890
      %v1893 = vsel %vm1122, %v1626, 0
      %v1896 = vsel %vm1634, %v1891, 0
      %1898 = vmatprep.subr.bf16.mxu0 0
      %1899 = vmatpush1.bf16.msra.mxu0 %v1896
      %1900 = vmatprep.subr.bf16.mxu0 0
      %1901 = vmatpush1.bf16.msra.mxu0 0
      %1902 = vmatprep.subr.bf16.mxu0 0
      %1903 = vmatpush1.bf16.msra.mxu0 0
      %1904 = vmatprep.subr.bf16.mxu0 0
      %1905 = vmatpush1.bf16.msra.mxu0 0
      %1906 = vmatprep.subr.bf16.mxu0 0
      %1907 = vmatpush1.bf16.msra.mxu0 0
      %1908 = vmatprep.subr.bf16.mxu0 0
      %1909 = vmatpush1.bf16.msra.mxu0 0
      %1910 = vmatprep.subr.bf16.mxu0 0
      %1911 = vmatpush1.bf16.msra.mxu0 0
      %1912 = vmatprep.subr.bf16.mxu0 0
      %1913 = vmatpush1.bf16.msra.mxu0 0
      %1914 = vmatprep.subr.bf16.mxu0 0
      %1915 = vmatpush1.bf16.msra.mxu0 0
      %1916 = vmatprep.subr.bf16.mxu0 0
      %1917 = vmatpush1.bf16.msra.mxu0 0
      %1918 = vmatprep.subr.bf16.mxu0 0
      %1919 = vmatpush1.bf16.msra.mxu0 0
      %1920 = vmatprep.subr.bf16.mxu0 0
      %1921 = vmatpush1.bf16.msra.mxu0 0
      %1922 = vmatprep.subr.bf16.mxu0 0
      %1923 = vmatpush1.bf16.msra.mxu0 0
      %1924 = vmatprep.subr.bf16.mxu0 0
      %1925 = vmatpush1.bf16.msra.mxu0 0
      %1926 = vmatprep.subr.bf16.mxu0 0
      %1927 = vmatpush1.bf16.msra.mxu0 0
      %1928 = vmatprep.subr.bf16.mxu0 0
      %1929 = vmatpush1.bf16.msra.mxu0 0
      %1930 = vmatprep.mubr.bf16.mxu0 0
      %1931 = vmatmul.mubr.bf16.gmra.mrb[0].mxu0 %v1893
      %v1932 = vpop.f32.mrb[0].mxu0
      %v1933 = vadd.f32 0.0, %v1932
      %v1934 = vpop.f32.mrb[0].mxu0
      %v1935 = vpop.f32.mrb[0].mxu0
      %v1936 = vpop.f32.mrb[0].mxu0
      %1937 = vdwg.mxu0
      %1939 = vrot.lane.b32.xlu0 %v1933, 8
      %v1940 = vpop.permute.xlu0 %1939
      %1942 = vst.msk [vmem:[#allocation3 + $0x8] sm:$0xff] %vm1731, %v1940
      %1943 = vrot.lane.b32.xlu0 %v1319, 48
      %v1944 = vpop.permute.xlu0 %1943
      %v1946 = vsel %vm1122, %v1627, 0
      %v1949 = vsel %vm1634, %v1944, 0
      %1951 = vmatprep.subr.bf16.mxu0 0
      %1952 = vmatpush1.bf16.msra.mxu0 %v1949
      %1953 = vmatprep.subr.bf16.mxu0 0
      %1954 = vmatpush1.bf16.msra.mxu0 0
      %1955 = vmatprep.subr.bf16.mxu0 0
      %1956 = vmatpush1.bf16.msra.mxu0 0
      %1957 = vmatprep.subr.bf16.mxu0 0
      %1958 = vmatpush1.bf16.msra.mxu0 0
      %1959 = vmatprep.subr.bf16.mxu0 0
      %1960 = vmatpush1.bf16.msra.mxu0 0
      %1961 = vmatprep.subr.bf16.mxu0 0
      %1962 = vmatpush1.bf16.msra.mxu0 0
      %1963 = vmatprep.subr.bf16.mxu0 0
      %1964 = vmatpush1.bf16.msra.mxu0 0
      %1965 = vmatprep.subr.bf16.mxu0 0
      %1966 = vmatpush1.bf16.msra.mxu0 0
      %1967 = vmatprep.subr.bf16.mxu0 0
      %1968 = vmatpush1.bf16.msra.mxu0 0
      %1969 = vmatprep.subr.bf16.mxu0 0
      %1970 = vmatpush1.bf16.msra.mxu0 0
      %1971 = vmatprep.subr.bf16.mxu0 0
      %1972 = vmatpush1.bf16.msra.mxu0 0
      %1973 = vmatprep.subr.bf16.mxu0 0
      %1974 = vmatpush1.bf16.msra.mxu0 0
      %1975 = vmatprep.subr.bf16.mxu0 0
      %1976 = vmatpush1.bf16.msra.mxu0 0
      %1977 = vmatprep.subr.bf16.mxu0 0
      %1978 = vmatpush1.bf16.msra.mxu0 0
      %1979 = vmatprep.subr.bf16.mxu0 0
      %1980 = vmatpush1.bf16.msra.mxu0 0
      %1981 = vmatprep.subr.bf16.mxu0 0
      %1982 = vmatpush1.bf16.msra.mxu0 0
      %1983 = vmatprep.mubr.bf16.mxu0 0
      %1984 = vmatmul.mubr.bf16.gmra.mrb[0].mxu0 %v1946
      %v1985 = vpop.f32.mrb[0].mxu0
      %v1986 = vadd.f32 0.0, %v1985
      %v1987 = vpop.f32.mrb[0].mxu0
      %v1988 = vpop.f32.mrb[0].mxu0
      %v1989 = vpop.f32.mrb[0].mxu0
      %1990 = vdwg.mxu0
      %1992 = vrot.lane.b32.xlu0 %v1986, 16
      %v1993 = vpop.permute.xlu0 %1992
      %1995 = vst.msk [vmem:[#allocation3 + $0x8] sm:$0xff] %vm1785, %v1993
      %1996 = vrot.lane.b32.xlu0 %v1319, 40
      %v1997 = vpop.permute.xlu0 %1996
      %v1999 = vsel %vm1122, %v1628, 0
      %v2002 = vsel %vm1634, %v1997, 0
      %2004 = vmatprep.subr.bf16.mxu0 0
      %2005 = vmatpush1.bf16.msra.mxu0 %v2002
      %2006 = vmatprep.subr.bf16.mxu0 0
      %2007 = vmatpush1.bf16.msra.mxu0 0
      %2008 = vmatprep.subr.bf16.mxu0 0
      %2009 = vmatpush1.bf16.msra.mxu0 0
      %2010 = vmatprep.subr.bf16.mxu0 0
      %2011 = vmatpush1.bf16.msra.mxu0 0
      %2012 = vmatprep.subr.bf16.mxu0 0
      %2013 = vmatpush1.bf16.msra.mxu0 0
      %2014 = vmatprep.subr.bf16.mxu0 0
      %2015 = vmatpush1.bf16.msra.mxu0 0
      %2016 = vmatprep.subr.bf16.mxu0 0
      %2017 = vmatpush1.bf16.msra.mxu0 0
      %2018 = vmatprep.subr.bf16.mxu0 0
      %2019 = vmatpush1.bf16.msra.mxu0 0
      %2020 = vmatprep.subr.bf16.mxu0 0
      %2021 = vmatpush1.bf16.msra.mxu0 0
      %2022 = vmatprep.subr.bf16.mxu0 0
      %2023 = vmatpush1.bf16.msra.mxu0 0
      %2024 = vmatprep.subr.bf16.mxu0 0
      %2025 = vmatpush1.bf16.msra.mxu0 0
      %2026 = vmatprep.subr.bf16.mxu0 0
      %2027 = vmatpush1.bf16.msra.mxu0 0
      %2028 = vmatprep.subr.bf16.mxu0 0
      %2029 = vmatpush1.bf16.msra.mxu0 0
      %2030 = vmatprep.subr.bf16.mxu0 0
      %2031 = vmatpush1.bf16.msra.mxu0 0
      %2032 = vmatprep.subr.bf16.mxu0 0
      %2033 = vmatpush1.bf16.msra.mxu0 0
      %2034 = vmatprep.subr.bf16.mxu0 0
      %2035 = vmatpush1.bf16.msra.mxu0 0
      %2036 = vmatprep.mubr.bf16.mxu0 0
      %2037 = vmatmul.mubr.bf16.gmra.mrb[0].mxu0 %v1999
      %v2038 = vpop.f32.mrb[0].mxu0
      %v2039 = vadd.f32 0.0, %v2038
      %v2040 = vpop.f32.mrb[0].mxu0
      %v2041 = vpop.f32.mrb[0].mxu0
      %v2042 = vpop.f32.mrb[0].mxu0
      %2043 = vdwg.mxu0
      %2045 = vrot.lane.b32.xlu0 %v2039, 24
      %v2046 = vpop.permute.xlu0 %2045
      %2048 = vst.msk [vmem:[#allocation3 + $0x8] sm:$0xff] %vm1839, %v2046
      %v2049 = vld [vmem:[#allocation3] sm:$0xff]
      %v2050 = vld [vmem:[#allocation3 + $0x8] sm:$0xff]
      %v2051 = vpack.c.bf16 %v2050, %v2049
      %v2052 = vld [vmem:[%s800] sm:$0xf]
      %v2053 = vld [vmem:[%s800 + $0x4] sm:$0xf]
      %v2054 = vld [vmem:[%s800 + $0x8] sm:$0xf]
      %v2055 = vld [vmem:[%s800 + $0xc] sm:$0xf]
      %v2056 = vld [vmem:[%s803] sm:$0x1]
      %v2058 = vlaneseq
      %v2059 = vshrl.u32 %v2058, 7
      %v2060 = vsub.s32 0, %v2059
      %v2061 = vrot.slane %v2056, %v2060
      %v2067 = vunpack.c.l.b16 %v2052
      %v2068 = vunpack.c.l.b16 %v2053
      %v2069 = vunpack.c.l.b16 %v2054
      %v2070 = vunpack.c.l.b16 %v2055
      %v2071 = vpack.c.b16 %v2068, %v2067
      %v2072 = vpack.c.b16 %v2070, %v2069
      %v2076 = vsel %vm943, %v2051, 0
      %2078 = vmatprep.subr.bf16.mxu0 0
      %2079 = vmatpush1.bf16.msra.mxu0 %v2071
      %2080 = vmatprep.subr.bf16.mxu0 0
      %2081 = vmatpush1.bf16.msra.mxu0 %v2072
      %2082 = vmatprep.subr.bf16.mxu0 0
      %2083 = vmatpush1.bf16.msra.mxu0 0
      %2084 = vmatprep.subr.bf16.mxu0 0
      %2085 = vmatpush1.bf16.msra.mxu0 0
      %2086 = vmatprep.subr.bf16.mxu0 0
      %2087 = vmatpush1.bf16.msra.mxu0 0
      %2088 = vmatprep.subr.bf16.mxu0 0
      %2089 = vmatpush1.bf16.msra.mxu0 0
      %2090 = vmatprep.subr.bf16.mxu0 0
      %2091 = vmatpush1.bf16.msra.mxu0 0
      %2092 = vmatprep.subr.bf16.mxu0 0
      %2093 = vmatpush1.bf16.msra.mxu0 0
      %2094 = vmatprep.subr.bf16.mxu0 0
      %2095 = vmatpush1.bf16.msra.mxu0 0
      %2096 = vmatprep.subr.bf16.mxu0 0
      %2097 = vmatpush1.bf16.msra.mxu0 0
      %2098 = vmatprep.subr.bf16.mxu0 0
      %2099 = vmatpush1.bf16.msra.mxu0 0
      %2100 = vmatprep.subr.bf16.mxu0 0
      %2101 = vmatpush1.bf16.msra.mxu0 0
      %2102 = vmatprep.subr.bf16.mxu0 0
      %2103 = vmatpush1.bf16.msra.mxu0 0
      %2104 = vmatprep.subr.bf16.mxu0 0
      %2105 = vmatpush1.bf16.msra.mxu0 0
      %2106 = vmatprep.subr.bf16.mxu0 0
      %2107 = vmatpush1.bf16.msra.mxu0 0
      %2108 = vmatprep.subr.bf16.mxu0 0
      %2109 = vmatpush1.bf16.msra.mxu0 0
      %2110 = vmatprep.mubr.bf16.mxu0 0
      %2111 = vmatmul.mubr.bf16.gmra.mrb[0].mxu0 %v2076
      %v2112 = vpop.f32.mrb[0].mxu0
      %v2113 = vadd.f32 %v2061, %v2112
      %v2114 = vpop.f32.mrb[0].mxu0
      %v2115 = vpop.f32.mrb[0].mxu0
      %v2116 = vadd.f32 %v2061, %v2115
      %v2117 = vpop.f32.mrb[0].mxu0
      %2118 = vdwg.mxu0
      %v2119 = vadd.f32 %v941, %v2113
      %v2120 = vadd.f32 %v942, %v2116
      %v2121 = vsel %vm943, %v2119, 0.0
      %2122 = vadd.xlane.f32.xlu0 %v2121
      %v2123 = vpop.xlane.xlu0 %2122
      %v2124 = vsel %vm943, %v2120, 0.0
      %2125 = vadd.xlane.f32.xlu0 %v2124
      %v2126 = vpop.xlane.xlu0 %2125
      %v2127 = vmul.f32 %v2123, %v950
      %v2128 = vmul.f32 %v2126, %v950
      %v2129 = vsub.f32 %v2119, %v2127
      %v2130 = vsub.f32 %v2120, %v2128
      %v2131 = vmul.f32 %v2129, %v2129
      %v2132 = vmul.f32 %v2130, %v2130
      %v2133 = vsel %vm943, %v2131, 0.0
      %2134 = vadd.xlane.f32.xlu0 %v2133
      %v2135 = vpop.xlane.xlu0 %2134
      %v2136 = vsel %vm943, %v2132, 0.0
      %2137 = vadd.xlane.f32.xlu0 %v2136
      %v2138 = vpop.xlane.xlu0 %2137
      %v2139 = vmul.f32 %v2135, %v950
      %v2140 = vmul.f32 %v2138, %v950
      %v2141 = vadd.f32 %v2139, 1e-05
      %v2142 = vadd.f32 %v2140, 1e-05
      %v2143 = vrsqrt.pop %v2141
      %v2144 = vrsqrt.pop %v2142
      %v2145 = vmul.f32 %v2129, %v2143
      %v2146 = vmul.f32 %v2130, %v2144
      %v2147 = vld [vmem:[%s812] sm:$0x1]
      %v2149 = vlaneseq
      %v2150 = vshrl.u32 %v2149, 7
      %v2151 = vsub.s32 0, %v2150
      %v2152 = vrot.slane %v2147, %v2151
      %v2154 = vmul.f32 %v2145, %v2152
      %v2155 = vmul.f32 %v2146, %v2152
      %v2156 = vld [vmem:[%s815] sm:$0x1]
      %v2158 = vlaneseq
      %v2159 = vshrl.u32 %v2158, 7
      %v2160 = vsub.s32 0, %v2159
      %v2161 = vrot.slane %v2156, %v2160
      %v2163 = vadd.f32 %v2154, %v2161
      %v2164 = vadd.f32 %v2155, %v2161
      %v2165 = vpack.c.bf16 %v2164, %v2163
      %v2166 = vld [vmem:[%s820] sm:$0xf]
      %v2167 = vld [vmem:[%s820 + $0x4] sm:$0xf]
      %v2168 = vld [vmem:[%s820 + $0x8] sm:$0xf]
      %v2169 = vld [vmem:[%s820 + $0xc] sm:$0xf]
      %v2170 = vld [vmem:[%s823] sm:$0x1]
      %v2172 = vlaneseq
      %v2173 = vshrl.u32 %v2172, 7
      %v2174 = vsub.s32 0, %v2173
      %v2175 = vrot.slane %v2170, %v2174
      %v2181 = vunpack.c.l.b16 %v2166
      %v2182 = vunpack.c.l.b16 %v2167
      %v2183 = vunpack.c.l.b16 %v2168
      %v2184 = vunpack.c.l.b16 %v2169
      %v2185 = vpack.c.b16 %v2182, %v2181
      %v2186 = vpack.c.b16 %v2184, %v2183
      %v2190 = vsel %vm943, %v2165, 0
      %2192 = vmatprep.subr.bf16.mxu0 0
      %2193 = vmatpush1.bf16.msra.mxu0 %v2185
      %2194 = vmatprep.subr.bf16.mxu0 0
      %2195 = vmatpush1.bf16.msra.mxu0 %v2186
      %2196 = vmatprep.subr.bf16.mxu0 0
      %2197 = vmatpush1.bf16.msra.mxu0 0
      %2198 = vmatprep.subr.bf16.mxu0 0
      %2199 = vmatpush1.bf16.msra.mxu0 0
      %2200 = vmatprep.subr.bf16.mxu0 0
      %2201 = vmatpush1.bf16.msra.mxu0 0
      %2202 = vmatprep.subr.bf16.mxu0 0
      %2203 = vmatpush1.bf16.msra.mxu0 0
      %2204 = vmatprep.subr.bf16.mxu0 0
      %2205 = vmatpush1.bf16.msra.mxu0 0
      %2206 = vmatprep.subr.bf16.mxu0 0
      %2207 = vmatpush1.bf16.msra.mxu0 0
      %2208 = vmatprep.subr.bf16.mxu0 0
      %2209 = vmatpush1.bf16.msra.mxu0 0
      %2210 = vmatprep.subr.bf16.mxu0 0
      %2211 = vmatpush1.bf16.msra.mxu0 0
      %2212 = vmatprep.subr.bf16.mxu0 0
      %2213 = vmatpush1.bf16.msra.mxu0 0
      %2214 = vmatprep.subr.bf16.mxu0 0
      %2215 = vmatpush1.bf16.msra.mxu0 0
      %2216 = vmatprep.subr.bf16.mxu0 0
      %2217 = vmatpush1.bf16.msra.mxu0 0
      %2218 = vmatprep.subr.bf16.mxu0 0
      %2219 = vmatpush1.bf16.msra.mxu0 0
      %2220 = vmatprep.subr.bf16.mxu0 0
      %2221 = vmatpush1.bf16.msra.mxu0 0
      %2222 = vmatprep.subr.bf16.mxu0 0
      %2223 = vmatpush1.bf16.msra.mxu0 0
      %2224 = vmatprep.mubr.bf16.mxu0 0
      %2225 = vmatmul.mubr.bf16.gmra.mrb[0].mxu0 %v2190
      %v2226 = vpop.f32.mrb[0].mxu0
      %v2227 = vadd.f32 %v2175, %v2226
      %v2228 = vpop.f32.mrb[0].mxu0
      %v2229 = vpop.f32.mrb[0].mxu0
      %v2230 = vadd.f32 %v2175, %v2229
      %v2231 = vpop.f32.mrb[0].mxu0
      %2232 = vdwg.mxu0
      %v2233 = vmax.f32 %v2227, 0.0
      %v2234 = vmax.f32 %v2230, 0.0
      %v2235 = vpack.c.bf16 %v2234, %v2233
      %v2236 = vld [vmem:[%s828] sm:$0xf]
      %v2237 = vld [vmem:[%s828 + $0x4] sm:$0xf]
      %v2238 = vld [vmem:[%s828 + $0x8] sm:$0xf]
      %v2239 = vld [vmem:[%s828 + $0xc] sm:$0xf]
      %v2240 = vld [vmem:[%s828 + $0x10] sm:$0xf]
      %v2241 = vld [vmem:[%s828 + $0x14] sm:$0xf]
      %v2242 = vld [vmem:[%s828 + $0x18] sm:$0xf]
      %v2243 = vld [vmem:[%s828 + $0x1c] sm:$0xf]
      %v2244 = vld [vmem:[%s828 + $0x20] sm:$0xf]
      %v2245 = vld [vmem:[%s828 + $0x24] sm:$0xf]
      %v2246 = vld [vmem:[%s828 + $0x28] sm:$0xf]
      %v2247 = vld [vmem:[%s828 + $0x2c] sm:$0xf]
      %v2248 = vld [vmem:[%s828 + $0x30] sm:$0xf]
      %v2249 = vld [vmem:[%s828 + $0x34] sm:$0xf]
      %v2250 = vld [vmem:[%s828 + $0x38] sm:$0xf]
      %v2251 = vld [vmem:[%s828 + $0x3c] sm:$0xf]
      %v2252 = vld [vmem:[%s831] sm:$0x1]
      %v2254 = vlaneseq
      %v2255 = vshrl.u32 %v2254, 7
      %v2256 = vsub.s32 0, %v2255
      %v2257 = vrot.slane %v2252, %v2256
      %v2275 = vunpack.c.l.b16 %v2236
      %v2276 = vunpack.c.l.b16 %v2237
      %v2277 = vunpack.c.l.b16 %v2238
      %v2278 = vunpack.c.l.b16 %v2239
      %v2279 = vunpack.c.l.b16 %v2240
      %v2280 = vunpack.c.l.b16 %v2241
      %v2281 = vunpack.c.l.b16 %v2242
      %v2282 = vunpack.c.l.b16 %v2243
      %v2283 = vunpack.c.l.b16 %v2244
      %v2284 = vunpack.c.l.b16 %v2245
      %v2285 = vunpack.c.l.b16 %v2246
      %v2286 = vunpack.c.l.b16 %v2247
      %v2287 = vunpack.c.l.b16 %v2248
      %v2288 = vunpack.c.l.b16 %v2249
      %v2289 = vunpack.c.l.b16 %v2250
      %v2290 = vunpack.c.l.b16 %v2251
      %v2291 = vpack.c.b16 %v2276, %v2275
      %v2292 = vpack.c.b16 %v2278, %v2277
      %v2293 = vpack.c.b16 %v2280, %v2279
      %v2294 = vpack.c.b16 %v2282, %v2281
      %v2295 = vpack.c.b16 %v2284, %v2283
      %v2296 = vpack.c.b16 %v2286, %v2285
      %v2297 = vpack.c.b16 %v2288, %v2287
      %v2298 = vpack.c.b16 %v2290, %v2289
      %2307 = vmatprep.subr.bf16.mxu0 0
      %2308 = vmatpush1.bf16.msra.mxu0 %v2291
      %2309 = vmatprep.subr.bf16.mxu0 0
      %2310 = vmatpush1.bf16.msra.mxu0 %v2292
      %2311 = vmatprep.subr.bf16.mxu0 0
      %2312 = vmatpush1.bf16.msra.mxu0 %v2293
      %2313 = vmatprep.subr.bf16.mxu0 0
      %2314 = vmatpush1.bf16.msra.mxu0 %v2294
      %2315 = vmatprep.subr.bf16.mxu0 0
      %2316 = vmatpush1.bf16.msra.mxu0 %v2295
      %2317 = vmatprep.subr.bf16.mxu0 0
      %2318 = vmatpush1.bf16.msra.mxu0 %v2296
      %2319 = vmatprep.subr.bf16.mxu0 0
      %2320 = vmatpush1.bf16.msra.mxu0 %v2297
      %2321 = vmatprep.subr.bf16.mxu0 0
      %2322 = vmatpush1.bf16.msra.mxu0 %v2298
      %2323 = vmatprep.subr.bf16.mxu0 0
      %2324 = vmatpush1.bf16.msra.mxu0 0
      %2325 = vmatprep.subr.bf16.mxu0 0
      %2326 = vmatpush1.bf16.msra.mxu0 0
      %2327 = vmatprep.subr.bf16.mxu0 0
      %2328 = vmatpush1.bf16.msra.mxu0 0
      %2329 = vmatprep.subr.bf16.mxu0 0
      %2330 = vmatpush1.bf16.msra.mxu0 0
      %2331 = vmatprep.subr.bf16.mxu0 0
      %2332 = vmatpush1.bf16.msra.mxu0 0
      %2333 = vmatprep.subr.bf16.mxu0 0
      %2334 = vmatpush1.bf16.msra.mxu0 0
      %2335 = vmatprep.subr.bf16.mxu0 0
      %2336 = vmatpush1.bf16.msra.mxu0 0
      %2337 = vmatprep.subr.bf16.mxu0 0
      %2338 = vmatpush1.bf16.msra.mxu0 0
      %2339 = vmatprep.mubr.bf16.mxu0 0
      %2340 = vmatmul.mubr.bf16.gmra.mrb[0].mxu0 %v2235
      %v2341 = vpop.f32.mrb[0].mxu0
      %v2342 = vadd.f32 %v2257, %v2341
      %v2343 = vpop.f32.mrb[0].mxu0
      %v2344 = vpop.f32.mrb[0].mxu0
      %v2345 = vadd.f32 %v2257, %v2344
      %v2346 = vpop.f32.mrb[0].mxu0
      %2347 = vdwg.mxu0
      %v2348 = vadd.f32 %v2119, %v2342
      %v2349 = vadd.f32 %v2120, %v2345
      %2350 = vst.msk [vmem:[#allocation2] sm:$0xff] %vm943, %v2348
      %2351 = vst.msk [vmem:[#allocation2 + $0x8] sm:$0xff] %vm943, %v2349
      %p2352 = scmp.eq.s32.totalorder %s38, 1
      // Predicated region
      $region105: #{encoder_forward.1} parent=99 // pred_check
        %p2353 = pneg %p2352
      $region106: #{encoder_forward.1} parent=99 // pred_check_branch
        %2355 = sbr.rel (%p2353) target = $region108
      $region107: #{encoder_forward.1} parent=99 // pred_region
        %v2356 = vld [vmem:[%s18] sm:$0xff]
        %v2357 = vld [vmem:[%s18 + $0x8] sm:$0xff]
        %v2358 = vld [vmem:[%s18 + $0x10] sm:$0xff]
        %v2359 = vld [vmem:[%s18 + $0x18] sm:$0xff]
        %v2360 = vld [vmem:[#allocation4] sm:$0x1]
        %v2362 = vlaneseq
        %v2363 = vshrl.u32 %v2362, 7
        %v2364 = vsub.s32 0, %v2363
        %v2365 = vrot.slane %v2360, %v2364
        %v2369 = vrot.slane %v2348, 7
        %v2370 = vrot.slane %v2349, 6
        %vm2371 = vcmask 1041409
        %v2372 = vsel %vm2371, %v2370, %v2369
        %v2373 = vsel %vm943, %v2372, 0
        %2375 = vmatprep.subr.mxu0 0.0
        %2376 = vmatpush1.msra.mxu0 %v2356
        %2377 = vmatprep.subr.mxu0 0.0
        %2378 = vmatpush1.msra.mxu0 %v2357
        %2379 = vmatprep.subr.mxu0 0.0
        %2380 = vmatpush1.msra.mxu0 %v2358
        %2381 = vmatprep.subr.mxu0 0.0
        %2382 = vmatpush1.msra.mxu0 %v2359
        %2383 = vmatprep.subr.mxu0 0.0
        %2384 = vmatpush1.msra.mxu0 0.0
        %2385 = vmatprep.subr.mxu0 0.0
        %2386 = vmatpush1.msra.mxu0 0.0
        %2387 = vmatprep.subr.mxu0 0.0
        %2388 = vmatpush1.msra.mxu0 0.0
        %2389 = vmatprep.subr.mxu0 0.0
        %2390 = vmatpush1.msra.mxu0 0.0
        %2391 = vmatprep.subr.mxu0 0.0
        %2392 = vmatpush1.msra.mxu0 0.0
        %2393 = vmatprep.subr.mxu0 0.0
        %2394 = vmatpush1.msra.mxu0 0.0
        %2395 = vmatprep.subr.mxu0 0.0
        %2396 = vmatpush1.msra.mxu0 0.0
        %2397 = vmatprep.subr.mxu0 0.0
        %2398 = vmatpush1.msra.mxu0 0.0
        %2399 = vmatprep.subr.mxu0 0.0
        %2400 = vmatpush1.msra.mxu0 0.0
        %2401 = vmatprep.subr.mxu0 0.0
        %2402 = vmatpush1.msra.mxu0 0.0
        %2403 = vmatprep.subr.mxu0 0.0
        %2404 = vmatpush1.msra.mxu0 0.0
        %2405 = vmatprep.subr.mxu0 0.0
        %2406 = vmatpush1.msra.mxu0 0.0
        %2407 = vmatprep.subr.mxu0 0.0
        %2408 = vmatpush1.msra.mxu0 0.0
        %2409 = vmatprep.subr.mxu0 0.0
        %2410 = vmatpush1.msra.mxu0 0.0
        %2411 = vmatprep.subr.mxu0 0.0
        %2412 = vmatpush1.msra.mxu0 0.0
        %2413 = vmatprep.subr.mxu0 0.0
        %2414 = vmatpush1.msra.mxu0 0.0
        %2415 = vmatprep.subr.mxu0 0.0
        %2416 = vmatpush1.msra.mxu0 0.0
        %2417 = vmatprep.subr.mxu0 0.0
        %2418 = vmatpush1.msra.mxu0 0.0
        %2419 = vmatprep.subr.mxu0 0.0
        %2420 = vmatpush1.msra.mxu0 0.0
        %2421 = vmatprep.subr.mxu0 0.0
        %2422 = vmatpush1.msra.mxu0 0.0
        %2423 = vmatprep.subr.mxu0 0.0
        %2424 = vmatpush1.msra.mxu0 0.0
        %2425 = vmatprep.subr.mxu0 0.0
        %2426 = vmatpush1.msra.mxu0 0.0
        %2427 = vmatprep.subr.mxu0 0.0
        %2428 = vmatpush1.msra.mxu0 0.0
        %2429 = vmatprep.subr.mxu0 0.0
        %2430 = vmatpush1.msra.mxu0 0.0
        %2431 = vmatprep.subr.mxu0 0.0
        %2432 = vmatpush1.msra.mxu0 0.0
        %2433 = vmatprep.subr.mxu0 0.0
        %2434 = vmatpush1.msra.mxu0 0.0
        %2435 = vmatprep.subr.mxu0 0.0
        %2436 = vmatpush1.msra.mxu0 0.0
        %2437 = vmatprep.subr.mxu0 0.0
        %2438 = vmatpush1.msra.mxu0 0.0
        %2439 = vmatprep.mubr.f32.mxu0 0.0
        %2440 = vmatmul.mubr.f32.gmra.mrb[0].mxu0 %v2373
        %v2441 = vpop.f32.mrb[0].mxu0
        %v2442 = vadd.f32 %v2365, %v2441
        %v2443 = vpop.f32.mrb[0].mxu0
        %2444 = vdwg.mxu0
        %v2447 = vunpack.c.l.s4 1966171168
        %v2448 = vunpack.c.0.s8 %v2447
        %v2449 = vlaneseq
        %v2450 = vshrl.u32 %v2449, 7
        %v2451 = vsub.s32 %v2448, %v2450
        %v2452 = vrot.slane %v2442, %v2451
        %v2453 = vcombine.high %v2452, %v2452
        %v2455 = vunpack.c.l.s4 1966171168
        %v2456 = vunpack.c.0.s8 %v2455
        %v2457 = vlaneseq
        %v2458 = vshrl.u32 %v2457, 7
        %v2459 = vsub.s32 %v2456, %v2458
        %v2460 = vrot.slane %v2452, %v2459
        %v2462 = vunpack.c.l.s4 1966171168
        %v2463 = vunpack.c.0.s8 %v2462
        %v2464 = vlaneseq
        %v2465 = vshrl.u32 %v2464, 7
        %v2466 = vsub.s32 %v2463, %v2465
        %v2467 = vrot.slane %v2453, %v2466
        %vm2470 = vcmask 0
        %2471 = vst.msk [vmem:[%s835] sm:$0x1] %vm2470, %v2460
        %2472 = vst.msk [vmem:[%s835 + $0x1] sm:$0x1] %vm2470, %v2467
      $region108: #{encoder_forward.1} parent=99 // pred_fallthru
        _
      %s2473 = smul.u32 2, %s37
      %p2474 = scmp.lt.s32.totalorder %s2473, 1
      %s2475 = scalar_select %p2474, %s2473, 1
      %s2476 = scalar_lea.vmem %s20, %s2475
      // Predicated region
      $region109: #{encoder_forward.1} parent=99 // pred_check
        %p2477 = pneg %p548
      $region110: #{encoder_forward.1} parent=99 // pred_check_branch
        %2479 = sbr.rel (%p2477) target = $region112
      $region111: #{encoder_forward.1} parent=99 // pred_region
        %s2480 = smul.u32 2, %s37
      $region112: #{encoder_forward.1} parent=99 // pred_fallthru
        _
      // Predicated region
      $region113: #{encoder_forward.1} parent=99 // pred_check
        %p2481 = pneg %p548
      $region114: #{encoder_forward.1} parent=99 // pred_check_branch
        %2483 = sbr.rel (%p2481) target = $region116
      $region115: #{encoder_forward.1} parent=99 // pred_region
        %s2484 = smul.u32 2, %s37
        %p2485 = scmp.lt.s32.totalorder %s2484, 1
        %s2486 = scalar_select %p2485, %s2484, 1
        %s2487 = scalar_lea.vmem %s20, %s2486
      $region116: #{encoder_forward.1} parent=99 // pred_fallthru
        _
    $region100: #{encoder_forward.1} parent=5 // pred_fallthru
      _
    %p2488 = scmp.le.s32.totalorder 2, %s28
    // Predicated region
    $region117: #{encoder_forward.1} parent=5 // pred_check
      %p2489 = pneg %p2488
    $region118: #{encoder_forward.1} parent=5 // pred_check_branch
      %2491 = sbr.rel (%p2489) target = $region120
    $region119: #{encoder_forward.1} parent=5 // pred_region
      %s2492 = ssub.s32 %s28, 2
    $region120: #{encoder_forward.1} parent=5 // pred_fallthru
      _
  $region6: #{encoder_forward.1} parent=0 // loop_footer
    %s32 = sadd.s32 1, %s28
  $region7: #{encoder_forward.1} parent=0 // loop_footer_branch
    %27 = sbr.rel target = $region3
  $region8: #{encoder_forward.1} parent=0 // loop_exit
    _

</llo_original>
